<compile_context>
chip_gen: v5e
topology: v5e:2x2
jax: 0.10.0
libtpu: 0.0.40
codegen_flags: <defaults>
</compile_context>

<pallas_src>
import functools

import jax
import jax.numpy as jnp
from jax.experimental import pallas as pl
from jax.experimental.pallas import tpu as pltpu


# ----------------------------------------------------------------------------
# Pallas kernels
# ----------------------------------------------------------------------------
def _conv_relu_pool_kernel(a00_ref, a01_ref, a10_ref, a11_ref, w_ref, b_ref,
                           o_ref):
    # a*: (TM, K) bf16 im2col rows for the 4 corners of each 2x2 pool window
    # w:  (K, Cp=128) bf16 weights (zero-padded output channels)
    # b:  (1, Cp) f32 bias
    w = w_ref[...]
    d00 = jnp.dot(a00_ref[...], w, preferred_element_type=jnp.float32)
    d01 = jnp.dot(a01_ref[...], w, preferred_element_type=jnp.float32)
    d10 = jnp.dot(a10_ref[...], w, preferred_element_type=jnp.float32)
    d11 = jnp.dot(a11_ref[...], w, preferred_element_type=jnp.float32)
    # max over the 2x2 window, then bias + ReLU (== conv + relu + maxpool).
    m = jnp.maximum(jnp.maximum(d00, d01), jnp.maximum(d10, d11))
    o_ref[...] = jnp.maximum(m + b_ref[...], 0.0).astype(o_ref.dtype)


def _conv_relu_pool_head_kernel(a00_ref, a01_ref, a10_ref, a11_ref,
                                wc_ref, bc_ref, pmat_ref, wfc_ref, bfc_ref,
                                o_ref):
    # Final fused stage: Conv+ReLU+MaxPool, then global average pool
    # (pooling-matrix matmul) and the Linear classifier, all in one kernel.
    wc = wc_ref[...]
    d00 = jnp.dot(a00_ref[...], wc, preferred_element_type=jnp.float32)
    d01 = jnp.dot(a01_ref[...], wc, preferred_element_type=jnp.float32)
    d10 = jnp.dot(a10_ref[...], wc, preferred_element_type=jnp.float32)
    d11 = jnp.dot(a11_ref[...], wc, preferred_element_type=jnp.float32)
    m = jnp.maximum(jnp.maximum(d00, d01), jnp.maximum(d10, d11))
    y = jnp.maximum(m + bc_ref[...], 0.0)                          # (M, Cp) f32
    # Global average pool: pmat is (N, M) with 1/(Hp*Wp) on each sample's rows.
    pooled = jnp.dot(pmat_ref[...], y, preferred_element_type=jnp.float32)
    logits = jnp.dot(pooled, wfc_ref[...], preferred_element_type=jnp.float32)
    o_ref[...] = (logits + bfc_ref[...]).astype(o_ref.dtype)


def _avgpool_linear_kernel(x_ref, w_ref, b_ref, o_ref, *, inv_hw):
    # Fallback (unfused head): x (N, HW, C) -> global avg pool -> Linear.
    pooled = jnp.sum(x_ref[...].astype(jnp.float32), axis=1) * inv_hw   # (N, C)
    out = jnp.dot(pooled, w_ref[...], preferred_element_type=jnp.float32)
    o_ref[...] = (out + b_ref[...]).astype(o_ref.dtype)


# ----------------------------------------------------------------------------
# Glue helpers
# ----------------------------------------------------------------------------
def _pick_tile_m(m):
    """Largest tile <= 512 that divides m and (when possible) gives >=2 steps."""
    if m <= 8:
        return m
    for t in (512, 256, 128, 64, 32, 16, 8):
        if t <= m // 2 and m % t == 0:
            return t
    return m


def _im2col_corners(x_nhwc, KH, KW, stride, padding):
    """Four (M, K) bf16 im2col matrices, one per 2x2 pooling-window corner."""
    N, H, W, Cin = x_nhwc.shape
    Ho = (H + 2 * padding - KH) // stride + 1
    Wo = (W + 2 * padding - KW) // stride + 1
    Hp, Wp = Ho // 2, Wo // 2            # MaxPool2d(2,2) floor behaviour
    M = N * Hp * Wp
    K = KH * KW * Cin

    xp = jnp.pad(x_nhwc, ((0, 0), (padding, padding), (padding, padding), (0, 0)))

    # TODO(synk): a K-slice-accumulation BlockSpec scheme could avoid
    # materializing the im2col patches; at these sizes the XLA-fused
    # slice/concat glue is cheaper and simpler (duplicate slices are CSE'd).
    corners = []
    for dh in (0, 1):
        for dw in (0, 1):
            cols = []
            for kh in range(KH):
                for kw in range(KW):
                    r0 = dh * stride + kh
                    c0 = dw * stride + kw
                    cols.append(xp[:, r0:r0 + 2 * stride * Hp:2 * stride,
                                      c0:c0 + 2 * stride * Wp:2 * stride, :])
            patch = jnp.concatenate(cols, axis=-1)          # (N, Hp, Wp, K)
            corners.append(patch.reshape(M, K).astype(jnp.bfloat16))
    return corners, (N, Hp, Wp, M, K)


def _pack_conv_weights(w_oihw, bias):
    """(Cout, Cin, 3, 3) -> (K, Cp) bf16 with Cout zero-padded to 128 lanes."""
    Cout, Cin, KH, KW = w_oihw.shape
    K = KH * KW * Cin
    Cp = ((Cout + 127) // 128) * 128
    wb = jnp.transpose(w_oihw, (2, 3, 1, 0)).reshape(K, Cout)
    wb = jnp.pad(wb, ((0, 0), (0, Cp - Cout))).astype(jnp.bfloat16)
    bp = jnp.pad(bias, (0, Cp - Cout)).reshape(1, Cp).astype(jnp.float32)
    return wb, bp, Cp


# ----------------------------------------------------------------------------
# Wrappers around pallas_call
# ----------------------------------------------------------------------------
def conv2d_relu_maxpool(x_nhwc, w_oihw, bias, *, stride, padding):
    """Fused Conv2d(3x3) + ReLU + MaxPool2d(2,2) in a single Pallas kernel."""
    Cout, _, KH, KW = w_oihw.shape
    corners, (N, Hp, Wp, M, K) = _im2col_corners(x_nhwc, KH, KW, stride, padding)
    wb, bp, Cp = _pack_conv_weights(w_oihw, bias)

    tile_m = _pick_tile_m(M)
    Mp = ((M + tile_m - 1) // tile_m) * tile_m
    if Mp != M:   # not hit for this pipeline's shapes (M is always tile-aligned)
        corners = [jnp.pad(c, ((0, Mp - M), (0, 0))) for c in corners]

    out = pl.pallas_call(
        _conv_relu_pool_kernel,
        out_shape=jax.ShapeDtypeStruct((Mp, Cp), jnp.bfloat16),
        grid_spec=pltpu.PrefetchScalarGridSpec(
            num_scalar_prefetch=0,
            grid=(Mp // tile_m,),
            in_specs=[pl.BlockSpec((tile_m, K), lambda i: (i, 0))] * 4 + [
                # Constant index_map: weights/bias stay resident across steps.
                pl.BlockSpec((K, Cp), lambda i: (0, 0)),
                pl.BlockSpec((1, Cp), lambda i: (0, 0)),
            ],
            out_specs=pl.BlockSpec((tile_m, Cp), lambda i: (i, 0)),
        ),
        compiler_params=pltpu.CompilerParams(
            dimension_semantics=("parallel",)),
    )(*corners, wb, bp)

    if Mp != M:
        out = out[:M]
    # Slice padded channels back; XLA fuses this with the next layer's glue.
    return out.reshape(N, Hp, Wp, Cp)[..., :Cout]


def avgpool_linear(x_nhwc, w_fc, b_fc):
    """AdaptiveAvgPool2d((1,1)) + flatten + Linear (unfused fallback head)."""
    N, H, W, C = x_nhwc.shape
    x = x_nhwc.reshape(N, H * W, C)
    num_classes = w_fc.shape[0]
    assert num_classes <= 128
    Fp = 128                                                  # lane-dense output
    w = jnp.pad(jnp.transpose(w_fc), ((0, 0), (0, Fp - num_classes)))   # (C, Fp)
    b2d = jnp.pad(b_fc, (0, Fp - num_classes)).reshape(1, Fp).astype(jnp.float32)

    out = pl.pallas_call(
        functools.partial(_avgpool_linear_kernel, inv_hw=1.0 / (H * W)),
        out_shape=jax.ShapeDtypeStruct((N, Fp), jnp.float32),
        grid_spec=pltpu.PrefetchScalarGridSpec(
            num_scalar_prefetch=0,
            grid=(1,),
            in_specs=[
                pl.BlockSpec((N, H * W, C), lambda i: (0, 0, 0)),
                pl.BlockSpec((C, Fp), lambda i: (0, 0)),
                pl.BlockSpec((1, Fp), lambda i: (0, 0)),
            ],
            out_specs=pl.BlockSpec((N, Fp), lambda i: (0, 0)),
        ),
        compiler_params=pltpu.CompilerParams(
            dimension_semantics=("arbitrary",)),
    )(x, w.astype(jnp.float32), b2d)
    return out[:, :num_classes]


# Cap so the fused head's corner matrices stay comfortably inside VMEM
# (4 * M * K * 2B; at M=2048, K=576 this is ~9.4 MiB).
_FUSED_HEAD_MAX_M = 2048


def conv_relu_pool_avgpool_linear(x_nhwc, w_oihw, bias, w_fc, b_fc, *,
                                  stride, padding):
    """Final Conv+ReLU+MaxPool + GlobalAvgPool + Linear, fused in ONE kernel."""
    N, H, W, _ = x_nhwc.shape
    Cout, _, KH, KW = w_oihw.shape
    Ho = (H + 2 * padding - KH) // stride + 1
    Wo = (W + 2 * padding - KW) // stride + 1
    Hp, Wp = Ho // 2, Wo // 2
    M = N * Hp * Wp
    num_classes = w_fc.shape[0]
    assert num_classes <= 128

    if M > _FUSED_HEAD_MAX_M:
        # Large batch / spatial: fall back to the two-kernel path.
        x = conv2d_relu_maxpool(x_nhwc, w_oihw, bias, stride=stride, padding=padding)
        return avgpool_linear(x, w_fc, b_fc)

    corners, (N, Hp, Wp, M, K) = _im2col_corners(x_nhwc, KH, KW, stride, padding)
    wb, bp, Cp = _pack_conv_weights(w_oihw, bias)

    Fp = 128
    # FC weight as (Cp, Fp); rows for padded conv channels and columns for
    # padded classes are zero, so the padded channels contribute nothing.
    wfc_p = jnp.zeros((Cp, Fp), jnp.float32).at[:Cout, :num_classes].set(
        jnp.transpose(w_fc).astype(jnp.float32))
    bfc_p = jnp.pad(b_fc, (0, Fp - num_classes)).reshape(1, Fp).astype(jnp.float32)

    hw = Hp * Wp
    # (N, M) pooling matrix: mean over each sample's Hp*Wp pooled positions.
    pmat = jnp.repeat(jnp.eye(N, dtype=jnp.float32), hw, axis=1) * (1.0 / hw)

    out = pl.pallas_call(
        _conv_relu_pool_head_kernel,
        out_shape=jax.ShapeDtypeStruct((N, Fp), jnp.float32),
        grid_spec=pltpu.PrefetchScalarGridSpec(
            num_scalar_prefetch=0,
            grid=(1,),
            in_specs=[pl.BlockSpec((M, K), lambda i: (0, 0))] * 4 + [
                pl.BlockSpec((K, Cp), lambda i: (0, 0)),
                pl.BlockSpec((1, Cp), lambda i: (0, 0)),
                pl.BlockSpec((N, M), lambda i: (0, 0)),
                pl.BlockSpec((Cp, Fp), lambda i: (0, 0)),
                pl.BlockSpec((1, Fp), lambda i: (0, 0)),
            ],
            out_specs=pl.BlockSpec((N, Fp), lambda i: (0, 0)),
        ),
        compiler_params=pltpu.CompilerParams(
            dimension_semantics=("arbitrary",)),
    )(*corners, wb, bp, pmat, wfc_p, bfc_p)
    return out[:, :num_classes]


# ----------------------------------------------------------------------------
# Model
# ----------------------------------------------------------------------------
def init_params(key, num_classes):
    """Deterministic He-scaled init matching SimpleCNN's parameter shapes."""
    ks = jax.random.split(key, 5)

    def conv_w(k, cout, cin):
        fan_in = cin * 9
        return jax.random.normal(k, (cout, cin, 3, 3), jnp.float32) * (2.0 / fan_in) ** 0.5

    return {
        "w1": conv_w(ks[0], 16, 3),   "b1": jnp.zeros((16,), jnp.float32),
        "w2": conv_w(ks[1], 32, 16),  "b2": jnp.zeros((32,), jnp.float32),
        "w3": conv_w(ks[2], 64, 32),  "b3": jnp.zeros((64,), jnp.float32),
        "w4": conv_w(ks[3], 128, 64), "b4": jnp.zeros((128,), jnp.float32),
        "wfc": jax.random.normal(ks[4], (num_classes, 128), jnp.float32) * (1.0 / 128.0) ** 0.5,
        "bfc": jnp.zeros((num_classes,), jnp.float32),
    }


@jax.jit
def simple_cnn_forward(params, x_nchw):
    # NCHW (PyTorch) -> NHWC (kernel layout); bf16 activations, f32 accumulation.
    x = jnp.transpose(x_nchw, (0, 2, 3, 1)).astype(jnp.bfloat16)
    x = conv2d_relu_maxpool(x, params["w1"], params["b1"], stride=2, padding=1)
    x = conv2d_relu_maxpool(x, params["w2"], params["b2"], stride=1, padding=1)
    x = conv2d_relu_maxpool(x, params["w3"], params["b3"], stride=1, padding=1)
    # TODO(synk): Dropout(0.2) is identity in eval/inference mode, so it is omitted.
    # Final conv stage + global-avg-pool + classifier fused into one kernel.
    return conv_relu_pool_avgpool_linear(
        x, params["w4"], params["b4"], params["wfc"], params["bfc"],
        stride=1, padding=1)                                  # (N, num_classes) f32


if __name__ == "__main__":
    num_classes = 10
    key = jax.random.PRNGKey(0)
    pkey, xkey = jax.random.split(key)
    params = init_params(pkey, num_classes)

    # NCHW input; 64x64 spatial survives the stride-2 conv + 4 maxpools.
    x = jax.random.normal(xkey, (2, 3, 64, 64), jnp.float32)

    out = simple_cnn_forward(params, x)
    out = jax.block_until_ready(out)
    assert out.shape == (2, num_classes)
    assert jnp.all(jnp.isfinite(out))
    print("KERNEL_OK")
</pallas_src>

<mosaic_0001>
module attributes {stable_mosaic.version = 11 : i64} {
  func.func @_conv_relu_pool_kernel(%arg0: i32, %arg1: memref<256x27xbf16, #tpu.memory_space<vmem>>, %arg2: memref<256x27xbf16, #tpu.memory_space<vmem>>, %arg3: memref<256x27xbf16, #tpu.memory_space<vmem>>, %arg4: memref<256x27xbf16, #tpu.memory_space<vmem>>, %arg5: memref<27x128xbf16, #tpu.memory_space<vmem>>, %arg6: memref<1x128xf32, #tpu.memory_space<vmem>>, %arg7: memref<256x128xbf16, #tpu.memory_space<vmem>>) attributes {dimension_semantics = [#tpu.dimension_semantics<parallel>], iteration_bounds = array<i64: 2>, scalar_prefetch = 0 : i64, scratch_operands = 0 : i64, tpu.core_type = #tpu.core_type<tc>, window_params = [{transform_indices = @transform_0, window_bounds = array<i64: 256, 27>}, {transform_indices = @transform_1, window_bounds = array<i64: 256, 27>}, {transform_indices = @transform_2, window_bounds = array<i64: 256, 27>}, {transform_indices = @transform_3, window_bounds = array<i64: 256, 27>}, {pipeline_mode = #tpu.pipeline_mode<synchronous>, transform_indices = @transform_4, window_bounds = array<i64: 27, 128>}, {pipeline_mode = #tpu.pipeline_mode<synchronous>, transform_indices = @transform_5, window_bounds = array<i64: 1, 128>}, {transform_indices = @transform_6, window_bounds = array<i64: 256, 128>}]} {
    %c0 = arith.constant 0 : index
    %c0_0 = arith.constant 0 : index
    %0 = vector.load %arg5[%c0, %c0_0] : memref<27x128xbf16, #tpu.memory_space<vmem>>, vector<27x128xbf16>
    %c0_1 = arith.constant 0 : index
    %c0_2 = arith.constant 0 : index
    %1 = vector.load %arg1[%c0_1, %c0_2] : memref<256x27xbf16, #tpu.memory_space<vmem>>, vector<256x27xbf16>
    %cst = arith.constant dense<0.000000e+00> : vector<256x128xf32>
    %2 = tpu.matmul %1, %0, %cst {dimension_numbers = #tpu.dot_dimension_numbers<[1], [0], [0], [1], [0, 0, 1, 1], [], []>} : vector<256x27xbf16>, vector<27x128xbf16>, vector<256x128xf32> -> vector<256x128xf32>
    %c0_3 = arith.constant 0 : index
    %c0_4 = arith.constant 0 : index
    %3 = vector.load %arg2[%c0_3, %c0_4] : memref<256x27xbf16, #tpu.memory_space<vmem>>, vector<256x27xbf16>
    %cst_5 = arith.constant dense<0.000000e+00> : vector<256x128xf32>
    %4 = tpu.matmul %3, %0, %cst_5 {dimension_numbers = #tpu.dot_dimension_numbers<[1], [0], [0], [1], [0, 0, 1, 1], [], []>} : vector<256x27xbf16>, vector<27x128xbf16>, vector<256x128xf32> -> vector<256x128xf32>
    %c0_6 = arith.constant 0 : index
    %c0_7 = arith.constant 0 : index
    %5 = vector.load %arg3[%c0_6, %c0_7] : memref<256x27xbf16, #tpu.memory_space<vmem>>, vector<256x27xbf16>
    %cst_8 = arith.constant dense<0.000000e+00> : vector<256x128xf32>
    %6 = tpu.matmul %5, %0, %cst_8 {dimension_numbers = #tpu.dot_dimension_numbers<[1], [0], [0], [1], [0, 0, 1, 1], [], []>} : vector<256x27xbf16>, vector<27x128xbf16>, vector<256x128xf32> -> vector<256x128xf32>
    %c0_9 = arith.constant 0 : index
    %c0_10 = arith.constant 0 : index
    %7 = vector.load %arg4[%c0_9, %c0_10] : memref<256x27xbf16, #tpu.memory_space<vmem>>, vector<256x27xbf16>
    %cst_11 = arith.constant dense<0.000000e+00> : vector<256x128xf32>
    %8 = tpu.matmul %7, %0, %cst_11 {dimension_numbers = #tpu.dot_dimension_numbers<[1], [0], [0], [1], [0, 0, 1, 1], [], []>} : vector<256x27xbf16>, vector<27x128xbf16>, vector<256x128xf32> -> vector<256x128xf32>
    %9 = arith.maximumf %2, %4 : vector<256x128xf32>
    %10 = arith.maximumf %6, %8 : vector<256x128xf32>
    %11 = arith.maximumf %9, %10 : vector<256x128xf32>
    %c0_12 = arith.constant 0 : index
    %c0_13 = arith.constant 0 : index
    %12 = vector.load %arg6[%c0_12, %c0_13] : memref<1x128xf32, #tpu.memory_space<vmem>>, vector<1x128xf32>
    %13 = vector.broadcast %12 : vector<1x128xf32> to vector<256x128xf32>
    %14 = arith.addf %11, %13 : vector<256x128xf32>
    %cst_14 = arith.constant 0.000000e+00 : f32
    %15 = vector.broadcast %cst_14 : f32 to vector<256x128xf32>
    %16 = arith.maximumf %14, %15 : vector<256x128xf32>
    %17 = arith.truncf %16 : vector<256x128xf32> to vector<256x128xbf16>
    %c0_15 = arith.constant 0 : index
    %c0_16 = arith.constant 0 : index
    %18 = vector.load %arg7[%c0_15, %c0_16] : memref<256x128xbf16, #tpu.memory_space<vmem>>, vector<256x128xbf16>
    tpu.vector_store %arg7[%c0_15, %c0_16], %17 {strides = array<i32>} : memref<256x128xbf16, #tpu.memory_space<vmem>>, vector<256x128xbf16>,
    return
  }
  func.func @transform_0(%arg0: i32) -> (i32, i32) {
    %c0_i32 = arith.constant 0 : i32
    %c0_i32_0 = arith.constant 0 : i32
    return %arg0, %c0_i32 : i32, i32
  }
  func.func @transform_1(%arg0: i32) -> (i32, i32) {
    %c0_i32 = arith.constant 0 : i32
    %c0_i32_0 = arith.constant 0 : i32
    return %arg0, %c0_i32 : i32, i32
  }
  func.func @transform_2(%arg0: i32) -> (i32, i32) {
    %c0_i32 = arith.constant 0 : i32
    %c0_i32_0 = arith.constant 0 : i32
    return %arg0, %c0_i32 : i32, i32
  }
  func.func @transform_3(%arg0: i32) -> (i32, i32) {
    %c0_i32 = arith.constant 0 : i32
    %c0_i32_0 = arith.constant 0 : i32
    return %arg0, %c0_i32 : i32, i32
  }
  func.func @transform_4(%arg0: i32) -> (i32, i32) {
    %c0_i32 = arith.constant 0 : i32
    %c0_i32_0 = arith.constant 0 : i32
    %c0_i32_1 = arith.constant 0 : i32
    return %c0_i32, %c0_i32_0 : i32, i32
  }
  func.func @transform_5(%arg0: i32) -> (i32, i32) {
    %c0_i32 = arith.constant 0 : i32
    %c0_i32_0 = arith.constant 0 : i32
    %c0_i32_1 = arith.constant 0 : i32
    return %c0_i32, %c0_i32_0 : i32, i32
  }
  func.func @transform_6(%arg0: i32) -> (i32, i32) {
    %c0_i32 = arith.constant 0 : i32
    %c0_i32_0 = arith.constant 0 : i32
    return %arg0, %c0_i32 : i32, i32
  }
}

module attributes {stable_mosaic.version = 11 : i64} {
  func.func @_conv_relu_pool_kernel(%arg0: i32, %arg1: memref<64x144xbf16, #tpu.memory_space<vmem>>, %arg2: memref<64x144xbf16, #tpu.memory_space<vmem>>, %arg3: memref<64x144xbf16, #tpu.memory_space<vmem>>, %arg4: memref<64x144xbf16, #tpu.memory_space<vmem>>, %arg5: memref<144x128xbf16, #tpu.memory_space<vmem>>, %arg6: memref<1x128xf32, #tpu.memory_space<vmem>>, %arg7: memref<64x128xbf16, #tpu.memory_space<vmem>>) attributes {dimension_semantics = [#tpu.dimension_semantics<parallel>], iteration_bounds = array<i64: 2>, scalar_prefetch = 0 : i64, scratch_operands = 0 : i64, tpu.core_type = #tpu.core_type<tc>, window_params = [{transform_indices = @transform_0, window_bounds = array<i64: 64, 144>}, {transform_indices = @transform_1, window_bounds = array<i64: 64, 144>}, {transform_indices = @transform_2, window_bounds = array<i64: 64, 144>}, {transform_indices = @transform_3, window_bounds = array<i64: 64, 144>}, {pipeline_mode = #tpu.pipeline_mode<synchronous>, transform_indices = @transform_4, window_bounds = array<i64: 144, 128>}, {pipeline_mode = #tpu.pipeline_mode<synchronous>, transform_indices = @transform_5, window_bounds = array<i64: 1, 128>}, {transform_indices = @transform_6, window_bounds = array<i64: 64, 128>}]} {
    %c0 = arith.constant 0 : index
    %c0_0 = arith.constant 0 : index
    %0 = vector.load %arg5[%c0, %c0_0] : memref<144x128xbf16, #tpu.memory_space<vmem>>, vector<144x128xbf16>
    %c0_1 = arith.constant 0 : index
    %c0_2 = arith.constant 0 : index
    %1 = vector.load %arg1[%c0_1, %c0_2] : memref<64x144xbf16, #tpu.memory_space<vmem>>, vector<64x144xbf16>
    %cst = arith.constant dense<0.000000e+00> : vector<64x128xf32>
    %2 = tpu.matmul %1, %0, %cst {dimension_numbers = #tpu.dot_dimension_numbers<[1], [0], [0], [1], [0, 0, 1, 1], [], []>} : vector<64x144xbf16>, vector<144x128xbf16>, vector<64x128xf32> -> vector<64x128xf32>
    %c0_3 = arith.constant 0 : index
    %c0_4 = arith.constant 0 : index
    %3 = vector.load %arg2[%c0_3, %c0_4] : memref<64x144xbf16, #tpu.memory_space<vmem>>, vector<64x144xbf16>
    %cst_5 = arith.constant dense<0.000000e+00> : vector<64x128xf32>
    %4 = tpu.matmul %3, %0, %cst_5 {dimension_numbers = #tpu.dot_dimension_numbers<[1], [0], [0], [1], [0, 0, 1, 1], [], []>} : vector<64x144xbf16>, vector<144x128xbf16>, vector<64x128xf32> -> vector<64x128xf32>
    %c0_6 = arith.constant 0 : index
    %c0_7 = arith.constant 0 : index
    %5 = vector.load %arg3[%c0_6, %c0_7] : memref<64x144xbf16, #tpu.memory_space<vmem>>, vector<64x144xbf16>
    %cst_8 = arith.constant dense<0.000000e+00> : vector<64x128xf32>
    %6 = tpu.matmul %5, %0, %cst_8 {dimension_numbers = #tpu.dot_dimension_numbers<[1], [0], [0], [1], [0, 0, 1, 1], [], []>} : vector<64x144xbf16>, vector<144x128xbf16>, vector<64x128xf32> -> vector<64x128xf32>
    %c0_9 = arith.constant 0 : index
    %c0_10 = arith.constant 0 : index
    %7 = vector.load %arg4[%c0_9, %c0_10] : memref<64x144xbf16, #tpu.memory_space<vmem>>, vector<64x144xbf16>
    %cst_11 = arith.constant dense<0.000000e+00> : vector<64x128xf32>
    %8 = tpu.matmul %7, %0, %cst_11 {dimension_numbers = #tpu.dot_dimension_numbers<[1], [0], [0], [1], [0, 0, 1, 1], [], []>} : vector<64x144xbf16>, vector<144x128xbf16>, vector<64x128xf32> -> vector<64x128xf32>
    %9 = arith.maximumf %2, %4 : vector<64x128xf32>
    %10 = arith.maximumf %6, %8 : vector<64x128xf32>
    %11 = arith.maximumf %9, %10 : vector<64x128xf32>
    %c0_12 = arith.constant 0 : index
    %c0_13 = arith.constant 0 : index
    %12 = vector.load %arg6[%c0_12, %c0_13] : memref<1x128xf32, #tpu.memory_space<vmem>>, vector<1x128xf32>
    %13 = vector.broadcast %12 : vector<1x128xf32> to vector<64x128xf32>
    %14 = arith.addf %11, %13 : vector<64x128xf32>
    %cst_14 = arith.constant 0.000000e+00 : f32
    %15 = vector.broadcast %cst_14 : f32 to vector<64x128xf32>
    %16 = arith.maximumf %14, %15 : vector<64x128xf32>
    %17 = arith.truncf %16 : vector<64x128xf32> to vector<64x128xbf16>
    %c0_15 = arith.constant 0 : index
    %c0_16 = arith.constant 0 : index
    %18 = vector.load %arg7[%c0_15, %c0_16] : memref<64x128xbf16, #tpu.memory_space<vmem>>, vector<64x128xbf16>
    tpu.vector_store %arg7[%c0_15, %c0_16], %17 {strides = array<i32>} : memref<64x128xbf16, #tpu.memory_space<vmem>>, vector<64x128xbf16>,
    return
  }
  func.func @transform_0(%arg0: i32) -> (i32, i32) {
    %c0_i32 = arith.constant 0 : i32
    %c0_i32_0 = arith.constant 0 : i32
    return %arg0, %c0_i32 : i32, i32
  }
  func.func @transform_1(%arg0: i32) -> (i32, i32) {
    %c0_i32 = arith.constant 0 : i32
    %c0_i32_0 = arith.constant 0 : i32
    return %arg0, %c0_i32 : i32, i32
  }
  func.func @transform_2(%arg0: i32) -> (i32, i32) {
    %c0_i32 = arith.constant 0 : i32
    %c0_i32_0 = arith.constant 0 : i32
    return %arg0, %c0_i32 : i32, i32
  }
  func.func @transform_3(%arg0: i32) -> (i32, i32) {
    %c0_i32 = arith.constant 0 : i32
    %c0_i32_0 = arith.constant 0 : i32
    return %arg0, %c0_i32 : i32, i32
  }
  func.func @transform_4(%arg0: i32) -> (i32, i32) {
    %c0_i32 = arith.constant 0 : i32
    %c0_i32_0 = arith.constant 0 : i32
    %c0_i32_1 = arith.constant 0 : i32
    return %c0_i32, %c0_i32_0 : i32, i32
  }
  func.func @transform_5(%arg0: i32) -> (i32, i32) {
    %c0_i32 = arith.constant 0 : i32
    %c0_i32_0 = arith.constant 0 : i32
    %c0_i32_1 = arith.constant 0 : i32
    return %c0_i32, %c0_i32_0 : i32, i32
  }
  func.func @transform_6(%arg0: i32) -> (i32, i32) {
    %c0_i32 = arith.constant 0 : i32
    %c0_i32_0 = arith.constant 0 : i32
    return %arg0, %c0_i32 : i32, i32
  }
}

module attributes {stable_mosaic.version = 11 : i64} {
  func.func @_conv_relu_pool_kernel(%arg0: i32, %arg1: memref<16x288xbf16, #tpu.memory_space<vmem>>, %arg2: memref<16x288xbf16, #tpu.memory_space<vmem>>, %arg3: memref<16x288xbf16, #tpu.memory_space<vmem>>, %arg4: memref<16x288xbf16, #tpu.memory_space<vmem>>, %arg5: memref<288x128xbf16, #tpu.memory_space<vmem>>, %arg6: memref<1x128xf32, #tpu.memory_space<vmem>>, %arg7: memref<16x128xbf16, #tpu.memory_space<vmem>>) attributes {dimension_semantics = [#tpu.dimension_semantics<parallel>], iteration_bounds = array<i64: 2>, scalar_prefetch = 0 : i64, scratch_operands = 0 : i64, tpu.core_type = #tpu.core_type<tc>, window_params = [{transform_indices = @transform_0, window_bounds = array<i64: 16, 288>}, {transform_indices = @transform_1, window_bounds = array<i64: 16, 288>}, {transform_indices = @transform_2, window_bounds = array<i64: 16, 288>}, {transform_indices = @transform_3, window_bounds = array<i64: 16, 288>}, {pipeline_mode = #tpu.pipeline_mode<synchronous>, transform_indices = @transform_4, window_bounds = array<i64: 288, 128>}, {pipeline_mode = #tpu.pipeline_mode<synchronous>, transform_indices = @transform_5, window_bounds = array<i64: 1, 128>}, {transform_indices = @transform_6, window_bounds = array<i64: 16, 128>}]} {
    %c0 = arith.constant 0 : index
    %c0_0 = arith.constant 0 : index
    %0 = vector.load %arg5[%c0, %c0_0] : memref<288x128xbf16, #tpu.memory_space<vmem>>, vector<288x128xbf16>
    %c0_1 = arith.constant 0 : index
    %c0_2 = arith.constant 0 : index
    %1 = vector.load %arg1[%c0_1, %c0_2] : memref<16x288xbf16, #tpu.memory_space<vmem>>, vector<16x288xbf16>
    %cst = arith.constant dense<0.000000e+00> : vector<16x128xf32>
    %2 = tpu.matmul %1, %0, %cst {dimension_numbers = #tpu.dot_dimension_numbers<[1], [0], [0], [1], [0, 0, 1, 1], [], []>} : vector<16x288xbf16>, vector<288x128xbf16>, vector<16x128xf32> -> vector<16x128xf32>
    %c0_3 = arith.constant 0 : index
    %c0_4 = arith.constant 0 : index
    %3 = vector.load %arg2[%c0_3, %c0_4] : memref<16x288xbf16, #tpu.memory_space<vmem>>, vector<16x288xbf16>
    %cst_5 = arith.constant dense<0.000000e+00> : vector<16x128xf32>
    %4 = tpu.matmul %3, %0, %cst_5 {dimension_numbers = #tpu.dot_dimension_numbers<[1], [0], [0], [1], [0, 0, 1, 1], [], []>} : vector<16x288xbf16>, vector<288x128xbf16>, vector<16x128xf32> -> vector<16x128xf32>
    %c0_6 = arith.constant 0 : index
    %c0_7 = arith.constant 0 : index
    %5 = vector.load %arg3[%c0_6, %c0_7] : memref<16x288xbf16, #tpu.memory_space<vmem>>, vector<16x288xbf16>
    %cst_8 = arith.constant dense<0.000000e+00> : vector<16x128xf32>
    %6 = tpu.matmul %5, %0, %cst_8 {dimension_numbers = #tpu.dot_dimension_numbers<[1], [0], [0], [1], [0, 0, 1, 1], [], []>} : vector<16x288xbf16>, vector<288x128xbf16>, vector<16x128xf32> -> vector<16x128xf32>
    %c0_9 = arith.constant 0 : index
    %c0_10 = arith.constant 0 : index
    %7 = vector.load %arg4[%c0_9, %c0_10] : memref<16x288xbf16, #tpu.memory_space<vmem>>, vector<16x288xbf16>
    %cst_11 = arith.constant dense<0.000000e+00> : vector<16x128xf32>
    %8 = tpu.matmul %7, %0, %cst_11 {dimension_numbers = #tpu.dot_dimension_numbers<[1], [0], [0], [1], [0, 0, 1, 1], [], []>} : vector<16x288xbf16>, vector<288x128xbf16>, vector<16x128xf32> -> vector<16x128xf32>
    %9 = arith.maximumf %2, %4 : vector<16x128xf32>
    %10 = arith.maximumf %6, %8 : vector<16x128xf32>
    %11 = arith.maximumf %9, %10 : vector<16x128xf32>
    %c0_12 = arith.constant 0 : index
    %c0_13 = arith.constant 0 : index
    %12 = vector.load %arg6[%c0_12, %c0_13] : memref<1x128xf32, #tpu.memory_space<vmem>>, vector<1x128xf32>
    %13 = vector.broadcast %12 : vector<1x128xf32> to vector<16x128xf32>
    %14 = arith.addf %11, %13 : vector<16x128xf32>
    %cst_14 = arith.constant 0.000000e+00 : f32
    %15 = vector.broadcast %cst_14 : f32 to vector<16x128xf32>
    %16 = arith.maximumf %14, %15 : vector<16x128xf32>
    %17 = arith.truncf %16 : vector<16x128xf32> to vector<16x128xbf16>
    %c0_15 = arith.constant 0 : index
    %c0_16 = arith.constant 0 : index
    %18 = vector.load %arg7[%c0_15, %c0_16] : memref<16x128xbf16, #tpu.memory_space<vmem>>, vector<16x128xbf16>
    tpu.vector_store %arg7[%c0_15, %c0_16], %17 {strides = array<i32>} : memref<16x128xbf16, #tpu.memory_space<vmem>>, vector<16x128xbf16>,
    return
  }
  func.func @transform_0(%arg0: i32) -> (i32, i32) {
    %c0_i32 = arith.constant 0 : i32
    %c0_i32_0 = arith.constant 0 : i32
    return %arg0, %c0_i32 : i32, i32
  }
  func.func @transform_1(%arg0: i32) -> (i32, i32) {
    %c0_i32 = arith.constant 0 : i32
    %c0_i32_0 = arith.constant 0 : i32
    return %arg0, %c0_i32 : i32, i32
  }
  func.func @transform_2(%arg0: i32) -> (i32, i32) {
    %c0_i32 = arith.constant 0 : i32
    %c0_i32_0 = arith.constant 0 : i32
    return %arg0, %c0_i32 : i32, i32
  }
  func.func @transform_3(%arg0: i32) -> (i32, i32) {
    %c0_i32 = arith.constant 0 : i32
    %c0_i32_0 = arith.constant 0 : i32
    return %arg0, %c0_i32 : i32, i32
  }
  func.func @transform_4(%arg0: i32) -> (i32, i32) {
    %c0_i32 = arith.constant 0 : i32
    %c0_i32_0 = arith.constant 0 : i32
    %c0_i32_1 = arith.constant 0 : i32
    return %c0_i32, %c0_i32_0 : i32, i32
  }
  func.func @transform_5(%arg0: i32) -> (i32, i32) {
    %c0_i32 = arith.constant 0 : i32
    %c0_i32_0 = arith.constant 0 : i32
    %c0_i32_1 = arith.constant 0 : i32
    return %c0_i32, %c0_i32_0 : i32, i32
  }
  func.func @transform_6(%arg0: i32) -> (i32, i32) {
    %c0_i32 = arith.constant 0 : i32
    %c0_i32_0 = arith.constant 0 : i32
    return %arg0, %c0_i32 : i32, i32
  }
}

module attributes {stable_mosaic.version = 11 : i64} {
  func.func @_conv_relu_pool_head_kernel(%arg0: i32, %arg1: memref<8x576xbf16, #tpu.memory_space<vmem>>, %arg2: memref<8x576xbf16, #tpu.memory_space<vmem>>, %arg3: memref<8x576xbf16, #tpu.memory_space<vmem>>, %arg4: memref<8x576xbf16, #tpu.memory_space<vmem>>, %arg5: memref<576x128xbf16, #tpu.memory_space<vmem>>, %arg6: memref<1x128xf32, #tpu.memory_space<vmem>>, %arg7: memref<2x8xf32, #tpu.memory_space<vmem>>, %arg8: memref<128x128xf32, #tpu.memory_space<vmem>>, %arg9: memref<1x128xf32, #tpu.memory_space<vmem>>, %arg10: memref<2x128xf32, #tpu.memory_space<vmem>>) attributes {dimension_semantics = [#tpu.dimension_semantics<arbitrary>], iteration_bounds = array<i64: 1>, scalar_prefetch = 0 : i64, scratch_operands = 0 : i64, tpu.core_type = #tpu.core_type<tc>, window_params = [{pipeline_mode = #tpu.pipeline_mode<synchronous>, transform_indices = @transform_0, window_bounds = array<i64: 8, 576>}, {pipeline_mode = #tpu.pipeline_mode<synchronous>, transform_indices = @transform_1, window_bounds = array<i64: 8, 576>}, {pipeline_mode = #tpu.pipeline_mode<synchronous>, transform_indices = @transform_2, window_bounds = array<i64: 8, 576>}, {pipeline_mode = #tpu.pipeline_mode<synchronous>, transform_indices = @transform_3, window_bounds = array<i64: 8, 576>}, {pipeline_mode = #tpu.pipeline_mode<synchronous>, transform_indices = @transform_4, window_bounds = array<i64: 576, 128>}, {pipeline_mode = #tpu.pipeline_mode<synchronous>, transform_indices = @transform_5, window_bounds = array<i64: 1, 128>}, {pipeline_mode = #tpu.pipeline_mode<synchronous>, transform_indices = @transform_6, window_bounds = array<i64: 2, 8>}, {pipeline_mode = #tpu.pipeline_mode<synchronous>, transform_indices = @transform_7, window_bounds = array<i64: 128, 128>}, {pipeline_mode = #tpu.pipeline_mode<synchronous>, transform_indices = @transform_8, window_bounds = array<i64: 1, 128>}, {pipeline_mode = #tpu.pipeline_mode<synchronous>, transform_indices = @transform_9, window_bounds = array<i64: 2, 128>}]} {
    %c0 = arith.constant 0 : index
    %c0_0 = arith.constant 0 : index
    %0 = vector.load %arg5[%c0, %c0_0] : memref<576x128xbf16, #tpu.memory_space<vmem>>, vector<576x128xbf16>
    %c0_1 = arith.constant 0 : index
    %c0_2 = arith.constant 0 : index
    %1 = vector.load %arg1[%c0_1, %c0_2] : memref<8x576xbf16, #tpu.memory_space<vmem>>, vector<8x576xbf16>
    %cst = arith.constant dense<0.000000e+00> : vector<8x128xf32>
    %2 = tpu.matmul %1, %0, %cst {dimension_numbers = #tpu.dot_dimension_numbers<[1], [0], [0], [1], [0, 0, 1, 1], [], []>} : vector<8x576xbf16>, vector<576x128xbf16>, vector<8x128xf32> -> vector<8x128xf32>
    %c0_3 = arith.constant 0 : index
    %c0_4 = arith.constant 0 : index
    %3 = vector.load %arg2[%c0_3, %c0_4] : memref<8x576xbf16, #tpu.memory_space<vmem>>, vector<8x576xbf16>
    %cst_5 = arith.constant dense<0.000000e+00> : vector<8x128xf32>
    %4 = tpu.matmul %3, %0, %cst_5 {dimension_numbers = #tpu.dot_dimension_numbers<[1], [0], [0], [1], [0, 0, 1, 1], [], []>} : vector<8x576xbf16>, vector<576x128xbf16>, vector<8x128xf32> -> vector<8x128xf32>
    %c0_6 = arith.constant 0 : index
    %c0_7 = arith.constant 0 : index
    %5 = vector.load %arg3[%c0_6, %c0_7] : memref<8x576xbf16, #tpu.memory_space<vmem>>, vector<8x576xbf16>
    %cst_8 = arith.constant dense<0.000000e+00> : vector<8x128xf32>
    %6 = tpu.matmul %5, %0, %cst_8 {dimension_numbers = #tpu.dot_dimension_numbers<[1], [0], [0], [1], [0, 0, 1, 1], [], []>} : vector<8x576xbf16>, vector<576x128xbf16>, vector<8x128xf32> -> vector<8x128xf32>
    %c0_9 = arith.constant 0 : index
    %c0_10 = arith.constant 0 : index
    %7 = vector.load %arg4[%c0_9, %c0_10] : memref<8x576xbf16, #tpu.memory_space<vmem>>, vector<8x576xbf16>
    %cst_11 = arith.constant dense<0.000000e+00> : vector<8x128xf32>
    %8 = tpu.matmul %7, %0, %cst_11 {dimension_numbers = #tpu.dot_dimension_numbers<[1], [0], [0], [1], [0, 0, 1, 1], [], []>} : vector<8x576xbf16>, vector<576x128xbf16>, vector<8x128xf32> -> vector<8x128xf32>
    %9 = arith.maximumf %2, %4 : vector<8x128xf32>
    %10 = arith.maximumf %6, %8 : vector<8x128xf32>
    %11 = arith.maximumf %9, %10 : vector<8x128xf32>
    %c0_12 = arith.constant 0 : index
    %c0_13 = arith.constant 0 : index
    %12 = vector.load %arg6[%c0_12, %c0_13] : memref<1x128xf32, #tpu.memory_space<vmem>>, vector<1x128xf32>
    %13 = vector.broadcast %12 : vector<1x128xf32> to vector<8x128xf32>
    %14 = arith.addf %11, %13 : vector<8x128xf32>
    %cst_14 = arith.constant 0.000000e+00 : f32
    %15 = vector.broadcast %cst_14 : f32 to vector<8x128xf32>
    %16 = arith.maximumf %14, %15 : vector<8x128xf32>
    %c0_15 = arith.constant 0 : index
    %c0_16 = arith.constant 0 : index
    %17 = vector.load %arg7[%c0_15, %c0_16] : memref<2x8xf32, #tpu.memory_space<vmem>>, vector<2x8xf32>
    %cst_17 = arith.constant dense<0.000000e+00> : vector<2x128xf32>
    %18 = tpu.matmul %17, %16, %cst_17 {dimension_numbers = #tpu.dot_dimension_numbers<[1], [0], [0], [1], [0, 0, 1, 1], [], []>} : vector<2x8xf32>, vector<8x128xf32>, vector<2x128xf32> -> vector<2x128xf32>
    %c0_18 = arith.constant 0 : index
    %c0_19 = arith.constant 0 : index
    %19 = vector.load %arg8[%c0_18, %c0_19] : memref<128x128xf32, #tpu.memory_space<vmem>>, vector<128x128xf32>
    %cst_20 = arith.constant dense<0.000000e+00> : vector<2x128xf32>
    %20 = tpu.matmul %18, %19, %cst_20 {dimension_numbers = #tpu.dot_dimension_numbers<[1], [0], [0], [1], [0, 0, 1, 1], [], []>} : vector<2x128xf32>, vector<128x128xf32>, vector<2x128xf32> -> vector<2x128xf32>
    %c0_21 = arith.constant 0 : index
    %c0_22 = arith.constant 0 : index
    %21 = vector.load %arg9[%c0_21, %c0_22] : memref<1x128xf32, #tpu.memory_space<vmem>>, vector<1x128xf32>
    %22 = vector.broadcast %21 : vector<1x128xf32> to vector<2x128xf32>
    %23 = arith.addf %20, %22 : vector<2x128xf32>
    %c0_23 = arith.constant 0 : index
    %c0_24 = arith.constant 0 : index
    %24 = vector.load %arg10[%c0_23, %c0_24] : memref<2x128xf32, #tpu.memory_space<vmem>>, vector<2x128xf32>
    tpu.vector_store %arg10[%c0_23, %c0_24], %23 {strides = array<i32>} : memref<2x128xf32, #tpu.memory_space<vmem>>, vector<2x128xf32>,
    return
  }
  func.func @transform_0(%arg0: i32) -> (i32, i32) {
    %c0_i32 = arith.constant 0 : i32
    %c0_i32_0 = arith.constant 0 : i32
    %c0_i32_1 = arith.constant 0 : i32
    return %c0_i32, %c0_i32_0 : i32, i32
  }
  func.func @transform_1(%arg0: i32) -> (i32, i32) {
    %c0_i32 = arith.constant 0 : i32
    %c0_i32_0 = arith.constant 0 : i32
    %c0_i32_1 = arith.constant 0 : i32
    return %c0_i32, %c0_i32_0 : i32, i32
  }
  func.func @transform_2(%arg0: i32) -> (i32, i32) {
    %c0_i32 = arith.constant 0 : i32
    %c0_i32_0 = arith.constant 0 : i32
    %c0_i32_1 = arith.constant 0 : i32
    return %c0_i32, %c0_i32_0 : i32, i32
  }
  func.func @transform_3(%arg0: i32) -> (i32, i32) {
    %c0_i32 = arith.constant 0 : i32
    %c0_i32_0 = arith.constant 0 : i32
    %c0_i32_1 = arith.constant 0 : i32
    return %c0_i32, %c0_i32_0 : i32, i32
  }
  func.func @transform_4(%arg0: i32) -> (i32, i32) {
    %c0_i32 = arith.constant 0 : i32
    %c0_i32_0 = arith.constant 0 : i32
    %c0_i32_1 = arith.constant 0 : i32
    return %c0_i32, %c0_i32_0 : i32, i32
  }
  func.func @transform_5(%arg0: i32) -> (i32, i32) {
    %c0_i32 = arith.constant 0 : i32
    %c0_i32_0 = arith.constant 0 : i32
    %c0_i32_1 = arith.constant 0 : i32
    return %c0_i32, %c0_i32_0 : i32, i32
  }
  func.func @transform_6(%arg0: i32) -> (i32, i32) {
    %c0_i32 = arith.constant 0 : i32
    %c0_i32_0 = arith.constant 0 : i32
    %c0_i32_1 = arith.constant 0 : i32
    return %c0_i32, %c0_i32_0 : i32, i32
  }
  func.func @transform_7(%arg0: i32) -> (i32, i32) {
    %c0_i32 = arith.constant 0 : i32
    %c0_i32_0 = arith.constant 0 : i32
    %c0_i32_1 = arith.constant 0 : i32
    return %c0_i32, %c0_i32_0 : i32, i32
  }
  func.func @transform_8(%arg0: i32) -> (i32, i32) {
    %c0_i32 = arith.constant 0 : i32
    %c0_i32_0 = arith.constant 0 : i32
    %c0_i32_1 = arith.constant 0 : i32
    return %c0_i32, %c0_i32_0 : i32, i32
  }
  func.func @transform_9(%arg0: i32) -> (i32, i32) {
    %c0_i32 = arith.constant 0 : i32
    %c0_i32_0 = arith.constant 0 : i32
    %c0_i32_1 = arith.constant 0 : i32
    return %c0_i32, %c0_i32_0 : i32, i32
  }
}

</mosaic_0001>

<llo_original>
// kernel: simple_cnn_forward.4
$region0: #{simple_cnn_forward.4}
  #allocation0 [shape = 'u32[]', space=smem, size = 0x4, offset = 0x4, fixed_abs, tag = 'smem constant byte address 0x4 - core index']
  #allocation1 [shape = 'u32[72,128]{1,0:T(1,128)}', space=vmem, size = 0x9000, scoped, tag = 'internal scratch']
  %s0 = inlined_call_operand.vmem [shape: bf16[512,27], index: 0, kind: input, shape index: {}]
  %s1 = inlined_call_operand.vmem [shape: bf16[512,27], index: 1, kind: input, shape index: {}]
  %s2 = inlined_call_operand.vmem [shape: bf16[512,27], index: 2, kind: input, shape index: {}]
  %s3 = inlined_call_operand.vmem [shape: bf16[512,27], index: 3, kind: input, shape index: {}]
  %s4 = inlined_call_operand.vmem [shape: bf16[27,128], index: 4, kind: input, shape index: {}]
  %s5 = inlined_call_operand.vmem [shape: f32[1,128], index: 5, kind: input, shape index: {}]
  %s6 = inlined_call_operand.vmem [shape: bf16[512,128], index: 6, kind: output, shape index: {}]
  %s7 = sld [smem:[#allocation0]]
  $region57: #{simple_cnn_forward.4} parent=0
    _
  %s9 = ssub.s32 1, %s7
  %s10 = scalar_select 0, %s9, %s7
  loop: start=0, step=1, limit=4
  $region2: #{simple_cnn_forward.4} parent=0 // loop_pre_header
    _
  $region3: #{simple_cnn_forward.4} parent=0 // loop_header
    %s12 = sphi 0, %s16
    %p13 = scmp.ge.s32.totalorder %s12, 4
    %s22 = sphi 0, %s24
    %s25 = sphi 0, %s22
    %s26 = sphi 0, %s25
    %s42 = sphi 0, %s26
    %s48 = sphi 0, %s50
    %s51 = sphi 0, %s48
    %s52 = sphi 0, %s51
    %s68 = sphi 0, %s52
    %s74 = sphi 0, %s76
    %s77 = sphi 0, %s74
    %s78 = sphi 0, %s77
    %s94 = sphi 0, %s78
    %s100 = sphi 0, %s102
    %s103 = sphi 0, %s100
    %s104 = sphi 0, %s103
    %s120 = sphi 0, %s104
    %s124 = sphi 0, %s124
    %s126 = sphi 0, %s124
    %s127 = sphi 0, %s126
    %s141 = sphi 0, %s127
    %s145 = sphi 0, %s145
    %s147 = sphi 0, %s145
    %s148 = sphi 0, %s147
    %s162 = sphi 0, %s148
    %s168 = sphi 0, %s170
    %s171 = sphi 0, %s168
    %s172 = sphi 0, %s171
    %s188 = sphi 0, %s172
  $region4: #{simple_cnn_forward.4} parent=0 // loop_header_branch
    %15 = sbr.rel (%p13) target = $region8
  $region5: #{simple_cnn_forward.4} parent=0 // loop_body
    %s17 = ssub.s32 %s12, 1
    %s18 = ssub.s32 %s12, 2
    %s19 = sadd.s32 %s12, 1
    %s20 = ssub.s32 %s12, %s19
    %p21 = scmp.eq.s32.totalorder %s20, 0
    %s23 = sadd.s32 %s22, 1
    %s24 = scalar_select %p21, %s22, %s23
    %p27 = pneg %p21
    %p28 = scmp.eq.s32.totalorder %s12, 1
    %p29 = por %p27, %p28
    %p30 = scmp.ne.s32.totalorder %s22, %s25
    %p31 = scmp.eq.s32.totalorder %s12, 0
    %p32 = por %p30, %p31
    %p33 = scmp.ne.s32.totalorder %s22, %s25
    %p34 = scmp.eq.s32.totalorder %s17, 1
    %p35 = por %p33, %p34
    %p36 = scmp.ne.s32.totalorder %s25, %s26
    %p37 = scmp.eq.s32.totalorder %s17, 0
    %p38 = por %p36, %p37
    %p39 = scmp.ne.s32.totalorder %s25, %s26
    %p40 = scmp.eq.s32.totalorder %s18, 1
    %p41 = por %p39, %p40
    %p43 = scmp.ne.s32.totalorder %s26, %s42
    %p44 = scmp.eq.s32.totalorder %s18, 0
    %p45 = por %p43, %p44
    %s46 = ssub.s32 %s12, %s19
    %p47 = scmp.eq.s32.totalorder %s46, 0
    %s49 = sadd.s32 %s48, 1
    %s50 = scalar_select %p47, %s48, %s49
    %p53 = pneg %p47
    %p54 = scmp.eq.s32.totalorder %s12, 1
    %p55 = por %p53, %p54
    %p56 = scmp.ne.s32.totalorder %s48, %s51
    %p57 = scmp.eq.s32.totalorder %s12, 0
    %p58 = por %p56, %p57
    %p59 = scmp.ne.s32.totalorder %s48, %s51
    %p60 = scmp.eq.s32.totalorder %s17, 1
    %p61 = por %p59, %p60
    %p62 = scmp.ne.s32.totalorder %s51, %s52
    %p63 = scmp.eq.s32.totalorder %s17, 0
    %p64 = por %p62, %p63
    %p65 = scmp.ne.s32.totalorder %s51, %s52
    %p66 = scmp.eq.s32.totalorder %s18, 1
    %p67 = por %p65, %p66
    %p69 = scmp.ne.s32.totalorder %s52, %s68
    %p70 = scmp.eq.s32.totalorder %s18, 0
    %p71 = por %p69, %p70
    %s72 = ssub.s32 %s12, %s19
    %p73 = scmp.eq.s32.totalorder %s72, 0
    %s75 = sadd.s32 %s74, 1
    %s76 = scalar_select %p73, %s74, %s75
    %p79 = pneg %p73
    %p80 = scmp.eq.s32.totalorder %s12, 1
    %p81 = por %p79, %p80
    %p82 = scmp.ne.s32.totalorder %s74, %s77
    %p83 = scmp.eq.s32.totalorder %s12, 0
    %p84 = por %p82, %p83
    %p85 = scmp.ne.s32.totalorder %s74, %s77
    %p86 = scmp.eq.s32.totalorder %s17, 1
    %p87 = por %p85, %p86
    %p88 = scmp.ne.s32.totalorder %s77, %s78
    %p89 = scmp.eq.s32.totalorder %s17, 0
    %p90 = por %p88, %p89
    %p91 = scmp.ne.s32.totalorder %s77, %s78
    %p92 = scmp.eq.s32.totalorder %s18, 1
    %p93 = por %p91, %p92
    %p95 = scmp.ne.s32.totalorder %s78, %s94
    %p96 = scmp.eq.s32.totalorder %s18, 0
    %p97 = por %p95, %p96
    %s98 = ssub.s32 %s12, %s19
    %p99 = scmp.eq.s32.totalorder %s98, 0
    %s101 = sadd.s32 %s100, 1
    %s102 = scalar_select %p99, %s100, %s101
    %p105 = pneg %p99
    %p106 = scmp.eq.s32.totalorder %s12, 1
    %p107 = por %p105, %p106
    %p108 = scmp.ne.s32.totalorder %s100, %s103
    %p109 = scmp.eq.s32.totalorder %s12, 0
    %p110 = por %p108, %p109
    %p111 = scmp.ne.s32.totalorder %s100, %s103
    %p112 = scmp.eq.s32.totalorder %s17, 1
    %p113 = por %p111, %p112
    %p114 = scmp.ne.s32.totalorder %s103, %s104
    %p115 = scmp.eq.s32.totalorder %s17, 0
    %p116 = por %p114, %p115
    %p117 = scmp.ne.s32.totalorder %s103, %s104
    %p118 = scmp.eq.s32.totalorder %s18, 1
    %p119 = por %p117, %p118
    %p121 = scmp.ne.s32.totalorder %s104, %s120
    %p122 = scmp.eq.s32.totalorder %s18, 0
    %p123 = por %p121, %p122
    %s125 = sadd.s32 %s124, 1
    %p128 = scmp.eq.s32.totalorder %s12, 1
    %p129 = scmp.ne.s32.totalorder %s124, %s126
    %p130 = scmp.eq.s32.totalorder %s12, 0
    %p131 = por %p129, %p130
    %p132 = scmp.ne.s32.totalorder %s124, %s126
    %p133 = scmp.eq.s32.totalorder %s17, 1
    %p134 = por %p132, %p133
    %p135 = scmp.ne.s32.totalorder %s126, %s127
    %p136 = scmp.eq.s32.totalorder %s17, 0
    %p137 = por %p135, %p136
    %p138 = scmp.ne.s32.totalorder %s126, %s127
    %p139 = scmp.eq.s32.totalorder %s18, 1
    %p140 = por %p138, %p139
    %p142 = scmp.ne.s32.totalorder %s127, %s141
    %p143 = scmp.eq.s32.totalorder %s18, 0
    %p144 = por %p142, %p143
    %s146 = sadd.s32 %s145, 1
    %p149 = scmp.eq.s32.totalorder %s12, 1
    %p150 = scmp.ne.s32.totalorder %s145, %s147
    %p151 = scmp.eq.s32.totalorder %s12, 0
    %p152 = por %p150, %p151
    %p153 = scmp.ne.s32.totalorder %s145, %s147
    %p154 = scmp.eq.s32.totalorder %s17, 1
    %p155 = por %p153, %p154
    %p156 = scmp.ne.s32.totalorder %s147, %s148
    %p157 = scmp.eq.s32.totalorder %s17, 0
    %p158 = por %p156, %p157
    %p159 = scmp.ne.s32.totalorder %s147, %s148
    %p160 = scmp.eq.s32.totalorder %s18, 1
    %p161 = por %p159, %p160
    %p163 = scmp.ne.s32.totalorder %s148, %s162
    %p164 = scmp.eq.s32.totalorder %s18, 0
    %p165 = por %p163, %p164
    %s166 = ssub.s32 %s12, %s19
    %p167 = scmp.eq.s32.totalorder %s166, 0
    %s169 = sadd.s32 %s168, 1
    %s170 = scalar_select %p167, %s168, %s169
    %p173 = pneg %p167
    %p174 = scmp.eq.s32.totalorder %s12, 1
    %p175 = por %p173, %p174
    %p176 = scmp.ne.s32.totalorder %s168, %s171
    %p177 = scmp.eq.s32.totalorder %s12, 0
    %p178 = por %p176, %p177
    %p179 = scmp.ne.s32.totalorder %s168, %s171
    %p180 = scmp.eq.s32.totalorder %s17, 1
    %p181 = por %p179, %p180
    %p182 = scmp.ne.s32.totalorder %s171, %s172
    %p183 = scmp.eq.s32.totalorder %s17, 0
    %p184 = por %p182, %p183
    %p185 = scmp.ne.s32.totalorder %s171, %s172
    %p186 = scmp.eq.s32.totalorder %s18, 1
    %p187 = por %p185, %p186
    %p189 = scmp.ne.s32.totalorder %s172, %s188
    %p190 = scmp.eq.s32.totalorder %s18, 0
    %p191 = por %p189, %p190
    %p192 = scmp.le.s32.totalorder 1, %s12
    %p193 = scmp.lt.s32.totalorder %s12, 3
    %p194 = pnand %p192, %p193
    %p195 = pneg %p194
    // Predicated region
    $region9: #{simple_cnn_forward.4} parent=5 // pred_check
      _
    $region10: #{simple_cnn_forward.4} parent=5 // pred_check_branch
      %197 = sbr.rel (%p194) target = $region12
    $region11: #{simple_cnn_forward.4} parent=5 // pred_region
      %s198 = ssub.s32 %s12, 1
      // Predicated region
      $region13: #{simple_cnn_forward.4} parent=11 // pred_check
        %p199 = pneg %p137
      $region14: #{simple_cnn_forward.4} parent=11 // pred_check_branch
        %201 = sbr.rel (%p199) target = $region16
      $region15: #{simple_cnn_forward.4} parent=11 // pred_region
        _
      $region16: #{simple_cnn_forward.4} parent=11 // pred_fallthru
        _
      // Predicated region
      $region17: #{simple_cnn_forward.4} parent=11 // pred_check
        %p202 = pneg %p158
      $region18: #{simple_cnn_forward.4} parent=11 // pred_check_branch
        %204 = sbr.rel (%p202) target = $region20
      $region19: #{simple_cnn_forward.4} parent=11 // pred_region
        _
      $region20: #{simple_cnn_forward.4} parent=11 // pred_fallthru
        _
    $region12: #{simple_cnn_forward.4} parent=5 // pred_fallthru
      _
    %p205 = scmp.lt.s32.totalorder %s12, 2
    // Predicated region
    $region21: #{simple_cnn_forward.4} parent=5 // pred_check
      %p206 = pneg %p205
    $region22: #{simple_cnn_forward.4} parent=5 // pred_check_branch
      %208 = sbr.rel (%p206) target = $region24
    $region23: #{simple_cnn_forward.4} parent=5 // pred_region
      // Predicated region
      $region25: #{simple_cnn_forward.4} parent=23 // pred_check
        %p209 = pneg %p32
      $region26: #{simple_cnn_forward.4} parent=23 // pred_check_branch
        %211 = sbr.rel (%p209) target = $region28
      $region27: #{simple_cnn_forward.4} parent=23 // pred_region
        %s212 = smul.u32 32, %s12
        %p213 = scmp.lt.s32.totalorder %s212, 63
        %s214 = scalar_select %p213, %s212, 63
        %s215 = smul.addr %s214, 4
        %s216 = scalar_lea.vmem %s0, %s215
        %s217 = smul.u32 32, %s12
      $region28: #{simple_cnn_forward.4} parent=23 // pred_fallthru
        _
      // Predicated region
      $region29: #{simple_cnn_forward.4} parent=23 // pred_check
        %p218 = pneg %p58
      $region30: #{simple_cnn_forward.4} parent=23 // pred_check_branch
        %220 = sbr.rel (%p218) target = $region32
      $region31: #{simple_cnn_forward.4} parent=23 // pred_region
        %s221 = smul.u32 32, %s12
        %p222 = scmp.lt.s32.totalorder %s221, 63
        %s223 = scalar_select %p222, %s221, 63
        %s224 = smul.addr %s223, 4
        %s225 = scalar_lea.vmem %s1, %s224
        %s226 = smul.u32 32, %s12
      $region32: #{simple_cnn_forward.4} parent=23 // pred_fallthru
        _
      // Predicated region
      $region33: #{simple_cnn_forward.4} parent=23 // pred_check
        %p227 = pneg %p84
      $region34: #{simple_cnn_forward.4} parent=23 // pred_check_branch
        %229 = sbr.rel (%p227) target = $region36
      $region35: #{simple_cnn_forward.4} parent=23 // pred_region
        %s230 = smul.u32 32, %s12
        %p231 = scmp.lt.s32.totalorder %s230, 63
        %s232 = scalar_select %p231, %s230, 63
        %s233 = smul.addr %s232, 4
        %s234 = scalar_lea.vmem %s2, %s233
        %s235 = smul.u32 32, %s12
      $region36: #{simple_cnn_forward.4} parent=23 // pred_fallthru
        _
      // Predicated region
      $region37: #{simple_cnn_forward.4} parent=23 // pred_check
        %p236 = pneg %p110
      $region38: #{simple_cnn_forward.4} parent=23 // pred_check_branch
        %238 = sbr.rel (%p236) target = $region40
      $region39: #{simple_cnn_forward.4} parent=23 // pred_region
        %s239 = smul.u32 32, %s12
        %p240 = scmp.lt.s32.totalorder %s239, 63
        %s241 = scalar_select %p240, %s239, 63
        %s242 = smul.addr %s241, 4
        %s243 = scalar_lea.vmem %s3, %s242
        %s244 = smul.u32 32, %s12
      $region40: #{simple_cnn_forward.4} parent=23 // pred_fallthru
        _
    $region24: #{simple_cnn_forward.4} parent=5 // pred_fallthru
      _
    %p245 = scmp.le.s32.totalorder 1, %s12
    %p246 = scmp.lt.s32.totalorder %s12, 3
    %p247 = pnand %p245, %p246
    %p248 = pneg %p247
    // Predicated region
    $region41: #{simple_cnn_forward.4} parent=5 // pred_check
      _
    $region42: #{simple_cnn_forward.4} parent=5 // pred_check_branch
      %250 = sbr.rel (%p247) target = $region44
    $region43: #{simple_cnn_forward.4} parent=5 // pred_region
      %s251 = ssub.s32 %s12, 1
      %s252 = smul.u32 32, %s17
      %p253 = scmp.lt.s32.totalorder %s252, 63
      %s254 = scalar_select %p253, %s252, 63
      %s255 = smul.addr %s254, 4
      %s256 = scalar_lea.vmem %s0, %s255
      %p257 = pneg %p38
      %p258 = pneg %p35
      %s259 = smul.u32 32, %s17
      %p260 = scmp.lt.s32.totalorder %s259, 63
      %s261 = scalar_select %p260, %s259, 63
      %s262 = smul.addr %s261, 4
      %s263 = scalar_lea.vmem %s1, %s262
      %p264 = pneg %p64
      %p265 = pneg %p61
      %s266 = smul.u32 32, %s17
      %p267 = scmp.lt.s32.totalorder %s266, 63
      %s268 = scalar_select %p267, %s266, 63
      %s269 = smul.addr %s268, 4
      %s270 = scalar_lea.vmem %s2, %s269
      %p271 = pneg %p90
      %p272 = pneg %p87
      %s273 = smul.u32 32, %s17
      %p274 = scmp.lt.s32.totalorder %s273, 63
      %s275 = scalar_select %p274, %s273, 63
      %s276 = smul.addr %s275, 4
      %s277 = scalar_lea.vmem %s3, %s276
      %p278 = pneg %p116
      %p279 = pneg %p113
      %p280 = pneg %p137
      %p281 = pneg %p134
      %p282 = pneg %p158
      %p283 = pneg %p155
      %p284 = pneg %p184
      %p285 = pneg %p181
      %s286 = smul.u32 32, %s17
      %p287 = scmp.lt.s32.totalorder %s286, 63
      %s288 = scalar_select %p287, %s286, 63
      %s289 = smul.addr %s288, 4
      %s290 = scalar_lea.vmem %s6, %s289
      %s291 = smul.u32 32, %s17
      %p292 = scmp.lt.s32.totalorder %s291, 63
      %s293 = scalar_select %p292, %s291, 63
      %s294 = smul.addr %s293, 4
      %s295 = scalar_lea.vmem %s0, %s294
      %s296 = smul.u32 32, %s17
      %s297 = smul.u32 32, %s17
      %p298 = scmp.lt.s32.totalorder %s297, 63
      %s299 = scalar_select %p298, %s297, 63
      %s300 = smul.addr %s299, 4
      %s301 = scalar_lea.vmem %s1, %s300
      %s302 = smul.u32 32, %s17
      %s303 = smul.u32 32, %s17
      %p304 = scmp.lt.s32.totalorder %s303, 63
      %s305 = scalar_select %p304, %s303, 63
      %s306 = smul.addr %s305, 4
      %s307 = scalar_lea.vmem %s2, %s306
      %s308 = smul.u32 32, %s17
      %s309 = smul.u32 32, %s17
      %p310 = scmp.lt.s32.totalorder %s309, 63
      %s311 = scalar_select %p310, %s309, 63
      %s312 = smul.addr %s311, 4
      %s313 = scalar_lea.vmem %s3, %s312
      %s314 = smul.u32 32, %s17
      %s315 = smul.u32 32, %s17
      %p316 = scmp.lt.s32.totalorder %s315, 63
      %s317 = scalar_select %p316, %s315, 63
      %s318 = smul.addr %s317, 4
      %s319 = scalar_lea.vmem %s6, %s318
      %s320 = smul.u32 32, %s17
      %v322 = vld [vmem:[%s4] sm:$0xf]
      %v323 = vld [vmem:[%s4 + $0x4] sm:$0xf]
      %v324 = vld [vmem:[%s4 + $0x8] sm:$0xf]
      %v325 = vld [vmem:[%s4 + $0xc] sm:$0x3]
      %v326 = vld [vmem:[%s295] sm:$0xf]
      %v327 = vld [vmem:[%s295 + $0x4] sm:$0xf]
      %v328 = vld [vmem:[%s295 + $0x8] sm:$0xf]
      %v329 = vld [vmem:[%s295 + $0xc] sm:$0xf]
      %v330 = vld [vmem:[%s295 + $0x10] sm:$0xf]
      %v331 = vld [vmem:[%s295 + $0x14] sm:$0xf]
      %v332 = vld [vmem:[%s295 + $0x18] sm:$0xf]
      %v333 = vld [vmem:[%s295 + $0x1c] sm:$0xf]
      %v334 = vld [vmem:[%s295 + $0x20] sm:$0xf]
      %v335 = vld [vmem:[%s295 + $0x24] sm:$0xf]
      %v336 = vld [vmem:[%s295 + $0x28] sm:$0xf]
      %v337 = vld [vmem:[%s295 + $0x2c] sm:$0xf]
      %v338 = vld [vmem:[%s295 + $0x30] sm:$0xf]
      %v339 = vld [vmem:[%s295 + $0x34] sm:$0xf]
      %v340 = vld [vmem:[%s295 + $0x38] sm:$0xf]
      %v341 = vld [vmem:[%s295 + $0x3c] sm:$0xf]
      %v342 = vld [vmem:[%s295 + $0x40] sm:$0xf]
      %v343 = vld [vmem:[%s295 + $0x44] sm:$0xf]
      %v344 = vld [vmem:[%s295 + $0x48] sm:$0xf]
      %v345 = vld [vmem:[%s295 + $0x4c] sm:$0xf]
      %v346 = vld [vmem:[%s295 + $0x50] sm:$0xf]
      %v347 = vld [vmem:[%s295 + $0x54] sm:$0xf]
      %v348 = vld [vmem:[%s295 + $0x58] sm:$0xf]
      %v349 = vld [vmem:[%s295 + $0x5c] sm:$0xf]
      %v350 = vld [vmem:[%s295 + $0x60] sm:$0xf]
      %v351 = vld [vmem:[%s295 + $0x64] sm:$0xf]
      %v352 = vld [vmem:[%s295 + $0x68] sm:$0xf]
      %v353 = vld [vmem:[%s295 + $0x6c] sm:$0xf]
      %v354 = vld [vmem:[%s295 + $0x70] sm:$0xf]
      %v355 = vld [vmem:[%s295 + $0x74] sm:$0xf]
      %v356 = vld [vmem:[%s295 + $0x78] sm:$0xf]
      %v357 = vld [vmem:[%s295 + $0x7c] sm:$0xf]
      %v390 = vunpack.c.l.b16 %v326
      %v391 = vunpack.c.l.b16 %v327
      %v392 = vunpack.c.l.b16 %v328
      %v393 = vunpack.c.l.b16 %v329
      %v394 = vunpack.c.l.b16 %v330
      %v395 = vunpack.c.l.b16 %v331
      %v396 = vunpack.c.l.b16 %v332
      %v397 = vunpack.c.l.b16 %v333
      %v398 = vunpack.c.l.b16 %v334
      %v399 = vunpack.c.l.b16 %v335
      %v400 = vunpack.c.l.b16 %v336
      %v401 = vunpack.c.l.b16 %v337
      %v402 = vunpack.c.l.b16 %v338
      %v403 = vunpack.c.l.b16 %v339
      %v404 = vunpack.c.l.b16 %v340
      %v405 = vunpack.c.l.b16 %v341
      %v406 = vunpack.c.l.b16 %v342
      %v407 = vunpack.c.l.b16 %v343
      %v408 = vunpack.c.l.b16 %v344
      %v409 = vunpack.c.l.b16 %v345
      %v410 = vunpack.c.l.b16 %v346
      %v411 = vunpack.c.l.b16 %v347
      %v412 = vunpack.c.l.b16 %v348
      %v413 = vunpack.c.l.b16 %v349
      %v414 = vunpack.c.l.b16 %v350
      %v415 = vunpack.c.l.b16 %v351
      %v416 = vunpack.c.l.b16 %v352
      %v417 = vunpack.c.l.b16 %v353
      %v418 = vunpack.c.l.b16 %v354
      %v419 = vunpack.c.l.b16 %v355
      %v420 = vunpack.c.l.b16 %v356
      %v421 = vunpack.c.l.b16 %v357
      %v422 = vpack.c.b16 %v391, %v390
      %v423 = vpack.c.b16 %v393, %v392
      %v424 = vpack.c.b16 %v395, %v394
      %v425 = vpack.c.b16 %v397, %v396
      %v426 = vpack.c.b16 %v399, %v398
      %v427 = vpack.c.b16 %v401, %v400
      %v428 = vpack.c.b16 %v403, %v402
      %v429 = vpack.c.b16 %v405, %v404
      %v430 = vpack.c.b16 %v407, %v406
      %v431 = vpack.c.b16 %v409, %v408
      %v432 = vpack.c.b16 %v411, %v410
      %v433 = vpack.c.b16 %v413, %v412
      %v434 = vpack.c.b16 %v415, %v414
      %v435 = vpack.c.b16 %v417, %v416
      %v436 = vpack.c.b16 %v419, %v418
      %v437 = vpack.c.b16 %v421, %v420
      %v442 = vunpack.c.l.b16 %v322
      %v443 = vunpack.c.l.b16 %v323
      %v444 = vunpack.c.l.b16 %v324
      %v445 = vunpack.c.l.b16 %v325
      %v446 = vpack.c.b16 %v443, %v442
      %v447 = vpack.c.b16 %v445, %v444
      %vm449 = vcmask 220160
      %v451 = vsel %vm449, %v422, 0
      %v454 = vsel %vm449, %v423, 0
      %v457 = vsel %vm449, %v424, 0
      %v460 = vsel %vm449, %v425, 0
      %v463 = vsel %vm449, %v426, 0
      %v466 = vsel %vm449, %v427, 0
      %v469 = vsel %vm449, %v428, 0
      %v472 = vsel %vm449, %v429, 0
      %v475 = vsel %vm449, %v430, 0
      %v478 = vsel %vm449, %v431, 0
      %v481 = vsel %vm449, %v432, 0
      %v484 = vsel %vm449, %v433, 0
      %v487 = vsel %vm449, %v434, 0
      %v490 = vsel %vm449, %v435, 0
      %v493 = vsel %vm449, %v436, 0
      %v496 = vsel %vm449, %v437, 0
      %vm498 = vcmask 1044480
      %vm499 = vcmask 1045504
      %v500 = vsel %vm498, 4294967295, 65535
      %v501 = vsel %vm499, %v500, 0
      %v503 = vand.u32 %v447, %v501
      %505 = vmatpush.bf16.msra.mxu0 0
      %506 = vmatpush.bf16.msra.mxu0 0
      %507 = vmatpush.bf16.msra.mxu0 0
      %508 = vmatpush.bf16.msra.mxu0 0
      %509 = vmatpush.bf16.msra.mxu0 0
      %510 = vmatpush.bf16.msra.mxu0 0
      %511 = vmatpush.bf16.msra.mxu0 %v503
      %512 = vmatpush.bf16.msra.mxu0 %v446
      %513 = vmatmul.bf16.gmra.mxu0 %v451
      %v514 = vpop.f32.mrf.mxu0
      %v515 = vadd.f32 0.0, %v514
      %v516 = vpop.f32.mrf.mxu0
      %v517 = vadd.f32 0.0, %v516
      %518 = vmatmul.bf16.gmra.mxu0 %v454
      %v519 = vpop.f32.mrf.mxu0
      %v520 = vadd.f32 0.0, %v519
      %v521 = vpop.f32.mrf.mxu0
      %v522 = vadd.f32 0.0, %v521
      %523 = vmatmul.bf16.gmra.mxu0 %v457
      %v524 = vpop.f32.mrf.mxu0
      %v525 = vadd.f32 0.0, %v524
      %v526 = vpop.f32.mrf.mxu0
      %v527 = vadd.f32 0.0, %v526
      %528 = vmatmul.bf16.gmra.mxu0 %v460
      %v529 = vpop.f32.mrf.mxu0
      %v530 = vadd.f32 0.0, %v529
      %v531 = vpop.f32.mrf.mxu0
      %v532 = vadd.f32 0.0, %v531
      %533 = vmatmul.bf16.gmra.mxu0 %v463
      %v534 = vpop.f32.mrf.mxu0
      %v535 = vadd.f32 0.0, %v534
      %v536 = vpop.f32.mrf.mxu0
      %v537 = vadd.f32 0.0, %v536
      %538 = vmatmul.bf16.gmra.mxu0 %v466
      %v539 = vpop.f32.mrf.mxu0
      %v540 = vadd.f32 0.0, %v539
      %v541 = vpop.f32.mrf.mxu0
      %v542 = vadd.f32 0.0, %v541
      %543 = vmatmul.bf16.gmra.mxu0 %v469
      %v544 = vpop.f32.mrf.mxu0
      %v545 = vadd.f32 0.0, %v544
      %v546 = vpop.f32.mrf.mxu0
      %v547 = vadd.f32 0.0, %v546
      %548 = vmatmul.bf16.gmra.mxu0 %v472
      %v549 = vpop.f32.mrf.mxu0
      %v550 = vadd.f32 0.0, %v549
      %v551 = vpop.f32.mrf.mxu0
      %v552 = vadd.f32 0.0, %v551
      %553 = vmatmul.bf16.gmra.mxu0 %v475
      %v554 = vpop.f32.mrf.mxu0
      %v555 = vadd.f32 0.0, %v554
      %v556 = vpop.f32.mrf.mxu0
      %v557 = vadd.f32 0.0, %v556
      %558 = vmatmul.bf16.gmra.mxu0 %v478
      %v559 = vpop.f32.mrf.mxu0
      %v560 = vadd.f32 0.0, %v559
      %v561 = vpop.f32.mrf.mxu0
      %v562 = vadd.f32 0.0, %v561
      %563 = vmatmul.bf16.gmra.mxu0 %v481
      %v564 = vpop.f32.mrf.mxu0
      %v565 = vadd.f32 0.0, %v564
      %v566 = vpop.f32.mrf.mxu0
      %v567 = vadd.f32 0.0, %v566
      %568 = vmatmul.bf16.gmra.mxu0 %v484
      %v569 = vpop.f32.mrf.mxu0
      %v570 = vadd.f32 0.0, %v569
      %v571 = vpop.f32.mrf.mxu0
      %v572 = vadd.f32 0.0, %v571
      %573 = vmatmul.bf16.gmra.mxu0 %v487
      %v574 = vpop.f32.mrf.mxu0
      %v575 = vadd.f32 0.0, %v574
      %v576 = vpop.f32.mrf.mxu0
      %v577 = vadd.f32 0.0, %v576
      %578 = vmatmul.bf16.gmra.mxu0 %v490
      %v579 = vpop.f32.mrf.mxu0
      %v580 = vadd.f32 0.0, %v579
      %v581 = vpop.f32.mrf.mxu0
      %v582 = vadd.f32 0.0, %v581
      %583 = vmatmul.bf16.gmra.mxu0 %v493
      %v584 = vpop.f32.mrf.mxu0
      %v585 = vadd.f32 0.0, %v584
      %v586 = vpop.f32.mrf.mxu0
      %v587 = vadd.f32 0.0, %v586
      %588 = vmatmul.bf16.gmra.mxu0 %v496
      %v589 = vpop.f32.mrf.mxu0
      %v590 = vadd.f32 0.0, %v589
      %v591 = vpop.f32.mrf.mxu0
      %v592 = vadd.f32 0.0, %v591
      %593 = vdwg.mxu0
      %v594 = vld [vmem:[%s301] sm:$0xf]
      %v595 = vld [vmem:[%s301 + $0x4] sm:$0xf]
      %v596 = vld [vmem:[%s301 + $0x8] sm:$0xf]
      %v597 = vld [vmem:[%s301 + $0xc] sm:$0xf]
      %v598 = vld [vmem:[%s301 + $0x10] sm:$0xf]
      %v599 = vld [vmem:[%s301 + $0x14] sm:$0xf]
      %v600 = vld [vmem:[%s301 + $0x18] sm:$0xf]
      %v601 = vld [vmem:[%s301 + $0x1c] sm:$0xf]
      %v602 = vld [vmem:[%s301 + $0x20] sm:$0xf]
      %v603 = vld [vmem:[%s301 + $0x24] sm:$0xf]
      %v604 = vld [vmem:[%s301 + $0x28] sm:$0xf]
      %v605 = vld [vmem:[%s301 + $0x2c] sm:$0xf]
      %v606 = vld [vmem:[%s301 + $0x30] sm:$0xf]
      %v607 = vld [vmem:[%s301 + $0x34] sm:$0xf]
      %v608 = vld [vmem:[%s301 + $0x38] sm:$0xf]
      %v609 = vld [vmem:[%s301 + $0x3c] sm:$0xf]
      %v610 = vld [vmem:[%s301 + $0x40] sm:$0xf]
      %v611 = vld [vmem:[%s301 + $0x44] sm:$0xf]
      %v612 = vld [vmem:[%s301 + $0x48] sm:$0xf]
      %v613 = vld [vmem:[%s301 + $0x4c] sm:$0xf]
      %v614 = vld [vmem:[%s301 + $0x50] sm:$0xf]
      %v615 = vld [vmem:[%s301 + $0x54] sm:$0xf]
      %v616 = vld [vmem:[%s301 + $0x58] sm:$0xf]
      %v617 = vld [vmem:[%s301 + $0x5c] sm:$0xf]
      %v618 = vld [vmem:[%s301 + $0x60] sm:$0xf]
      %v619 = vld [vmem:[%s301 + $0x64] sm:$0xf]
      %v620 = vld [vmem:[%s301 + $0x68] sm:$0xf]
      %v621 = vld [vmem:[%s301 + $0x6c] sm:$0xf]
      %v622 = vld [vmem:[%s301 + $0x70] sm:$0xf]
      %v623 = vld [vmem:[%s301 + $0x74] sm:$0xf]
      %v624 = vld [vmem:[%s301 + $0x78] sm:$0xf]
      %v625 = vld [vmem:[%s301 + $0x7c] sm:$0xf]
      %v658 = vunpack.c.l.b16 %v594
      %v659 = vunpack.c.l.b16 %v595
      %v660 = vunpack.c.l.b16 %v596
      %v661 = vunpack.c.l.b16 %v597
      %v662 = vunpack.c.l.b16 %v598
      %v663 = vunpack.c.l.b16 %v599
      %v664 = vunpack.c.l.b16 %v600
      %v665 = vunpack.c.l.b16 %v601
      %v666 = vunpack.c.l.b16 %v602
      %v667 = vunpack.c.l.b16 %v603
      %v668 = vunpack.c.l.b16 %v604
      %v669 = vunpack.c.l.b16 %v605
      %v670 = vunpack.c.l.b16 %v606
      %v671 = vunpack.c.l.b16 %v607
      %v672 = vunpack.c.l.b16 %v608
      %v673 = vunpack.c.l.b16 %v609
      %v674 = vunpack.c.l.b16 %v610
      %v675 = vunpack.c.l.b16 %v611
      %v676 = vunpack.c.l.b16 %v612
      %v677 = vunpack.c.l.b16 %v613
      %v678 = vunpack.c.l.b16 %v614
      %v679 = vunpack.c.l.b16 %v615
      %v680 = vunpack.c.l.b16 %v616
      %v681 = vunpack.c.l.b16 %v617
      %v682 = vunpack.c.l.b16 %v618
      %v683 = vunpack.c.l.b16 %v619
      %v684 = vunpack.c.l.b16 %v620
      %v685 = vunpack.c.l.b16 %v621
      %v686 = vunpack.c.l.b16 %v622
      %v687 = vunpack.c.l.b16 %v623
      %v688 = vunpack.c.l.b16 %v624
      %v689 = vunpack.c.l.b16 %v625
      %v690 = vpack.c.b16 %v659, %v658
      %v691 = vpack.c.b16 %v661, %v660
      %v692 = vpack.c.b16 %v663, %v662
      %v693 = vpack.c.b16 %v665, %v664
      %v694 = vpack.c.b16 %v667, %v666
      %v695 = vpack.c.b16 %v669, %v668
      %v696 = vpack.c.b16 %v671, %v670
      %v697 = vpack.c.b16 %v673, %v672
      %v698 = vpack.c.b16 %v675, %v674
      %v699 = vpack.c.b16 %v677, %v676
      %v700 = vpack.c.b16 %v679, %v678
      %v701 = vpack.c.b16 %v681, %v680
      %v702 = vpack.c.b16 %v683, %v682
      %v703 = vpack.c.b16 %v685, %v684
      %v704 = vpack.c.b16 %v687, %v686
      %v705 = vpack.c.b16 %v689, %v688
      %v707 = vsel %vm449, %v690, 0
      %v710 = vsel %vm449, %v691, 0
      %v713 = vsel %vm449, %v692, 0
      %v716 = vsel %vm449, %v693, 0
      %v719 = vsel %vm449, %v694, 0
      %v722 = vsel %vm449, %v695, 0
      %v725 = vsel %vm449, %v696, 0
      %v728 = vsel %vm449, %v697, 0
      %v731 = vsel %vm449, %v698, 0
      %v734 = vsel %vm449, %v699, 0
      %v737 = vsel %vm449, %v700, 0
      %v740 = vsel %vm449, %v701, 0
      %v743 = vsel %vm449, %v702, 0
      %v746 = vsel %vm449, %v703, 0
      %v749 = vsel %vm449, %v704, 0
      %v752 = vsel %vm449, %v705, 0
      %754 = vmatpush.bf16.msra.mxu0 0
      %755 = vmatpush.bf16.msra.mxu0 0
      %756 = vmatpush.bf16.msra.mxu0 0
      %757 = vmatpush.bf16.msra.mxu0 0
      %758 = vmatpush.bf16.msra.mxu0 0
      %759 = vmatpush.bf16.msra.mxu0 0
      %760 = vmatpush.bf16.msra.mxu0 %v503
      %761 = vmatpush.bf16.msra.mxu0 %v446
      %762 = vmatmul.bf16.gmra.mxu0 %v707
      %v763 = vpop.f32.mrf.mxu0
      %v764 = vadd.f32 0.0, %v763
      %v765 = vpop.f32.mrf.mxu0
      %v766 = vadd.f32 0.0, %v765
      %767 = vmatmul.bf16.gmra.mxu0 %v710
      %v768 = vpop.f32.mrf.mxu0
      %v769 = vadd.f32 0.0, %v768
      %v770 = vpop.f32.mrf.mxu0
      %v771 = vadd.f32 0.0, %v770
      %772 = vmatmul.bf16.gmra.mxu0 %v713
      %v773 = vpop.f32.mrf.mxu0
      %v774 = vadd.f32 0.0, %v773
      %v775 = vpop.f32.mrf.mxu0
      %v776 = vadd.f32 0.0, %v775
      %777 = vmatmul.bf16.gmra.mxu0 %v716
      %v778 = vpop.f32.mrf.mxu0
      %v779 = vadd.f32 0.0, %v778
      %v780 = vpop.f32.mrf.mxu0
      %v781 = vadd.f32 0.0, %v780
      %782 = vmatmul.bf16.gmra.mxu0 %v719
      %v783 = vpop.f32.mrf.mxu0
      %v784 = vadd.f32 0.0, %v783
      %v785 = vpop.f32.mrf.mxu0
      %v786 = vadd.f32 0.0, %v785
      %787 = vmatmul.bf16.gmra.mxu0 %v722
      %v788 = vpop.f32.mrf.mxu0
      %v789 = vadd.f32 0.0, %v788
      %v790 = vpop.f32.mrf.mxu0
      %v791 = vadd.f32 0.0, %v790
      %792 = vmatmul.bf16.gmra.mxu0 %v725
      %v793 = vpop.f32.mrf.mxu0
      %v794 = vadd.f32 0.0, %v793
      %v795 = vpop.f32.mrf.mxu0
      %v796 = vadd.f32 0.0, %v795
      %797 = vmatmul.bf16.gmra.mxu0 %v728
      %v798 = vpop.f32.mrf.mxu0
      %v799 = vadd.f32 0.0, %v798
      %v800 = vpop.f32.mrf.mxu0
      %v801 = vadd.f32 0.0, %v800
      %802 = vmatmul.bf16.gmra.mxu0 %v731
      %v803 = vpop.f32.mrf.mxu0
      %v804 = vadd.f32 0.0, %v803
      %v805 = vpop.f32.mrf.mxu0
      %v806 = vadd.f32 0.0, %v805
      %807 = vmatmul.bf16.gmra.mxu0 %v734
      %v808 = vpop.f32.mrf.mxu0
      %v809 = vadd.f32 0.0, %v808
      %v810 = vpop.f32.mrf.mxu0
      %v811 = vadd.f32 0.0, %v810
      %812 = vmatmul.bf16.gmra.mxu0 %v737
      %v813 = vpop.f32.mrf.mxu0
      %v814 = vadd.f32 0.0, %v813
      %v815 = vpop.f32.mrf.mxu0
      %v816 = vadd.f32 0.0, %v815
      %817 = vmatmul.bf16.gmra.mxu0 %v740
      %v818 = vpop.f32.mrf.mxu0
      %v819 = vadd.f32 0.0, %v818
      %v820 = vpop.f32.mrf.mxu0
      %v821 = vadd.f32 0.0, %v820
      %822 = vmatmul.bf16.gmra.mxu0 %v743
      %v823 = vpop.f32.mrf.mxu0
      %v824 = vadd.f32 0.0, %v823
      %v825 = vpop.f32.mrf.mxu0
      %v826 = vadd.f32 0.0, %v825
      %827 = vmatmul.bf16.gmra.mxu0 %v746
      %v828 = vpop.f32.mrf.mxu0
      %v829 = vadd.f32 0.0, %v828
      %v830 = vpop.f32.mrf.mxu0
      %v831 = vadd.f32 0.0, %v830
      %832 = vmatmul.bf16.gmra.mxu0 %v749
      %v833 = vpop.f32.mrf.mxu0
      %v834 = vadd.f32 0.0, %v833
      %v835 = vpop.f32.mrf.mxu0
      %v836 = vadd.f32 0.0, %v835
      %837 = vmatmul.bf16.gmra.mxu0 %v752
      %v838 = vpop.f32.mrf.mxu0
      %v839 = vadd.f32 0.0, %v838
      %v840 = vpop.f32.mrf.mxu0
      %v841 = vadd.f32 0.0, %v840
      %842 = vdwg.mxu0
      %v843 = vld [vmem:[%s307] sm:$0xf]
      %v844 = vld [vmem:[%s307 + $0x4] sm:$0xf]
      %v845 = vld [vmem:[%s307 + $0x8] sm:$0xf]
      %v846 = vld [vmem:[%s307 + $0xc] sm:$0xf]
      %v847 = vld [vmem:[%s307 + $0x10] sm:$0xf]
      %v848 = vld [vmem:[%s307 + $0x14] sm:$0xf]
      %v849 = vld [vmem:[%s307 + $0x18] sm:$0xf]
      %v850 = vld [vmem:[%s307 + $0x1c] sm:$0xf]
      %v851 = vld [vmem:[%s307 + $0x20] sm:$0xf]
      %v852 = vld [vmem:[%s307 + $0x24] sm:$0xf]
      %v853 = vld [vmem:[%s307 + $0x28] sm:$0xf]
      %v854 = vld [vmem:[%s307 + $0x2c] sm:$0xf]
      %v855 = vld [vmem:[%s307 + $0x30] sm:$0xf]
      %v856 = vld [vmem:[%s307 + $0x34] sm:$0xf]
      %v857 = vld [vmem:[%s307 + $0x38] sm:$0xf]
      %v858 = vld [vmem:[%s307 + $0x3c] sm:$0xf]
      %v859 = vld [vmem:[%s307 + $0x40] sm:$0xf]
      %v860 = vld [vmem:[%s307 + $0x44] sm:$0xf]
      %v861 = vld [vmem:[%s307 + $0x48] sm:$0xf]
      %v862 = vld [vmem:[%s307 + $0x4c] sm:$0xf]
      %v863 = vld [vmem:[%s307 + $0x50] sm:$0xf]
      %v864 = vld [vmem:[%s307 + $0x54] sm:$0xf]
      %v865 = vld [vmem:[%s307 + $0x58] sm:$0xf]
      %v866 = vld [vmem:[%s307 + $0x5c] sm:$0xf]
      %v867 = vld [vmem:[%s307 + $0x60] sm:$0xf]
      %v868 = vld [vmem:[%s307 + $0x64] sm:$0xf]
      %v869 = vld [vmem:[%s307 + $0x68] sm:$0xf]
      %v870 = vld [vmem:[%s307 + $0x6c] sm:$0xf]
      %v871 = vld [vmem:[%s307 + $0x70] sm:$0xf]
      %v872 = vld [vmem:[%s307 + $0x74] sm:$0xf]
      %v873 = vld [vmem:[%s307 + $0x78] sm:$0xf]
      %v874 = vld [vmem:[%s307 + $0x7c] sm:$0xf]
      %v907 = vunpack.c.l.b16 %v843
      %v908 = vunpack.c.l.b16 %v844
      %v909 = vunpack.c.l.b16 %v845
      %v910 = vunpack.c.l.b16 %v846
      %v911 = vunpack.c.l.b16 %v847
      %v912 = vunpack.c.l.b16 %v848
      %v913 = vunpack.c.l.b16 %v849
      %v914 = vunpack.c.l.b16 %v850
      %v915 = vunpack.c.l.b16 %v851
      %v916 = vunpack.c.l.b16 %v852
      %v917 = vunpack.c.l.b16 %v853
      %v918 = vunpack.c.l.b16 %v854
      %v919 = vunpack.c.l.b16 %v855
      %v920 = vunpack.c.l.b16 %v856
      %v921 = vunpack.c.l.b16 %v857
      %v922 = vunpack.c.l.b16 %v858
      %v923 = vunpack.c.l.b16 %v859
      %v924 = vunpack.c.l.b16 %v860
      %v925 = vunpack.c.l.b16 %v861
      %v926 = vunpack.c.l.b16 %v862
      %v927 = vunpack.c.l.b16 %v863
      %v928 = vunpack.c.l.b16 %v864
      %v929 = vunpack.c.l.b16 %v865
      %v930 = vunpack.c.l.b16 %v866
      %v931 = vunpack.c.l.b16 %v867
      %v932 = vunpack.c.l.b16 %v868
      %v933 = vunpack.c.l.b16 %v869
      %v934 = vunpack.c.l.b16 %v870
      %v935 = vunpack.c.l.b16 %v871
      %v936 = vunpack.c.l.b16 %v872
      %v937 = vunpack.c.l.b16 %v873
      %v938 = vunpack.c.l.b16 %v874
      %v939 = vpack.c.b16 %v908, %v907
      %v940 = vpack.c.b16 %v910, %v909
      %v941 = vpack.c.b16 %v912, %v911
      %v942 = vpack.c.b16 %v914, %v913
      %v943 = vpack.c.b16 %v916, %v915
      %v944 = vpack.c.b16 %v918, %v917
      %v945 = vpack.c.b16 %v920, %v919
      %v946 = vpack.c.b16 %v922, %v921
      %v947 = vpack.c.b16 %v924, %v923
      %v948 = vpack.c.b16 %v926, %v925
      %v949 = vpack.c.b16 %v928, %v927
      %v950 = vpack.c.b16 %v930, %v929
      %v951 = vpack.c.b16 %v932, %v931
      %v952 = vpack.c.b16 %v934, %v933
      %v953 = vpack.c.b16 %v936, %v935
      %v954 = vpack.c.b16 %v938, %v937
      %v956 = vsel %vm449, %v939, 0
      %v959 = vsel %vm449, %v940, 0
      %v962 = vsel %vm449, %v941, 0
      %v965 = vsel %vm449, %v942, 0
      %v968 = vsel %vm449, %v943, 0
      %v971 = vsel %vm449, %v944, 0
      %v974 = vsel %vm449, %v945, 0
      %v977 = vsel %vm449, %v946, 0
      %v980 = vsel %vm449, %v947, 0
      %v983 = vsel %vm449, %v948, 0
      %v986 = vsel %vm449, %v949, 0
      %v989 = vsel %vm449, %v950, 0
      %v992 = vsel %vm449, %v951, 0
      %v995 = vsel %vm449, %v952, 0
      %v998 = vsel %vm449, %v953, 0
      %v1001 = vsel %vm449, %v954, 0
      %1003 = vmatpush.bf16.msra.mxu0 0
      %1004 = vmatpush.bf16.msra.mxu0 0
      %1005 = vmatpush.bf16.msra.mxu0 0
      %1006 = vmatpush.bf16.msra.mxu0 0
      %1007 = vmatpush.bf16.msra.mxu0 0
      %1008 = vmatpush.bf16.msra.mxu0 0
      %1009 = vmatpush.bf16.msra.mxu0 %v503
      %1010 = vmatpush.bf16.msra.mxu0 %v446
      %1011 = vmatmul.bf16.gmra.mxu0 %v956
      %v1012 = vpop.f32.mrf.mxu0
      %v1013 = vadd.f32 0.0, %v1012
      %v1014 = vpop.f32.mrf.mxu0
      %v1015 = vadd.f32 0.0, %v1014
      %1016 = vmatmul.bf16.gmra.mxu0 %v959
      %v1017 = vpop.f32.mrf.mxu0
      %v1018 = vadd.f32 0.0, %v1017
      %v1019 = vpop.f32.mrf.mxu0
      %v1020 = vadd.f32 0.0, %v1019
      %1021 = vmatmul.bf16.gmra.mxu0 %v962
      %v1022 = vpop.f32.mrf.mxu0
      %v1023 = vadd.f32 0.0, %v1022
      %v1024 = vpop.f32.mrf.mxu0
      %v1025 = vadd.f32 0.0, %v1024
      %1026 = vmatmul.bf16.gmra.mxu0 %v965
      %v1027 = vpop.f32.mrf.mxu0
      %v1028 = vadd.f32 0.0, %v1027
      %v1029 = vpop.f32.mrf.mxu0
      %v1030 = vadd.f32 0.0, %v1029
      %1031 = vmatmul.bf16.gmra.mxu0 %v968
      %v1032 = vpop.f32.mrf.mxu0
      %v1033 = vadd.f32 0.0, %v1032
      %v1034 = vpop.f32.mrf.mxu0
      %v1035 = vadd.f32 0.0, %v1034
      %1036 = vmatmul.bf16.gmra.mxu0 %v971
      %v1037 = vpop.f32.mrf.mxu0
      %v1038 = vadd.f32 0.0, %v1037
      %v1039 = vpop.f32.mrf.mxu0
      %v1040 = vadd.f32 0.0, %v1039
      %1041 = vmatmul.bf16.gmra.mxu0 %v974
      %v1042 = vpop.f32.mrf.mxu0
      %v1043 = vadd.f32 0.0, %v1042
      %v1044 = vpop.f32.mrf.mxu0
      %v1045 = vadd.f32 0.0, %v1044
      %1046 = vmatmul.bf16.gmra.mxu0 %v977
      %v1047 = vpop.f32.mrf.mxu0
      %v1048 = vadd.f32 0.0, %v1047
      %v1049 = vpop.f32.mrf.mxu0
      %v1050 = vadd.f32 0.0, %v1049
      %1051 = vmatmul.bf16.gmra.mxu0 %v980
      %v1052 = vpop.f32.mrf.mxu0
      %v1053 = vadd.f32 0.0, %v1052
      %v1054 = vpop.f32.mrf.mxu0
      %v1055 = vadd.f32 0.0, %v1054
      %1056 = vmatmul.bf16.gmra.mxu0 %v983
      %v1057 = vpop.f32.mrf.mxu0
      %v1058 = vadd.f32 0.0, %v1057
      %v1059 = vpop.f32.mrf.mxu0
      %v1060 = vadd.f32 0.0, %v1059
      %1061 = vmatmul.bf16.gmra.mxu0 %v986
      %v1062 = vpop.f32.mrf.mxu0
      %v1063 = vadd.f32 0.0, %v1062
      %v1064 = vpop.f32.mrf.mxu0
      %v1065 = vadd.f32 0.0, %v1064
      %1066 = vmatmul.bf16.gmra.mxu0 %v989
      %v1067 = vpop.f32.mrf.mxu0
      %v1068 = vadd.f32 0.0, %v1067
      %v1069 = vpop.f32.mrf.mxu0
      %v1070 = vadd.f32 0.0, %v1069
      %1071 = vmatmul.bf16.gmra.mxu0 %v992
      %v1072 = vpop.f32.mrf.mxu0
      %v1073 = vadd.f32 0.0, %v1072
      %v1074 = vpop.f32.mrf.mxu0
      %v1075 = vadd.f32 0.0, %v1074
      %1076 = vmatmul.bf16.gmra.mxu0 %v995
      %v1077 = vpop.f32.mrf.mxu0
      %v1078 = vadd.f32 0.0, %v1077
      %v1079 = vpop.f32.mrf.mxu0
      %v1080 = vadd.f32 0.0, %v1079
      %1081 = vmatmul.bf16.gmra.mxu0 %v998
      %v1082 = vpop.f32.mrf.mxu0
      %v1083 = vadd.f32 0.0, %v1082
      %v1084 = vpop.f32.mrf.mxu0
      %v1085 = vadd.f32 0.0, %v1084
      %1086 = vmatmul.bf16.gmra.mxu0 %v1001
      %v1087 = vpop.f32.mrf.mxu0
      %v1088 = vadd.f32 0.0, %v1087
      %v1089 = vpop.f32.mrf.mxu0
      %v1090 = vadd.f32 0.0, %v1089
      %1091 = vdwg.mxu0
      %v1092 = vld [vmem:[%s313] sm:$0xf]
      %v1093 = vld [vmem:[%s313 + $0x4] sm:$0xf]
      %v1094 = vld [vmem:[%s313 + $0x8] sm:$0xf]
      %v1095 = vld [vmem:[%s313 + $0xc] sm:$0xf]
      %v1096 = vld [vmem:[%s313 + $0x10] sm:$0xf]
      %v1097 = vld [vmem:[%s313 + $0x14] sm:$0xf]
      %v1098 = vld [vmem:[%s313 + $0x18] sm:$0xf]
      %v1099 = vld [vmem:[%s313 + $0x1c] sm:$0xf]
      %v1100 = vld [vmem:[%s313 + $0x20] sm:$0xf]
      %v1101 = vld [vmem:[%s313 + $0x24] sm:$0xf]
      %v1102 = vld [vmem:[%s313 + $0x28] sm:$0xf]
      %v1103 = vld [vmem:[%s313 + $0x2c] sm:$0xf]
      %v1104 = vld [vmem:[%s313 + $0x30] sm:$0xf]
      %v1105 = vld [vmem:[%s313 + $0x34] sm:$0xf]
      %v1106 = vld [vmem:[%s313 + $0x38] sm:$0xf]
      %v1107 = vld [vmem:[%s313 + $0x3c] sm:$0xf]
      %v1108 = vld [vmem:[%s313 + $0x40] sm:$0xf]
      %v1109 = vld [vmem:[%s313 + $0x44] sm:$0xf]
      %v1110 = vld [vmem:[%s313 + $0x48] sm:$0xf]
      %v1111 = vld [vmem:[%s313 + $0x4c] sm:$0xf]
      %v1112 = vld [vmem:[%s313 + $0x50] sm:$0xf]
      %v1113 = vld [vmem:[%s313 + $0x54] sm:$0xf]
      %v1114 = vld [vmem:[%s313 + $0x58] sm:$0xf]
      %v1115 = vld [vmem:[%s313 + $0x5c] sm:$0xf]
      %v1116 = vld [vmem:[%s313 + $0x60] sm:$0xf]
      %v1117 = vld [vmem:[%s313 + $0x64] sm:$0xf]
      %v1118 = vld [vmem:[%s313 + $0x68] sm:$0xf]
      %v1119 = vld [vmem:[%s313 + $0x6c] sm:$0xf]
      %v1120 = vld [vmem:[%s313 + $0x70] sm:$0xf]
      %v1121 = vld [vmem:[%s313 + $0x74] sm:$0xf]
      %v1122 = vld [vmem:[%s313 + $0x78] sm:$0xf]
      %v1123 = vld [vmem:[%s313 + $0x7c] sm:$0xf]
      %v1156 = vunpack.c.l.b16 %v1092
      %v1157 = vunpack.c.l.b16 %v1093
      %v1158 = vunpack.c.l.b16 %v1094
      %v1159 = vunpack.c.l.b16 %v1095
      %v1160 = vunpack.c.l.b16 %v1096
      %v1161 = vunpack.c.l.b16 %v1097
      %v1162 = vunpack.c.l.b16 %v1098
      %v1163 = vunpack.c.l.b16 %v1099
      %v1164 = vunpack.c.l.b16 %v1100
      %v1165 = vunpack.c.l.b16 %v1101
      %v1166 = vunpack.c.l.b16 %v1102
      %v1167 = vunpack.c.l.b16 %v1103
      %v1168 = vunpack.c.l.b16 %v1104
      %v1169 = vunpack.c.l.b16 %v1105
      %v1170 = vunpack.c.l.b16 %v1106
      %v1171 = vunpack.c.l.b16 %v1107
      %v1172 = vunpack.c.l.b16 %v1108
      %v1173 = vunpack.c.l.b16 %v1109
      %v1174 = vunpack.c.l.b16 %v1110
      %v1175 = vunpack.c.l.b16 %v1111
      %v1176 = vunpack.c.l.b16 %v1112
      %v1177 = vunpack.c.l.b16 %v1113
      %v1178 = vunpack.c.l.b16 %v1114
      %v1179 = vunpack.c.l.b16 %v1115
      %v1180 = vunpack.c.l.b16 %v1116
      %v1181 = vunpack.c.l.b16 %v1117
      %v1182 = vunpack.c.l.b16 %v1118
      %v1183 = vunpack.c.l.b16 %v1119
      %v1184 = vunpack.c.l.b16 %v1120
      %v1185 = vunpack.c.l.b16 %v1121
      %v1186 = vunpack.c.l.b16 %v1122
      %v1187 = vunpack.c.l.b16 %v1123
      %v1188 = vpack.c.b16 %v1157, %v1156
      %v1189 = vpack.c.b16 %v1159, %v1158
      %v1190 = vpack.c.b16 %v1161, %v1160
      %v1191 = vpack.c.b16 %v1163, %v1162
      %v1192 = vpack.c.b16 %v1165, %v1164
      %v1193 = vpack.c.b16 %v1167, %v1166
      %v1194 = vpack.c.b16 %v1169, %v1168
      %v1195 = vpack.c.b16 %v1171, %v1170
      %v1196 = vpack.c.b16 %v1173, %v1172
      %v1197 = vpack.c.b16 %v1175, %v1174
      %v1198 = vpack.c.b16 %v1177, %v1176
      %v1199 = vpack.c.b16 %v1179, %v1178
      %v1200 = vpack.c.b16 %v1181, %v1180
      %v1201 = vpack.c.b16 %v1183, %v1182
      %v1202 = vpack.c.b16 %v1185, %v1184
      %v1203 = vpack.c.b16 %v1187, %v1186
      %v1205 = vsel %vm449, %v1188, 0
      %v1208 = vsel %vm449, %v1189, 0
      %v1211 = vsel %vm449, %v1190, 0
      %v1214 = vsel %vm449, %v1191, 0
      %v1217 = vsel %vm449, %v1192, 0
      %v1220 = vsel %vm449, %v1193, 0
      %v1223 = vsel %vm449, %v1194, 0
      %v1226 = vsel %vm449, %v1195, 0
      %v1229 = vsel %vm449, %v1196, 0
      %v1232 = vsel %vm449, %v1197, 0
      %v1235 = vsel %vm449, %v1198, 0
      %v1238 = vsel %vm449, %v1199, 0
      %v1241 = vsel %vm449, %v1200, 0
      %v1244 = vsel %vm449, %v1201, 0
      %v1247 = vsel %vm449, %v1202, 0
      %v1250 = vsel %vm449, %v1203, 0
      %1252 = vmatpush.bf16.msra.mxu0 0
      %1253 = vmatpush.bf16.msra.mxu0 0
      %1254 = vmatpush.bf16.msra.mxu0 0
      %1255 = vmatpush.bf16.msra.mxu0 0
      %1256 = vmatpush.bf16.msra.mxu0 0
      %1257 = vmatpush.bf16.msra.mxu0 0
      %1258 = vmatpush.bf16.msra.mxu0 %v503
      %1259 = vmatpush.bf16.msra.mxu0 %v446
      %1260 = vmatmul.bf16.gmra.mxu0 %v1205
      %v1261 = vpop.f32.mrf.mxu0
      %v1262 = vadd.f32 0.0, %v1261
      %v1263 = vpop.f32.mrf.mxu0
      %v1264 = vadd.f32 0.0, %v1263
      %1265 = vmatmul.bf16.gmra.mxu0 %v1208
      %v1266 = vpop.f32.mrf.mxu0
      %v1267 = vadd.f32 0.0, %v1266
      %v1268 = vpop.f32.mrf.mxu0
      %v1269 = vadd.f32 0.0, %v1268
      %1270 = vmatmul.bf16.gmra.mxu0 %v1211
      %v1271 = vpop.f32.mrf.mxu0
      %v1272 = vadd.f32 0.0, %v1271
      %v1273 = vpop.f32.mrf.mxu0
      %v1274 = vadd.f32 0.0, %v1273
      %1275 = vmatmul.bf16.gmra.mxu0 %v1214
      %v1276 = vpop.f32.mrf.mxu0
      %v1277 = vadd.f32 0.0, %v1276
      %v1278 = vpop.f32.mrf.mxu0
      %v1279 = vadd.f32 0.0, %v1278
      %1280 = vmatmul.bf16.gmra.mxu0 %v1217
      %v1281 = vpop.f32.mrf.mxu0
      %v1282 = vadd.f32 0.0, %v1281
      %v1283 = vpop.f32.mrf.mxu0
      %v1284 = vadd.f32 0.0, %v1283
      %1285 = vmatmul.bf16.gmra.mxu0 %v1220
      %v1286 = vpop.f32.mrf.mxu0
      %v1287 = vadd.f32 0.0, %v1286
      %v1288 = vpop.f32.mrf.mxu0
      %v1289 = vadd.f32 0.0, %v1288
      %1290 = vmatmul.bf16.gmra.mxu0 %v1223
      %v1291 = vpop.f32.mrf.mxu0
      %v1292 = vadd.f32 0.0, %v1291
      %v1293 = vpop.f32.mrf.mxu0
      %v1294 = vadd.f32 0.0, %v1293
      %1295 = vmatmul.bf16.gmra.mxu0 %v1226
      %v1296 = vpop.f32.mrf.mxu0
      %v1297 = vadd.f32 0.0, %v1296
      %v1298 = vpop.f32.mrf.mxu0
      %v1299 = vadd.f32 0.0, %v1298
      %1300 = vmatmul.bf16.gmra.mxu0 %v1229
      %v1301 = vpop.f32.mrf.mxu0
      %v1302 = vadd.f32 0.0, %v1301
      %v1303 = vpop.f32.mrf.mxu0
      %v1304 = vadd.f32 0.0, %v1303
      %1305 = vmatmul.bf16.gmra.mxu0 %v1232
      %v1306 = vpop.f32.mrf.mxu0
      %v1307 = vadd.f32 0.0, %v1306
      %v1308 = vpop.f32.mrf.mxu0
      %v1309 = vadd.f32 0.0, %v1308
      %1310 = vmatmul.bf16.gmra.mxu0 %v1235
      %v1311 = vpop.f32.mrf.mxu0
      %v1312 = vadd.f32 0.0, %v1311
      %v1313 = vpop.f32.mrf.mxu0
      %v1314 = vadd.f32 0.0, %v1313
      %1315 = vmatmul.bf16.gmra.mxu0 %v1238
      %v1316 = vpop.f32.mrf.mxu0
      %v1317 = vadd.f32 0.0, %v1316
      %v1318 = vpop.f32.mrf.mxu0
      %v1319 = vadd.f32 0.0, %v1318
      %1320 = vmatmul.bf16.gmra.mxu0 %v1241
      %v1321 = vpop.f32.mrf.mxu0
      %v1322 = vadd.f32 0.0, %v1321
      %v1323 = vpop.f32.mrf.mxu0
      %v1324 = vadd.f32 0.0, %v1323
      %1325 = vmatmul.bf16.gmra.mxu0 %v1244
      %v1326 = vpop.f32.mrf.mxu0
      %v1327 = vadd.f32 0.0, %v1326
      %v1328 = vpop.f32.mrf.mxu0
      %v1329 = vadd.f32 0.0, %v1328
      %1330 = vmatmul.bf16.gmra.mxu0 %v1247
      %v1331 = vpop.f32.mrf.mxu0
      %v1332 = vadd.f32 0.0, %v1331
      %v1333 = vpop.f32.mrf.mxu0
      %v1334 = vadd.f32 0.0, %v1333
      %1335 = vmatmul.bf16.gmra.mxu0 %v1250
      %v1336 = vpop.f32.mrf.mxu0
      %v1337 = vadd.f32 0.0, %v1336
      %v1338 = vpop.f32.mrf.mxu0
      %v1339 = vadd.f32 0.0, %v1338
      %1340 = vdwg.mxu0
      %v1341 = vmax.f32 %v515, %v764
      %v1342 = vmax.f32 %v517, %v766
      %v1343 = vmax.f32 %v520, %v769
      %v1344 = vmax.f32 %v522, %v771
      %v1345 = vmax.f32 %v525, %v774
      %v1346 = vmax.f32 %v527, %v776
      %v1347 = vmax.f32 %v530, %v779
      %v1348 = vmax.f32 %v532, %v781
      %v1349 = vmax.f32 %v535, %v784
      %v1350 = vmax.f32 %v537, %v786
      %v1351 = vmax.f32 %v540, %v789
      %v1352 = vmax.f32 %v542, %v791
      %v1353 = vmax.f32 %v545, %v794
      %v1354 = vmax.f32 %v547, %v796
      %v1355 = vmax.f32 %v550, %v799
      %v1356 = vmax.f32 %v552, %v801
      %v1357 = vmax.f32 %v555, %v804
      %v1358 = vmax.f32 %v557, %v806
      %v1359 = vmax.f32 %v560, %v809
      %v1360 = vmax.f32 %v562, %v811
      %v1361 = vmax.f32 %v565, %v814
      %v1362 = vmax.f32 %v567, %v816
      %v1363 = vmax.f32 %v570, %v819
      %v1364 = vmax.f32 %v572, %v821
      %v1365 = vmax.f32 %v575, %v824
      %v1366 = vmax.f32 %v577, %v826
      %v1367 = vmax.f32 %v580, %v829
      %v1368 = vmax.f32 %v582, %v831
      %v1369 = vmax.f32 %v585, %v834
      %v1370 = vmax.f32 %v587, %v836
      %v1371 = vmax.f32 %v590, %v839
      %v1372 = vmax.f32 %v592, %v841
      %v1373 = vmax.f32 %v1013, %v1262
      %v1374 = vmax.f32 %v1015, %v1264
      %v1375 = vmax.f32 %v1018, %v1267
      %v1376 = vmax.f32 %v1020, %v1269
      %v1377 = vmax.f32 %v1023, %v1272
      %v1378 = vmax.f32 %v1025, %v1274
      %v1379 = vmax.f32 %v1028, %v1277
      %v1380 = vmax.f32 %v1030, %v1279
      %v1381 = vmax.f32 %v1033, %v1282
      %v1382 = vmax.f32 %v1035, %v1284
      %v1383 = vmax.f32 %v1038, %v1287
      %v1384 = vmax.f32 %v1040, %v1289
      %v1385 = vmax.f32 %v1043, %v1292
      %v1386 = vmax.f32 %v1045, %v1294
      %v1387 = vmax.f32 %v1048, %v1297
      %v1388 = vmax.f32 %v1050, %v1299
      %v1389 = vmax.f32 %v1053, %v1302
      %v1390 = vmax.f32 %v1055, %v1304
      %v1391 = vmax.f32 %v1058, %v1307
      %v1392 = vmax.f32 %v1060, %v1309
      %v1393 = vmax.f32 %v1063, %v1312
      %v1394 = vmax.f32 %v1065, %v1314
      %v1395 = vmax.f32 %v1068, %v1317
      %v1396 = vmax.f32 %v1070, %v1319
      %v1397 = vmax.f32 %v1073, %v1322
      %v1398 = vmax.f32 %v1075, %v1324
      %v1399 = vmax.f32 %v1078, %v1327
      %v1400 = vmax.f32 %v1080, %v1329
      %v1401 = vmax.f32 %v1083, %v1332
      %v1402 = vmax.f32 %v1085, %v1334
      %v1403 = vmax.f32 %v1088, %v1337
      %v1404 = vmax.f32 %v1090, %v1339
      %v1405 = vmax.f32 %v1341, %v1373
      %v1406 = vmax.f32 %v1342, %v1374
      %v1407 = vmax.f32 %v1343, %v1375
      %v1408 = vmax.f32 %v1344, %v1376
      %v1409 = vmax.f32 %v1345, %v1377
      %v1410 = vmax.f32 %v1346, %v1378
      %v1411 = vmax.f32 %v1347, %v1379
      %v1412 = vmax.f32 %v1348, %v1380
      %v1413 = vmax.f32 %v1349, %v1381
      %v1414 = vmax.f32 %v1350, %v1382
      %v1415 = vmax.f32 %v1351, %v1383
      %v1416 = vmax.f32 %v1352, %v1384
      %v1417 = vmax.f32 %v1353, %v1385
      %v1418 = vmax.f32 %v1354, %v1386
      %v1419 = vmax.f32 %v1355, %v1387
      %v1420 = vmax.f32 %v1356, %v1388
      %v1421 = vmax.f32 %v1357, %v1389
      %v1422 = vmax.f32 %v1358, %v1390
      %v1423 = vmax.f32 %v1359, %v1391
      %v1424 = vmax.f32 %v1360, %v1392
      %v1425 = vmax.f32 %v1361, %v1393
      %v1426 = vmax.f32 %v1362, %v1394
      %v1427 = vmax.f32 %v1363, %v1395
      %v1428 = vmax.f32 %v1364, %v1396
      %v1429 = vmax.f32 %v1365, %v1397
      %v1430 = vmax.f32 %v1366, %v1398
      %v1431 = vmax.f32 %v1367, %v1399
      %v1432 = vmax.f32 %v1368, %v1400
      %v1433 = vmax.f32 %v1369, %v1401
      %v1434 = vmax.f32 %v1370, %v1402
      %v1435 = vmax.f32 %v1371, %v1403
      %v1436 = vmax.f32 %v1372, %v1404
      %v1437 = vld [vmem:[%s5] sm:$0x1]
      %v1439 = vperm.slane %v1437, 0
      %v1441 = vadd.f32 %v1405, %v1439
      %v1442 = vadd.f32 %v1406, %v1439
      %v1443 = vadd.f32 %v1407, %v1439
      %v1444 = vadd.f32 %v1408, %v1439
      %v1445 = vadd.f32 %v1409, %v1439
      %v1446 = vadd.f32 %v1410, %v1439
      %v1447 = vadd.f32 %v1411, %v1439
      %v1448 = vadd.f32 %v1412, %v1439
      %v1449 = vadd.f32 %v1413, %v1439
      %v1450 = vadd.f32 %v1414, %v1439
      %v1451 = vadd.f32 %v1415, %v1439
      %v1452 = vadd.f32 %v1416, %v1439
      %v1453 = vadd.f32 %v1417, %v1439
      %v1454 = vadd.f32 %v1418, %v1439
      %v1455 = vadd.f32 %v1419, %v1439
      %v1456 = vadd.f32 %v1420, %v1439
      %v1457 = vadd.f32 %v1421, %v1439
      %v1458 = vadd.f32 %v1422, %v1439
      %v1459 = vadd.f32 %v1423, %v1439
      %v1460 = vadd.f32 %v1424, %v1439
      %v1461 = vadd.f32 %v1425, %v1439
      %v1462 = vadd.f32 %v1426, %v1439
      %v1463 = vadd.f32 %v1427, %v1439
      %v1464 = vadd.f32 %v1428, %v1439
      %v1465 = vadd.f32 %v1429, %v1439
      %v1466 = vadd.f32 %v1430, %v1439
      %v1467 = vadd.f32 %v1431, %v1439
      %v1468 = vadd.f32 %v1432, %v1439
      %v1469 = vadd.f32 %v1433, %v1439
      %v1470 = vadd.f32 %v1434, %v1439
      %v1471 = vadd.f32 %v1435, %v1439
      %v1472 = vadd.f32 %v1436, %v1439
      %v1473 = vmax.f32 %v1441, 0.0
      %v1474 = vmax.f32 %v1442, 0.0
      %v1475 = vmax.f32 %v1443, 0.0
      %v1476 = vmax.f32 %v1444, 0.0
      %v1477 = vmax.f32 %v1445, 0.0
      %v1478 = vmax.f32 %v1446, 0.0
      %v1479 = vmax.f32 %v1447, 0.0
      %v1480 = vmax.f32 %v1448, 0.0
      %v1481 = vmax.f32 %v1449, 0.0
      %v1482 = vmax.f32 %v1450, 0.0
      %v1483 = vmax.f32 %v1451, 0.0
      %v1484 = vmax.f32 %v1452, 0.0
      %v1485 = vmax.f32 %v1453, 0.0
      %v1486 = vmax.f32 %v1454, 0.0
      %v1487 = vmax.f32 %v1455, 0.0
      %v1488 = vmax.f32 %v1456, 0.0
      %v1489 = vmax.f32 %v1457, 0.0
      %v1490 = vmax.f32 %v1458, 0.0
      %v1491 = vmax.f32 %v1459, 0.0
      %v1492 = vmax.f32 %v1460, 0.0
      %v1493 = vmax.f32 %v1461, 0.0
      %v1494 = vmax.f32 %v1462, 0.0
      %v1495 = vmax.f32 %v1463, 0.0
      %v1496 = vmax.f32 %v1464, 0.0
      %v1497 = vmax.f32 %v1465, 0.0
      %v1498 = vmax.f32 %v1466, 0.0
      %v1499 = vmax.f32 %v1467, 0.0
      %v1500 = vmax.f32 %v1468, 0.0
      %v1501 = vmax.f32 %v1469, 0.0
      %v1502 = vmax.f32 %v1470, 0.0
      %v1503 = vmax.f32 %v1471, 0.0
      %v1504 = vmax.f32 %v1472, 0.0
      %v1505 = vpack.c.bf16 %v1473, %v1473
      %v1506 = vpack.c.bf16 %v1474, %v1474
      %v1507 = vpack.c.bf16 %v1475, %v1475
      %v1508 = vpack.c.bf16 %v1476, %v1476
      %v1509 = vpack.c.bf16 %v1477, %v1477
      %v1510 = vpack.c.bf16 %v1478, %v1478
      %v1511 = vpack.c.bf16 %v1479, %v1479
      %v1512 = vpack.c.bf16 %v1480, %v1480
      %v1513 = vpack.c.bf16 %v1481, %v1481
      %v1514 = vpack.c.bf16 %v1482, %v1482
      %v1515 = vpack.c.bf16 %v1483, %v1483
      %v1516 = vpack.c.bf16 %v1484, %v1484
      %v1517 = vpack.c.bf16 %v1485, %v1485
      %v1518 = vpack.c.bf16 %v1486, %v1486
      %v1519 = vpack.c.bf16 %v1487, %v1487
      %v1520 = vpack.c.bf16 %v1488, %v1488
      %v1521 = vpack.c.bf16 %v1489, %v1489
      %v1522 = vpack.c.bf16 %v1490, %v1490
      %v1523 = vpack.c.bf16 %v1491, %v1491
      %v1524 = vpack.c.bf16 %v1492, %v1492
      %v1525 = vpack.c.bf16 %v1493, %v1493
      %v1526 = vpack.c.bf16 %v1494, %v1494
      %v1527 = vpack.c.bf16 %v1495, %v1495
      %v1528 = vpack.c.bf16 %v1496, %v1496
      %v1529 = vpack.c.bf16 %v1497, %v1497
      %v1530 = vpack.c.bf16 %v1498, %v1498
      %v1531 = vpack.c.bf16 %v1499, %v1499
      %v1532 = vpack.c.bf16 %v1500, %v1500
      %v1533 = vpack.c.bf16 %v1501, %v1501
      %v1534 = vpack.c.bf16 %v1502, %v1502
      %v1535 = vpack.c.bf16 %v1503, %v1503
      %v1536 = vpack.c.bf16 %v1504, %v1504
      %1537 = vst [vmem:[%s319] sm:$0xf] %v1505
      %1538 = vst [vmem:[%s319 + $0x4] sm:$0xf] %v1506
      %1539 = vst [vmem:[%s319 + $0x8] sm:$0xf] %v1507
      %1540 = vst [vmem:[%s319 + $0xc] sm:$0xf] %v1508
      %1541 = vst [vmem:[%s319 + $0x10] sm:$0xf] %v1509
      %1542 = vst [vmem:[%s319 + $0x14] sm:$0xf] %v1510
      %1543 = vst [vmem:[%s319 + $0x18] sm:$0xf] %v1511
      %1544 = vst [vmem:[%s319 + $0x1c] sm:$0xf] %v1512
      %1545 = vst [vmem:[%s319 + $0x20] sm:$0xf] %v1513
      %1546 = vst [vmem:[%s319 + $0x24] sm:$0xf] %v1514
      %1547 = vst [vmem:[%s319 + $0x28] sm:$0xf] %v1515
      %1548 = vst [vmem:[%s319 + $0x2c] sm:$0xf] %v1516
      %1549 = vst [vmem:[%s319 + $0x30] sm:$0xf] %v1517
      %1550 = vst [vmem:[%s319 + $0x34] sm:$0xf] %v1518
      %1551 = vst [vmem:[%s319 + $0x38] sm:$0xf] %v1519
      %1552 = vst [vmem:[%s319 + $0x3c] sm:$0xf] %v1520
      %1553 = vst [vmem:[%s319 + $0x40] sm:$0xf] %v1521
      %1554 = vst [vmem:[%s319 + $0x44] sm:$0xf] %v1522
      %1555 = vst [vmem:[%s319 + $0x48] sm:$0xf] %v1523
      %1556 = vst [vmem:[%s319 + $0x4c] sm:$0xf] %v1524
      %1557 = vst [vmem:[%s319 + $0x50] sm:$0xf] %v1525
      %1558 = vst [vmem:[%s319 + $0x54] sm:$0xf] %v1526
      %1559 = vst [vmem:[%s319 + $0x58] sm:$0xf] %v1527
      %1560 = vst [vmem:[%s319 + $0x5c] sm:$0xf] %v1528
      %1561 = vst [vmem:[%s319 + $0x60] sm:$0xf] %v1529
      %1562 = vst [vmem:[%s319 + $0x64] sm:$0xf] %v1530
      %1563 = vst [vmem:[%s319 + $0x68] sm:$0xf] %v1531
      %1564 = vst [vmem:[%s319 + $0x6c] sm:$0xf] %v1532
      %1565 = vst [vmem:[%s319 + $0x70] sm:$0xf] %v1533
      %1566 = vst [vmem:[%s319 + $0x74] sm:$0xf] %v1534
      %1567 = vst [vmem:[%s319 + $0x78] sm:$0xf] %v1535
      %1568 = vst [vmem:[%s319 + $0x7c] sm:$0xf] %v1536
      %s1569 = smul.u32 32, %s17
      %p1570 = scmp.lt.s32.totalorder %s1569, 63
      %s1571 = scalar_select %p1570, %s1569, 63
      %s1572 = smul.addr %s1571, 4
      %s1573 = scalar_lea.vmem %s6, %s1572
      // Predicated region
      $region45: #{simple_cnn_forward.4} parent=43 // pred_check
        %p1574 = pneg %p181
      $region46: #{simple_cnn_forward.4} parent=43 // pred_check_branch
        %1576 = sbr.rel (%p1574) target = $region48
      $region47: #{simple_cnn_forward.4} parent=43 // pred_region
        %s1577 = smul.u32 32, %s17
      $region48: #{simple_cnn_forward.4} parent=43 // pred_fallthru
        _
    $region44: #{simple_cnn_forward.4} parent=5 // pred_fallthru
      _
    %p1578 = scmp.le.s32.totalorder 2, %s12
    // Predicated region
    $region49: #{simple_cnn_forward.4} parent=5 // pred_check
      %p1579 = pneg %p1578
    $region50: #{simple_cnn_forward.4} parent=5 // pred_check_branch
      %1581 = sbr.rel (%p1579) target = $region52
    $region51: #{simple_cnn_forward.4} parent=5 // pred_region
      %s1582 = ssub.s32 %s12, 2
      // Predicated region
      $region53: #{simple_cnn_forward.4} parent=51 // pred_check
        %p1583 = pneg %p187
      $region54: #{simple_cnn_forward.4} parent=51 // pred_check_branch
        %1585 = sbr.rel (%p1583) target = $region56
      $region55: #{simple_cnn_forward.4} parent=51 // pred_region
        %s1586 = smul.u32 32, %s18
        %p1587 = scmp.lt.s32.totalorder %s1586, 63
        %s1588 = scalar_select %p1587, %s1586, 63
        %s1589 = smul.addr %s1588, 4
        %s1590 = scalar_lea.vmem %s6, %s1589
      $region56: #{simple_cnn_forward.4} parent=51 // pred_fallthru
        _
    $region52: #{simple_cnn_forward.4} parent=5 // pred_fallthru
      _
  $region6: #{simple_cnn_forward.4} parent=0 // loop_footer
    %s16 = sadd.s32 1, %s12
  $region7: #{simple_cnn_forward.4} parent=0 // loop_footer_branch
    %11 = sbr.rel target = $region3
  $region8: #{simple_cnn_forward.4} parent=0 // loop_exit
    _

// kernel: simple_cnn_forward.5
$region0: #{simple_cnn_forward.5}
  #allocation0 [shape = 'u32[]', space=smem, size = 0x4, offset = 0x4, fixed_abs, tag = 'smem constant byte address 0x4 - core index']
  #allocation1 [shape = 'u32[72,128]{1,0:T(1,128)}', space=vmem, size = 0x9000, scoped, tag = 'internal scratch']
  %s0 = inlined_call_operand.vmem [shape: bf16[128,144], index: 0, kind: input, shape index: {}]
  %s1 = inlined_call_operand.vmem [shape: bf16[128,144], index: 1, kind: input, shape index: {}]
  %s2 = inlined_call_operand.vmem [shape: bf16[128,144], index: 2, kind: input, shape index: {}]
  %s3 = inlined_call_operand.vmem [shape: bf16[128,144], index: 3, kind: input, shape index: {}]
  %s4 = inlined_call_operand.vmem [shape: bf16[144,128], index: 4, kind: input, shape index: {}]
  %s5 = inlined_call_operand.vmem [shape: f32[1,128], index: 5, kind: input, shape index: {}]
  %s6 = inlined_call_operand.vmem [shape: bf16[128,128], index: 6, kind: output, shape index: {}]
  %s7 = sld [smem:[#allocation0]]
  $region57: #{simple_cnn_forward.5} parent=0
    _
  %s9 = ssub.s32 1, %s7
  %s10 = scalar_select 0, %s9, %s7
  loop: start=0, step=1, limit=4
  $region2: #{simple_cnn_forward.5} parent=0 // loop_pre_header
    _
  $region3: #{simple_cnn_forward.5} parent=0 // loop_header
    %s12 = sphi 0, %s16
    %p13 = scmp.ge.s32.totalorder %s12, 4
    %s22 = sphi 0, %s24
    %s25 = sphi 0, %s22
    %s26 = sphi 0, %s25
    %s42 = sphi 0, %s26
    %s48 = sphi 0, %s50
    %s51 = sphi 0, %s48
    %s52 = sphi 0, %s51
    %s68 = sphi 0, %s52
    %s74 = sphi 0, %s76
    %s77 = sphi 0, %s74
    %s78 = sphi 0, %s77
    %s94 = sphi 0, %s78
    %s100 = sphi 0, %s102
    %s103 = sphi 0, %s100
    %s104 = sphi 0, %s103
    %s120 = sphi 0, %s104
    %s124 = sphi 0, %s124
    %s126 = sphi 0, %s124
    %s127 = sphi 0, %s126
    %s141 = sphi 0, %s127
    %s145 = sphi 0, %s145
    %s147 = sphi 0, %s145
    %s148 = sphi 0, %s147
    %s162 = sphi 0, %s148
    %s168 = sphi 0, %s170
    %s171 = sphi 0, %s168
    %s172 = sphi 0, %s171
    %s188 = sphi 0, %s172
  $region4: #{simple_cnn_forward.5} parent=0 // loop_header_branch
    %15 = sbr.rel (%p13) target = $region8
  $region5: #{simple_cnn_forward.5} parent=0 // loop_body
    %s17 = ssub.s32 %s12, 1
    %s18 = ssub.s32 %s12, 2
    %s19 = sadd.s32 %s12, 1
    %s20 = ssub.s32 %s12, %s19
    %p21 = scmp.eq.s32.totalorder %s20, 0
    %s23 = sadd.s32 %s22, 1
    %s24 = scalar_select %p21, %s22, %s23
    %p27 = pneg %p21
    %p28 = scmp.eq.s32.totalorder %s12, 1
    %p29 = por %p27, %p28
    %p30 = scmp.ne.s32.totalorder %s22, %s25
    %p31 = scmp.eq.s32.totalorder %s12, 0
    %p32 = por %p30, %p31
    %p33 = scmp.ne.s32.totalorder %s22, %s25
    %p34 = scmp.eq.s32.totalorder %s17, 1
    %p35 = por %p33, %p34
    %p36 = scmp.ne.s32.totalorder %s25, %s26
    %p37 = scmp.eq.s32.totalorder %s17, 0
    %p38 = por %p36, %p37
    %p39 = scmp.ne.s32.totalorder %s25, %s26
    %p40 = scmp.eq.s32.totalorder %s18, 1
    %p41 = por %p39, %p40
    %p43 = scmp.ne.s32.totalorder %s26, %s42
    %p44 = scmp.eq.s32.totalorder %s18, 0
    %p45 = por %p43, %p44
    %s46 = ssub.s32 %s12, %s19
    %p47 = scmp.eq.s32.totalorder %s46, 0
    %s49 = sadd.s32 %s48, 1
    %s50 = scalar_select %p47, %s48, %s49
    %p53 = pneg %p47
    %p54 = scmp.eq.s32.totalorder %s12, 1
    %p55 = por %p53, %p54
    %p56 = scmp.ne.s32.totalorder %s48, %s51
    %p57 = scmp.eq.s32.totalorder %s12, 0
    %p58 = por %p56, %p57
    %p59 = scmp.ne.s32.totalorder %s48, %s51
    %p60 = scmp.eq.s32.totalorder %s17, 1
    %p61 = por %p59, %p60
    %p62 = scmp.ne.s32.totalorder %s51, %s52
    %p63 = scmp.eq.s32.totalorder %s17, 0
    %p64 = por %p62, %p63
    %p65 = scmp.ne.s32.totalorder %s51, %s52
    %p66 = scmp.eq.s32.totalorder %s18, 1
    %p67 = por %p65, %p66
    %p69 = scmp.ne.s32.totalorder %s52, %s68
    %p70 = scmp.eq.s32.totalorder %s18, 0
    %p71 = por %p69, %p70
    %s72 = ssub.s32 %s12, %s19
    %p73 = scmp.eq.s32.totalorder %s72, 0
    %s75 = sadd.s32 %s74, 1
    %s76 = scalar_select %p73, %s74, %s75
    %p79 = pneg %p73
    %p80 = scmp.eq.s32.totalorder %s12, 1
    %p81 = por %p79, %p80
    %p82 = scmp.ne.s32.totalorder %s74, %s77
    %p83 = scmp.eq.s32.totalorder %s12, 0
    %p84 = por %p82, %p83
    %p85 = scmp.ne.s32.totalorder %s74, %s77
    %p86 = scmp.eq.s32.totalorder %s17, 1
    %p87 = por %p85, %p86
    %p88 = scmp.ne.s32.totalorder %s77, %s78
    %p89 = scmp.eq.s32.totalorder %s17, 0
    %p90 = por %p88, %p89
    %p91 = scmp.ne.s32.totalorder %s77, %s78
    %p92 = scmp.eq.s32.totalorder %s18, 1
    %p93 = por %p91, %p92
    %p95 = scmp.ne.s32.totalorder %s78, %s94
    %p96 = scmp.eq.s32.totalorder %s18, 0
    %p97 = por %p95, %p96
    %s98 = ssub.s32 %s12, %s19
    %p99 = scmp.eq.s32.totalorder %s98, 0
    %s101 = sadd.s32 %s100, 1
    %s102 = scalar_select %p99, %s100, %s101
    %p105 = pneg %p99
    %p106 = scmp.eq.s32.totalorder %s12, 1
    %p107 = por %p105, %p106
    %p108 = scmp.ne.s32.totalorder %s100, %s103
    %p109 = scmp.eq.s32.totalorder %s12, 0
    %p110 = por %p108, %p109
    %p111 = scmp.ne.s32.totalorder %s100, %s103
    %p112 = scmp.eq.s32.totalorder %s17, 1
    %p113 = por %p111, %p112
    %p114 = scmp.ne.s32.totalorder %s103, %s104
    %p115 = scmp.eq.s32.totalorder %s17, 0
    %p116 = por %p114, %p115
    %p117 = scmp.ne.s32.totalorder %s103, %s104
    %p118 = scmp.eq.s32.totalorder %s18, 1
    %p119 = por %p117, %p118
    %p121 = scmp.ne.s32.totalorder %s104, %s120
    %p122 = scmp.eq.s32.totalorder %s18, 0
    %p123 = por %p121, %p122
    %s125 = sadd.s32 %s124, 1
    %p128 = scmp.eq.s32.totalorder %s12, 1
    %p129 = scmp.ne.s32.totalorder %s124, %s126
    %p130 = scmp.eq.s32.totalorder %s12, 0
    %p131 = por %p129, %p130
    %p132 = scmp.ne.s32.totalorder %s124, %s126
    %p133 = scmp.eq.s32.totalorder %s17, 1
    %p134 = por %p132, %p133
    %p135 = scmp.ne.s32.totalorder %s126, %s127
    %p136 = scmp.eq.s32.totalorder %s17, 0
    %p137 = por %p135, %p136
    %p138 = scmp.ne.s32.totalorder %s126, %s127
    %p139 = scmp.eq.s32.totalorder %s18, 1
    %p140 = por %p138, %p139
    %p142 = scmp.ne.s32.totalorder %s127, %s141
    %p143 = scmp.eq.s32.totalorder %s18, 0
    %p144 = por %p142, %p143
    %s146 = sadd.s32 %s145, 1
    %p149 = scmp.eq.s32.totalorder %s12, 1
    %p150 = scmp.ne.s32.totalorder %s145, %s147
    %p151 = scmp.eq.s32.totalorder %s12, 0
    %p152 = por %p150, %p151
    %p153 = scmp.ne.s32.totalorder %s145, %s147
    %p154 = scmp.eq.s32.totalorder %s17, 1
    %p155 = por %p153, %p154
    %p156 = scmp.ne.s32.totalorder %s147, %s148
    %p157 = scmp.eq.s32.totalorder %s17, 0
    %p158 = por %p156, %p157
    %p159 = scmp.ne.s32.totalorder %s147, %s148
    %p160 = scmp.eq.s32.totalorder %s18, 1
    %p161 = por %p159, %p160
    %p163 = scmp.ne.s32.totalorder %s148, %s162
    %p164 = scmp.eq.s32.totalorder %s18, 0
    %p165 = por %p163, %p164
    %s166 = ssub.s32 %s12, %s19
    %p167 = scmp.eq.s32.totalorder %s166, 0
    %s169 = sadd.s32 %s168, 1
    %s170 = scalar_select %p167, %s168, %s169
    %p173 = pneg %p167
    %p174 = scmp.eq.s32.totalorder %s12, 1
    %p175 = por %p173, %p174
    %p176 = scmp.ne.s32.totalorder %s168, %s171
    %p177 = scmp.eq.s32.totalorder %s12, 0
    %p178 = por %p176, %p177
    %p179 = scmp.ne.s32.totalorder %s168, %s171
    %p180 = scmp.eq.s32.totalorder %s17, 1
    %p181 = por %p179, %p180
    %p182 = scmp.ne.s32.totalorder %s171, %s172
    %p183 = scmp.eq.s32.totalorder %s17, 0
    %p184 = por %p182, %p183
    %p185 = scmp.ne.s32.totalorder %s171, %s172
    %p186 = scmp.eq.s32.totalorder %s18, 1
    %p187 = por %p185, %p186
    %p189 = scmp.ne.s32.totalorder %s172, %s188
    %p190 = scmp.eq.s32.totalorder %s18, 0
    %p191 = por %p189, %p190
    %p192 = scmp.le.s32.totalorder 1, %s12
    %p193 = scmp.lt.s32.totalorder %s12, 3
    %p194 = pnand %p192, %p193
    %p195 = pneg %p194
    // Predicated region
    $region9: #{simple_cnn_forward.5} parent=5 // pred_check
      _
    $region10: #{simple_cnn_forward.5} parent=5 // pred_check_branch
      %197 = sbr.rel (%p194) target = $region12
    $region11: #{simple_cnn_forward.5} parent=5 // pred_region
      %s198 = ssub.s32 %s12, 1
      // Predicated region
      $region13: #{simple_cnn_forward.5} parent=11 // pred_check
        %p199 = pneg %p137
      $region14: #{simple_cnn_forward.5} parent=11 // pred_check_branch
        %201 = sbr.rel (%p199) target = $region16
      $region15: #{simple_cnn_forward.5} parent=11 // pred_region
        _
      $region16: #{simple_cnn_forward.5} parent=11 // pred_fallthru
        _
      // Predicated region
      $region17: #{simple_cnn_forward.5} parent=11 // pred_check
        %p202 = pneg %p158
      $region18: #{simple_cnn_forward.5} parent=11 // pred_check_branch
        %204 = sbr.rel (%p202) target = $region20
      $region19: #{simple_cnn_forward.5} parent=11 // pred_region
        _
      $region20: #{simple_cnn_forward.5} parent=11 // pred_fallthru
        _
    $region12: #{simple_cnn_forward.5} parent=5 // pred_fallthru
      _
    %p205 = scmp.lt.s32.totalorder %s12, 2
    // Predicated region
    $region21: #{simple_cnn_forward.5} parent=5 // pred_check
      %p206 = pneg %p205
    $region22: #{simple_cnn_forward.5} parent=5 // pred_check_branch
      %208 = sbr.rel (%p206) target = $region24
    $region23: #{simple_cnn_forward.5} parent=5 // pred_region
      // Predicated region
      $region25: #{simple_cnn_forward.5} parent=23 // pred_check
        %p209 = pneg %p32
      $region26: #{simple_cnn_forward.5} parent=23 // pred_check_branch
        %211 = sbr.rel (%p209) target = $region28
      $region27: #{simple_cnn_forward.5} parent=23 // pred_region
        %s212 = smul.u32 8, %s12
        %p213 = scmp.lt.s32.totalorder %s212, 15
        %s214 = scalar_select %p213, %s212, 15
        %s215 = smul.addr %s214, 2
        %s216 = smul.addr %s215, 4
        %s217 = scalar_lea.vmem %s0, %s216
        %s218 = smul.u32 8, %s12
      $region28: #{simple_cnn_forward.5} parent=23 // pred_fallthru
        _
      // Predicated region
      $region29: #{simple_cnn_forward.5} parent=23 // pred_check
        %p219 = pneg %p58
      $region30: #{simple_cnn_forward.5} parent=23 // pred_check_branch
        %221 = sbr.rel (%p219) target = $region32
      $region31: #{simple_cnn_forward.5} parent=23 // pred_region
        %s222 = smul.u32 8, %s12
        %p223 = scmp.lt.s32.totalorder %s222, 15
        %s224 = scalar_select %p223, %s222, 15
        %s225 = smul.addr %s224, 2
        %s226 = smul.addr %s225, 4
        %s227 = scalar_lea.vmem %s1, %s226
        %s228 = smul.u32 8, %s12
      $region32: #{simple_cnn_forward.5} parent=23 // pred_fallthru
        _
      // Predicated region
      $region33: #{simple_cnn_forward.5} parent=23 // pred_check
        %p229 = pneg %p84
      $region34: #{simple_cnn_forward.5} parent=23 // pred_check_branch
        %231 = sbr.rel (%p229) target = $region36
      $region35: #{simple_cnn_forward.5} parent=23 // pred_region
        %s232 = smul.u32 8, %s12
        %p233 = scmp.lt.s32.totalorder %s232, 15
        %s234 = scalar_select %p233, %s232, 15
        %s235 = smul.addr %s234, 2
        %s236 = smul.addr %s235, 4
        %s237 = scalar_lea.vmem %s2, %s236
        %s238 = smul.u32 8, %s12
      $region36: #{simple_cnn_forward.5} parent=23 // pred_fallthru
        _
      // Predicated region
      $region37: #{simple_cnn_forward.5} parent=23 // pred_check
        %p239 = pneg %p110
      $region38: #{simple_cnn_forward.5} parent=23 // pred_check_branch
        %241 = sbr.rel (%p239) target = $region40
      $region39: #{simple_cnn_forward.5} parent=23 // pred_region
        %s242 = smul.u32 8, %s12
        %p243 = scmp.lt.s32.totalorder %s242, 15
        %s244 = scalar_select %p243, %s242, 15
        %s245 = smul.addr %s244, 2
        %s246 = smul.addr %s245, 4
        %s247 = scalar_lea.vmem %s3, %s246
        %s248 = smul.u32 8, %s12
      $region40: #{simple_cnn_forward.5} parent=23 // pred_fallthru
        _
    $region24: #{simple_cnn_forward.5} parent=5 // pred_fallthru
      _
    %p249 = scmp.le.s32.totalorder 1, %s12
    %p250 = scmp.lt.s32.totalorder %s12, 3
    %p251 = pnand %p249, %p250
    %p252 = pneg %p251
    // Predicated region
    $region41: #{simple_cnn_forward.5} parent=5 // pred_check
      _
    $region42: #{simple_cnn_forward.5} parent=5 // pred_check_branch
      %254 = sbr.rel (%p251) target = $region44
    $region43: #{simple_cnn_forward.5} parent=5 // pred_region
      %s255 = ssub.s32 %s12, 1
      %s256 = smul.u32 8, %s17
      %p257 = scmp.lt.s32.totalorder %s256, 15
      %s258 = scalar_select %p257, %s256, 15
      %s259 = smul.addr %s258, 2
      %s260 = smul.addr %s259, 4
      %s261 = scalar_lea.vmem %s0, %s260
      %p262 = pneg %p38
      %p263 = pneg %p35
      %s264 = smul.u32 8, %s17
      %p265 = scmp.lt.s32.totalorder %s264, 15
      %s266 = scalar_select %p265, %s264, 15
      %s267 = smul.addr %s266, 2
      %s268 = smul.addr %s267, 4
      %s269 = scalar_lea.vmem %s1, %s268
      %p270 = pneg %p64
      %p271 = pneg %p61
      %s272 = smul.u32 8, %s17
      %p273 = scmp.lt.s32.totalorder %s272, 15
      %s274 = scalar_select %p273, %s272, 15
      %s275 = smul.addr %s274, 2
      %s276 = smul.addr %s275, 4
      %s277 = scalar_lea.vmem %s2, %s276
      %p278 = pneg %p90
      %p279 = pneg %p87
      %s280 = smul.u32 8, %s17
      %p281 = scmp.lt.s32.totalorder %s280, 15
      %s282 = scalar_select %p281, %s280, 15
      %s283 = smul.addr %s282, 2
      %s284 = smul.addr %s283, 4
      %s285 = scalar_lea.vmem %s3, %s284
      %p286 = pneg %p116
      %p287 = pneg %p113
      %p288 = pneg %p137
      %p289 = pneg %p134
      %p290 = pneg %p158
      %p291 = pneg %p155
      %p292 = pneg %p184
      %p293 = pneg %p181
      %s294 = smul.u32 8, %s17
      %p295 = scmp.lt.s32.totalorder %s294, 15
      %s296 = scalar_select %p295, %s294, 15
      %s297 = smul.addr %s296, 4
      %s298 = scalar_lea.vmem %s6, %s297
      %s299 = smul.u32 8, %s17
      %p300 = scmp.lt.s32.totalorder %s299, 15
      %s301 = scalar_select %p300, %s299, 15
      %s302 = smul.addr %s301, 2
      %s303 = smul.addr %s302, 4
      %s304 = scalar_lea.vmem %s0, %s303
      %s305 = smul.u32 8, %s17
      %s306 = smul.u32 8, %s17
      %p307 = scmp.lt.s32.totalorder %s306, 15
      %s308 = scalar_select %p307, %s306, 15
      %s309 = smul.addr %s308, 2
      %s310 = smul.addr %s309, 4
      %s311 = scalar_lea.vmem %s1, %s310
      %s312 = smul.u32 8, %s17
      %s313 = smul.u32 8, %s17
      %p314 = scmp.lt.s32.totalorder %s313, 15
      %s315 = scalar_select %p314, %s313, 15
      %s316 = smul.addr %s315, 2
      %s317 = smul.addr %s316, 4
      %s318 = scalar_lea.vmem %s2, %s317
      %s319 = smul.u32 8, %s17
      %s320 = smul.u32 8, %s17
      %p321 = scmp.lt.s32.totalorder %s320, 15
      %s322 = scalar_select %p321, %s320, 15
      %s323 = smul.addr %s322, 2
      %s324 = smul.addr %s323, 4
      %s325 = scalar_lea.vmem %s3, %s324
      %s326 = smul.u32 8, %s17
      %s327 = smul.u32 8, %s17
      %p328 = scmp.lt.s32.totalorder %s327, 15
      %s329 = scalar_select %p328, %s327, 15
      %s330 = smul.addr %s329, 4
      %s331 = scalar_lea.vmem %s6, %s330
      %s332 = smul.u32 8, %s17
      %v334 = vld [vmem:[%s4] sm:$0xf]
      %v335 = vld [vmem:[%s4 + $0x4] sm:$0xf]
      %v336 = vld [vmem:[%s4 + $0x8] sm:$0xf]
      %v337 = vld [vmem:[%s4 + $0xc] sm:$0xf]
      %v338 = vld [vmem:[%s4 + $0x10] sm:$0xf]
      %v339 = vld [vmem:[%s4 + $0x14] sm:$0xf]
      %v340 = vld [vmem:[%s4 + $0x18] sm:$0xf]
      %v341 = vld [vmem:[%s4 + $0x1c] sm:$0xf]
      %v342 = vld [vmem:[%s4 + $0x20] sm:$0xf]
      %v343 = vld [vmem:[%s4 + $0x24] sm:$0xf]
      %v344 = vld [vmem:[%s4 + $0x28] sm:$0xf]
      %v345 = vld [vmem:[%s4 + $0x2c] sm:$0xf]
      %v346 = vld [vmem:[%s4 + $0x30] sm:$0xf]
      %v347 = vld [vmem:[%s4 + $0x34] sm:$0xf]
      %v348 = vld [vmem:[%s4 + $0x38] sm:$0xf]
      %v349 = vld [vmem:[%s4 + $0x3c] sm:$0xf]
      %v350 = vld [vmem:[%s4 + $0x40] sm:$0xf]
      %v351 = vld [vmem:[%s4 + $0x44] sm:$0xf]
      %v352 = vld [vmem:[%s304] sm:$0xff]
      %v353 = vld [vmem:[%s304 + $0x8] sm:$0xff]
      %v354 = vld [vmem:[%s304 + $0x10] sm:$0xff]
      %v355 = vld [vmem:[%s304 + $0x18] sm:$0xff]
      %v356 = vld [vmem:[%s304 + $0x20] sm:$0xff]
      %v357 = vld [vmem:[%s304 + $0x28] sm:$0xff]
      %v358 = vld [vmem:[%s304 + $0x30] sm:$0xff]
      %v359 = vld [vmem:[%s304 + $0x38] sm:$0xff]
      %v368 = vunpack.c.l.b16 %v352
      %v369 = vunpack.c.h.b16 %v352
      %v370 = vunpack.c.l.b16 %v353
      %v371 = vunpack.c.h.b16 %v353
      %v372 = vunpack.c.l.b16 %v354
      %v373 = vunpack.c.h.b16 %v354
      %v374 = vunpack.c.l.b16 %v355
      %v375 = vunpack.c.h.b16 %v355
      %v376 = vunpack.c.l.b16 %v356
      %v377 = vunpack.c.h.b16 %v356
      %v378 = vunpack.c.l.b16 %v357
      %v379 = vunpack.c.h.b16 %v357
      %v380 = vunpack.c.l.b16 %v358
      %v381 = vunpack.c.h.b16 %v358
      %v382 = vunpack.c.l.b16 %v359
      %v383 = vunpack.c.h.b16 %v359
      %v384 = vpack.c.b16 %v370, %v368
      %v385 = vpack.c.b16 %v371, %v369
      %v386 = vpack.c.b16 %v374, %v372
      %v387 = vpack.c.b16 %v375, %v373
      %v388 = vpack.c.b16 %v378, %v376
      %v389 = vpack.c.b16 %v379, %v377
      %v390 = vpack.c.b16 %v382, %v380
      %v391 = vpack.c.b16 %v383, %v381
      %v414 = vunpack.c.l.b16 %v334
      %v415 = vunpack.c.l.b16 %v335
      %v416 = vunpack.c.l.b16 %v336
      %v417 = vunpack.c.l.b16 %v337
      %v418 = vunpack.c.l.b16 %v338
      %v419 = vunpack.c.l.b16 %v339
      %v420 = vunpack.c.l.b16 %v340
      %v421 = vunpack.c.l.b16 %v341
      %v422 = vunpack.c.l.b16 %v342
      %v423 = vunpack.c.l.b16 %v343
      %v424 = vunpack.c.l.b16 %v344
      %v425 = vunpack.c.l.b16 %v345
      %v426 = vunpack.c.l.b16 %v346
      %v427 = vunpack.c.l.b16 %v347
      %v428 = vunpack.c.l.b16 %v348
      %v429 = vunpack.c.l.b16 %v349
      %v430 = vunpack.c.l.b16 %v350
      %v431 = vunpack.c.l.b16 %v351
      %v432 = vpack.c.b16 %v415, %v414
      %v433 = vpack.c.b16 %v417, %v416
      %v434 = vpack.c.b16 %v419, %v418
      %v435 = vpack.c.b16 %v421, %v420
      %v436 = vpack.c.b16 %v423, %v422
      %v437 = vpack.c.b16 %v425, %v424
      %v438 = vpack.c.b16 %v427, %v426
      %v439 = vpack.c.b16 %v429, %v428
      %v440 = vpack.c.b16 %v431, %v430
      %vm450 = vcmask 130048
      %v452 = vsel %vm450, %v385, 0
      %v455 = vsel %vm450, %v387, 0
      %v458 = vsel %vm450, %v389, 0
      %v461 = vsel %vm450, %v391, 0
      %463 = vmatpush.bf16.msra.mxu0 %v439
      %464 = vmatpush.bf16.msra.mxu0 %v438
      %465 = vmatpush.bf16.msra.mxu0 %v437
      %466 = vmatpush.bf16.msra.mxu0 %v436
      %467 = vmatpush.bf16.msra.mxu0 %v435
      %468 = vmatpush.bf16.msra.mxu0 %v434
      %469 = vmatpush.bf16.msra.mxu0 %v433
      %470 = vmatpush.bf16.msra.mxu0 %v432
      %471 = vmatmul.bf16.gmra.mxu0 %v384
      %v472 = vpop.f32.mrf.mxu0
      %v473 = vadd.f32 0.0, %v472
      %v474 = vpop.f32.mrf.mxu0
      %v475 = vadd.f32 0.0, %v474
      %476 = vmatmul.bf16.gmra.mxu0 %v386
      %v477 = vpop.f32.mrf.mxu0
      %v478 = vadd.f32 0.0, %v477
      %v479 = vpop.f32.mrf.mxu0
      %v480 = vadd.f32 0.0, %v479
      %481 = vmatmul.bf16.gmra.mxu0 %v388
      %v482 = vpop.f32.mrf.mxu0
      %v483 = vadd.f32 0.0, %v482
      %v484 = vpop.f32.mrf.mxu0
      %v485 = vadd.f32 0.0, %v484
      %486 = vmatmul.bf16.gmra.mxu0 %v390
      %v487 = vpop.f32.mrf.mxu0
      %v488 = vadd.f32 0.0, %v487
      %v489 = vpop.f32.mrf.mxu0
      %v490 = vadd.f32 0.0, %v489
      %491 = vdwg.mxu0
      %492 = vmatpush.bf16.msra.mxu0 0
      %493 = vmatpush.bf16.msra.mxu0 0
      %494 = vmatpush.bf16.msra.mxu0 0
      %495 = vmatpush.bf16.msra.mxu0 0
      %496 = vmatpush.bf16.msra.mxu0 0
      %497 = vmatpush.bf16.msra.mxu0 0
      %498 = vmatpush.bf16.msra.mxu0 0
      %499 = vmatpush.bf16.msra.mxu0 %v440
      %500 = vmatmul.bf16.gmra.mxu0 %v452
      %v501 = vpop.f32.mrf.mxu0
      %v502 = vadd.f32 %v473, %v501
      %v503 = vpop.f32.mrf.mxu0
      %v504 = vadd.f32 %v475, %v503
      %505 = vmatmul.bf16.gmra.mxu0 %v455
      %v506 = vpop.f32.mrf.mxu0
      %v507 = vadd.f32 %v478, %v506
      %v508 = vpop.f32.mrf.mxu0
      %v509 = vadd.f32 %v480, %v508
      %510 = vmatmul.bf16.gmra.mxu0 %v458
      %v511 = vpop.f32.mrf.mxu0
      %v512 = vadd.f32 %v483, %v511
      %v513 = vpop.f32.mrf.mxu0
      %v514 = vadd.f32 %v485, %v513
      %515 = vmatmul.bf16.gmra.mxu0 %v461
      %v516 = vpop.f32.mrf.mxu0
      %v517 = vadd.f32 %v488, %v516
      %v518 = vpop.f32.mrf.mxu0
      %v519 = vadd.f32 %v490, %v518
      %520 = vdwg.mxu0
      %v521 = vld [vmem:[%s311] sm:$0xff]
      %v522 = vld [vmem:[%s311 + $0x8] sm:$0xff]
      %v523 = vld [vmem:[%s311 + $0x10] sm:$0xff]
      %v524 = vld [vmem:[%s311 + $0x18] sm:$0xff]
      %v525 = vld [vmem:[%s311 + $0x20] sm:$0xff]
      %v526 = vld [vmem:[%s311 + $0x28] sm:$0xff]
      %v527 = vld [vmem:[%s311 + $0x30] sm:$0xff]
      %v528 = vld [vmem:[%s311 + $0x38] sm:$0xff]
      %v537 = vunpack.c.l.b16 %v521
      %v538 = vunpack.c.h.b16 %v521
      %v539 = vunpack.c.l.b16 %v522
      %v540 = vunpack.c.h.b16 %v522
      %v541 = vunpack.c.l.b16 %v523
      %v542 = vunpack.c.h.b16 %v523
      %v543 = vunpack.c.l.b16 %v524
      %v544 = vunpack.c.h.b16 %v524
      %v545 = vunpack.c.l.b16 %v525
      %v546 = vunpack.c.h.b16 %v525
      %v547 = vunpack.c.l.b16 %v526
      %v548 = vunpack.c.h.b16 %v526
      %v549 = vunpack.c.l.b16 %v527
      %v550 = vunpack.c.h.b16 %v527
      %v551 = vunpack.c.l.b16 %v528
      %v552 = vunpack.c.h.b16 %v528
      %v553 = vpack.c.b16 %v539, %v537
      %v554 = vpack.c.b16 %v540, %v538
      %v555 = vpack.c.b16 %v543, %v541
      %v556 = vpack.c.b16 %v544, %v542
      %v557 = vpack.c.b16 %v547, %v545
      %v558 = vpack.c.b16 %v548, %v546
      %v559 = vpack.c.b16 %v551, %v549
      %v560 = vpack.c.b16 %v552, %v550
      %v566 = vsel %vm450, %v554, 0
      %v569 = vsel %vm450, %v556, 0
      %v572 = vsel %vm450, %v558, 0
      %v575 = vsel %vm450, %v560, 0
      %577 = vmatpush.bf16.msra.mxu0 %v439
      %578 = vmatpush.bf16.msra.mxu0 %v438
      %579 = vmatpush.bf16.msra.mxu0 %v437
      %580 = vmatpush.bf16.msra.mxu0 %v436
      %581 = vmatpush.bf16.msra.mxu0 %v435
      %582 = vmatpush.bf16.msra.mxu0 %v434
      %583 = vmatpush.bf16.msra.mxu0 %v433
      %584 = vmatpush.bf16.msra.mxu0 %v432
      %585 = vmatmul.bf16.gmra.mxu0 %v553
      %v586 = vpop.f32.mrf.mxu0
      %v587 = vadd.f32 0.0, %v586
      %v588 = vpop.f32.mrf.mxu0
      %v589 = vadd.f32 0.0, %v588
      %590 = vmatmul.bf16.gmra.mxu0 %v555
      %v591 = vpop.f32.mrf.mxu0
      %v592 = vadd.f32 0.0, %v591
      %v593 = vpop.f32.mrf.mxu0
      %v594 = vadd.f32 0.0, %v593
      %595 = vmatmul.bf16.gmra.mxu0 %v557
      %v596 = vpop.f32.mrf.mxu0
      %v597 = vadd.f32 0.0, %v596
      %v598 = vpop.f32.mrf.mxu0
      %v599 = vadd.f32 0.0, %v598
      %600 = vmatmul.bf16.gmra.mxu0 %v559
      %v601 = vpop.f32.mrf.mxu0
      %v602 = vadd.f32 0.0, %v601
      %v603 = vpop.f32.mrf.mxu0
      %v604 = vadd.f32 0.0, %v603
      %605 = vdwg.mxu0
      %606 = vmatpush.bf16.msra.mxu0 0
      %607 = vmatpush.bf16.msra.mxu0 0
      %608 = vmatpush.bf16.msra.mxu0 0
      %609 = vmatpush.bf16.msra.mxu0 0
      %610 = vmatpush.bf16.msra.mxu0 0
      %611 = vmatpush.bf16.msra.mxu0 0
      %612 = vmatpush.bf16.msra.mxu0 0
      %613 = vmatpush.bf16.msra.mxu0 %v440
      %614 = vmatmul.bf16.gmra.mxu0 %v566
      %v615 = vpop.f32.mrf.mxu0
      %v616 = vadd.f32 %v587, %v615
      %v617 = vpop.f32.mrf.mxu0
      %v618 = vadd.f32 %v589, %v617
      %619 = vmatmul.bf16.gmra.mxu0 %v569
      %v620 = vpop.f32.mrf.mxu0
      %v621 = vadd.f32 %v592, %v620
      %v622 = vpop.f32.mrf.mxu0
      %v623 = vadd.f32 %v594, %v622
      %624 = vmatmul.bf16.gmra.mxu0 %v572
      %v625 = vpop.f32.mrf.mxu0
      %v626 = vadd.f32 %v597, %v625
      %v627 = vpop.f32.mrf.mxu0
      %v628 = vadd.f32 %v599, %v627
      %629 = vmatmul.bf16.gmra.mxu0 %v575
      %v630 = vpop.f32.mrf.mxu0
      %v631 = vadd.f32 %v602, %v630
      %v632 = vpop.f32.mrf.mxu0
      %v633 = vadd.f32 %v604, %v632
      %634 = vdwg.mxu0
      %v635 = vld [vmem:[%s318] sm:$0xff]
      %v636 = vld [vmem:[%s318 + $0x8] sm:$0xff]
      %v637 = vld [vmem:[%s318 + $0x10] sm:$0xff]
      %v638 = vld [vmem:[%s318 + $0x18] sm:$0xff]
      %v639 = vld [vmem:[%s318 + $0x20] sm:$0xff]
      %v640 = vld [vmem:[%s318 + $0x28] sm:$0xff]
      %v641 = vld [vmem:[%s318 + $0x30] sm:$0xff]
      %v642 = vld [vmem:[%s318 + $0x38] sm:$0xff]
      %v651 = vunpack.c.l.b16 %v635
      %v652 = vunpack.c.h.b16 %v635
      %v653 = vunpack.c.l.b16 %v636
      %v654 = vunpack.c.h.b16 %v636
      %v655 = vunpack.c.l.b16 %v637
      %v656 = vunpack.c.h.b16 %v637
      %v657 = vunpack.c.l.b16 %v638
      %v658 = vunpack.c.h.b16 %v638
      %v659 = vunpack.c.l.b16 %v639
      %v660 = vunpack.c.h.b16 %v639
      %v661 = vunpack.c.l.b16 %v640
      %v662 = vunpack.c.h.b16 %v640
      %v663 = vunpack.c.l.b16 %v641
      %v664 = vunpack.c.h.b16 %v641
      %v665 = vunpack.c.l.b16 %v642
      %v666 = vunpack.c.h.b16 %v642
      %v667 = vpack.c.b16 %v653, %v651
      %v668 = vpack.c.b16 %v654, %v652
      %v669 = vpack.c.b16 %v657, %v655
      %v670 = vpack.c.b16 %v658, %v656
      %v671 = vpack.c.b16 %v661, %v659
      %v672 = vpack.c.b16 %v662, %v660
      %v673 = vpack.c.b16 %v665, %v663
      %v674 = vpack.c.b16 %v666, %v664
      %v680 = vsel %vm450, %v668, 0
      %v683 = vsel %vm450, %v670, 0
      %v686 = vsel %vm450, %v672, 0
      %v689 = vsel %vm450, %v674, 0
      %691 = vmatpush.bf16.msra.mxu0 %v439
      %692 = vmatpush.bf16.msra.mxu0 %v438
      %693 = vmatpush.bf16.msra.mxu0 %v437
      %694 = vmatpush.bf16.msra.mxu0 %v436
      %695 = vmatpush.bf16.msra.mxu0 %v435
      %696 = vmatpush.bf16.msra.mxu0 %v434
      %697 = vmatpush.bf16.msra.mxu0 %v433
      %698 = vmatpush.bf16.msra.mxu0 %v432
      %699 = vmatmul.bf16.gmra.mxu0 %v667
      %v700 = vpop.f32.mrf.mxu0
      %v701 = vadd.f32 0.0, %v700
      %v702 = vpop.f32.mrf.mxu0
      %v703 = vadd.f32 0.0, %v702
      %704 = vmatmul.bf16.gmra.mxu0 %v669
      %v705 = vpop.f32.mrf.mxu0
      %v706 = vadd.f32 0.0, %v705
      %v707 = vpop.f32.mrf.mxu0
      %v708 = vadd.f32 0.0, %v707
      %709 = vmatmul.bf16.gmra.mxu0 %v671
      %v710 = vpop.f32.mrf.mxu0
      %v711 = vadd.f32 0.0, %v710
      %v712 = vpop.f32.mrf.mxu0
      %v713 = vadd.f32 0.0, %v712
      %714 = vmatmul.bf16.gmra.mxu0 %v673
      %v715 = vpop.f32.mrf.mxu0
      %v716 = vadd.f32 0.0, %v715
      %v717 = vpop.f32.mrf.mxu0
      %v718 = vadd.f32 0.0, %v717
      %719 = vdwg.mxu0
      %720 = vmatpush.bf16.msra.mxu0 0
      %721 = vmatpush.bf16.msra.mxu0 0
      %722 = vmatpush.bf16.msra.mxu0 0
      %723 = vmatpush.bf16.msra.mxu0 0
      %724 = vmatpush.bf16.msra.mxu0 0
      %725 = vmatpush.bf16.msra.mxu0 0
      %726 = vmatpush.bf16.msra.mxu0 0
      %727 = vmatpush.bf16.msra.mxu0 %v440
      %728 = vmatmul.bf16.gmra.mxu0 %v680
      %v729 = vpop.f32.mrf.mxu0
      %v730 = vadd.f32 %v701, %v729
      %v731 = vpop.f32.mrf.mxu0
      %v732 = vadd.f32 %v703, %v731
      %733 = vmatmul.bf16.gmra.mxu0 %v683
      %v734 = vpop.f32.mrf.mxu0
      %v735 = vadd.f32 %v706, %v734
      %v736 = vpop.f32.mrf.mxu0
      %v737 = vadd.f32 %v708, %v736
      %738 = vmatmul.bf16.gmra.mxu0 %v686
      %v739 = vpop.f32.mrf.mxu0
      %v740 = vadd.f32 %v711, %v739
      %v741 = vpop.f32.mrf.mxu0
      %v742 = vadd.f32 %v713, %v741
      %743 = vmatmul.bf16.gmra.mxu0 %v689
      %v744 = vpop.f32.mrf.mxu0
      %v745 = vadd.f32 %v716, %v744
      %v746 = vpop.f32.mrf.mxu0
      %v747 = vadd.f32 %v718, %v746
      %748 = vdwg.mxu0
      %v749 = vld [vmem:[%s325] sm:$0xff]
      %v750 = vld [vmem:[%s325 + $0x8] sm:$0xff]
      %v751 = vld [vmem:[%s325 + $0x10] sm:$0xff]
      %v752 = vld [vmem:[%s325 + $0x18] sm:$0xff]
      %v753 = vld [vmem:[%s325 + $0x20] sm:$0xff]
      %v754 = vld [vmem:[%s325 + $0x28] sm:$0xff]
      %v755 = vld [vmem:[%s325 + $0x30] sm:$0xff]
      %v756 = vld [vmem:[%s325 + $0x38] sm:$0xff]
      %v765 = vunpack.c.l.b16 %v749
      %v766 = vunpack.c.h.b16 %v749
      %v767 = vunpack.c.l.b16 %v750
      %v768 = vunpack.c.h.b16 %v750
      %v769 = vunpack.c.l.b16 %v751
      %v770 = vunpack.c.h.b16 %v751
      %v771 = vunpack.c.l.b16 %v752
      %v772 = vunpack.c.h.b16 %v752
      %v773 = vunpack.c.l.b16 %v753
      %v774 = vunpack.c.h.b16 %v753
      %v775 = vunpack.c.l.b16 %v754
      %v776 = vunpack.c.h.b16 %v754
      %v777 = vunpack.c.l.b16 %v755
      %v778 = vunpack.c.h.b16 %v755
      %v779 = vunpack.c.l.b16 %v756
      %v780 = vunpack.c.h.b16 %v756
      %v781 = vpack.c.b16 %v767, %v765
      %v782 = vpack.c.b16 %v768, %v766
      %v783 = vpack.c.b16 %v771, %v769
      %v784 = vpack.c.b16 %v772, %v770
      %v785 = vpack.c.b16 %v775, %v773
      %v786 = vpack.c.b16 %v776, %v774
      %v787 = vpack.c.b16 %v779, %v777
      %v788 = vpack.c.b16 %v780, %v778
      %v794 = vsel %vm450, %v782, 0
      %v797 = vsel %vm450, %v784, 0
      %v800 = vsel %vm450, %v786, 0
      %v803 = vsel %vm450, %v788, 0
      %805 = vmatpush.bf16.msra.mxu0 %v439
      %806 = vmatpush.bf16.msra.mxu0 %v438
      %807 = vmatpush.bf16.msra.mxu0 %v437
      %808 = vmatpush.bf16.msra.mxu0 %v436
      %809 = vmatpush.bf16.msra.mxu0 %v435
      %810 = vmatpush.bf16.msra.mxu0 %v434
      %811 = vmatpush.bf16.msra.mxu0 %v433
      %812 = vmatpush.bf16.msra.mxu0 %v432
      %813 = vmatmul.bf16.gmra.mxu0 %v781
      %v814 = vpop.f32.mrf.mxu0
      %v815 = vadd.f32 0.0, %v814
      %v816 = vpop.f32.mrf.mxu0
      %v817 = vadd.f32 0.0, %v816
      %818 = vmatmul.bf16.gmra.mxu0 %v783
      %v819 = vpop.f32.mrf.mxu0
      %v820 = vadd.f32 0.0, %v819
      %v821 = vpop.f32.mrf.mxu0
      %v822 = vadd.f32 0.0, %v821
      %823 = vmatmul.bf16.gmra.mxu0 %v785
      %v824 = vpop.f32.mrf.mxu0
      %v825 = vadd.f32 0.0, %v824
      %v826 = vpop.f32.mrf.mxu0
      %v827 = vadd.f32 0.0, %v826
      %828 = vmatmul.bf16.gmra.mxu0 %v787
      %v829 = vpop.f32.mrf.mxu0
      %v830 = vadd.f32 0.0, %v829
      %v831 = vpop.f32.mrf.mxu0
      %v832 = vadd.f32 0.0, %v831
      %833 = vdwg.mxu0
      %834 = vmatpush.bf16.msra.mxu0 0
      %835 = vmatpush.bf16.msra.mxu0 0
      %836 = vmatpush.bf16.msra.mxu0 0
      %837 = vmatpush.bf16.msra.mxu0 0
      %838 = vmatpush.bf16.msra.mxu0 0
      %839 = vmatpush.bf16.msra.mxu0 0
      %840 = vmatpush.bf16.msra.mxu0 0
      %841 = vmatpush.bf16.msra.mxu0 %v440
      %842 = vmatmul.bf16.gmra.mxu0 %v794
      %v843 = vpop.f32.mrf.mxu0
      %v844 = vadd.f32 %v815, %v843
      %v845 = vpop.f32.mrf.mxu0
      %v846 = vadd.f32 %v817, %v845
      %847 = vmatmul.bf16.gmra.mxu0 %v797
      %v848 = vpop.f32.mrf.mxu0
      %v849 = vadd.f32 %v820, %v848
      %v850 = vpop.f32.mrf.mxu0
      %v851 = vadd.f32 %v822, %v850
      %852 = vmatmul.bf16.gmra.mxu0 %v800
      %v853 = vpop.f32.mrf.mxu0
      %v854 = vadd.f32 %v825, %v853
      %v855 = vpop.f32.mrf.mxu0
      %v856 = vadd.f32 %v827, %v855
      %857 = vmatmul.bf16.gmra.mxu0 %v803
      %v858 = vpop.f32.mrf.mxu0
      %v859 = vadd.f32 %v830, %v858
      %v860 = vpop.f32.mrf.mxu0
      %v861 = vadd.f32 %v832, %v860
      %862 = vdwg.mxu0
      %v863 = vmax.f32 %v502, %v616
      %v864 = vmax.f32 %v504, %v618
      %v865 = vmax.f32 %v507, %v621
      %v866 = vmax.f32 %v509, %v623
      %v867 = vmax.f32 %v512, %v626
      %v868 = vmax.f32 %v514, %v628
      %v869 = vmax.f32 %v517, %v631
      %v870 = vmax.f32 %v519, %v633
      %v871 = vmax.f32 %v730, %v844
      %v872 = vmax.f32 %v732, %v846
      %v873 = vmax.f32 %v735, %v849
      %v874 = vmax.f32 %v737, %v851
      %v875 = vmax.f32 %v740, %v854
      %v876 = vmax.f32 %v742, %v856
      %v877 = vmax.f32 %v745, %v859
      %v878 = vmax.f32 %v747, %v861
      %v879 = vmax.f32 %v863, %v871
      %v880 = vmax.f32 %v864, %v872
      %v881 = vmax.f32 %v865, %v873
      %v882 = vmax.f32 %v866, %v874
      %v883 = vmax.f32 %v867, %v875
      %v884 = vmax.f32 %v868, %v876
      %v885 = vmax.f32 %v869, %v877
      %v886 = vmax.f32 %v870, %v878
      %v887 = vld [vmem:[%s5] sm:$0x1]
      %v889 = vperm.slane %v887, 0
      %v891 = vadd.f32 %v879, %v889
      %v892 = vadd.f32 %v880, %v889
      %v893 = vadd.f32 %v881, %v889
      %v894 = vadd.f32 %v882, %v889
      %v895 = vadd.f32 %v883, %v889
      %v896 = vadd.f32 %v884, %v889
      %v897 = vadd.f32 %v885, %v889
      %v898 = vadd.f32 %v886, %v889
      %v899 = vmax.f32 %v891, 0.0
      %v900 = vmax.f32 %v892, 0.0
      %v901 = vmax.f32 %v893, 0.0
      %v902 = vmax.f32 %v894, 0.0
      %v903 = vmax.f32 %v895, 0.0
      %v904 = vmax.f32 %v896, 0.0
      %v905 = vmax.f32 %v897, 0.0
      %v906 = vmax.f32 %v898, 0.0
      %v907 = vpack.c.bf16 %v899, %v899
      %v908 = vpack.c.bf16 %v900, %v900
      %v909 = vpack.c.bf16 %v901, %v901
      %v910 = vpack.c.bf16 %v902, %v902
      %v911 = vpack.c.bf16 %v903, %v903
      %v912 = vpack.c.bf16 %v904, %v904
      %v913 = vpack.c.bf16 %v905, %v905
      %v914 = vpack.c.bf16 %v906, %v906
      %915 = vst [vmem:[%s331] sm:$0xf] %v907
      %916 = vst [vmem:[%s331 + $0x4] sm:$0xf] %v908
      %917 = vst [vmem:[%s331 + $0x8] sm:$0xf] %v909
      %918 = vst [vmem:[%s331 + $0xc] sm:$0xf] %v910
      %919 = vst [vmem:[%s331 + $0x10] sm:$0xf] %v911
      %920 = vst [vmem:[%s331 + $0x14] sm:$0xf] %v912
      %921 = vst [vmem:[%s331 + $0x18] sm:$0xf] %v913
      %922 = vst [vmem:[%s331 + $0x1c] sm:$0xf] %v914
      %s923 = smul.u32 8, %s17
      %p924 = scmp.lt.s32.totalorder %s923, 15
      %s925 = scalar_select %p924, %s923, 15
      %s926 = smul.addr %s925, 4
      %s927 = scalar_lea.vmem %s6, %s926
      // Predicated region
      $region45: #{simple_cnn_forward.5} parent=43 // pred_check
        %p928 = pneg %p181
      $region46: #{simple_cnn_forward.5} parent=43 // pred_check_branch
        %930 = sbr.rel (%p928) target = $region48
      $region47: #{simple_cnn_forward.5} parent=43 // pred_region
        %s931 = smul.u32 8, %s17
      $region48: #{simple_cnn_forward.5} parent=43 // pred_fallthru
        _
    $region44: #{simple_cnn_forward.5} parent=5 // pred_fallthru
      _
    %p932 = scmp.le.s32.totalorder 2, %s12
    // Predicated region
    $region49: #{simple_cnn_forward.5} parent=5 // pred_check
      %p933 = pneg %p932
    $region50: #{simple_cnn_forward.5} parent=5 // pred_check_branch
      %935 = sbr.rel (%p933) target = $region52
    $region51: #{simple_cnn_forward.5} parent=5 // pred_region
      %s936 = ssub.s32 %s12, 2
      // Predicated region
      $region53: #{simple_cnn_forward.5} parent=51 // pred_check
        %p937 = pneg %p187
      $region54: #{simple_cnn_forward.5} parent=51 // pred_check_branch
        %939 = sbr.rel (%p937) target = $region56
      $region55: #{simple_cnn_forward.5} parent=51 // pred_region
        %s940 = smul.u32 8, %s18
        %p941 = scmp.lt.s32.totalorder %s940, 15
        %s942 = scalar_select %p941, %s940, 15
        %s943 = smul.addr %s942, 4
        %s944 = scalar_lea.vmem %s6, %s943
      $region56: #{simple_cnn_forward.5} parent=51 // pred_fallthru
        _
    $region52: #{simple_cnn_forward.5} parent=5 // pred_fallthru
      _
  $region6: #{simple_cnn_forward.5} parent=0 // loop_footer
    %s16 = sadd.s32 1, %s12
  $region7: #{simple_cnn_forward.5} parent=0 // loop_footer_branch
    %11 = sbr.rel target = $region3
  $region8: #{simple_cnn_forward.5} parent=0 // loop_exit
    _

// kernel: simple_cnn_forward.6
$region0: #{simple_cnn_forward.6}
  #allocation0 [shape = 'u32[]', space=smem, size = 0x4, offset = 0x4, fixed_abs, tag = 'smem constant byte address 0x4 - core index']
  #allocation1 [shape = 'u32[72,128]{1,0:T(1,128)}', space=vmem, size = 0x9000, scoped, tag = 'internal scratch']
  %s0 = inlined_call_operand.vmem [shape: bf16[32,288], index: 0, kind: input, shape index: {}]
  %s1 = inlined_call_operand.vmem [shape: bf16[32,288], index: 1, kind: input, shape index: {}]
  %s2 = inlined_call_operand.vmem [shape: bf16[32,288], index: 2, kind: input, shape index: {}]
  %s3 = inlined_call_operand.vmem [shape: bf16[32,288], index: 3, kind: input, shape index: {}]
  %s4 = inlined_call_operand.vmem [shape: bf16[288,128], index: 4, kind: input, shape index: {}]
  %s5 = inlined_call_operand.vmem [shape: f32[1,128], index: 5, kind: input, shape index: {}]
  %s6 = inlined_call_operand.vmem [shape: bf16[32,128], index: 6, kind: output, shape index: {}]
  %s7 = sld [smem:[#allocation0]]
  $region57: #{simple_cnn_forward.6} parent=0
    _
  %s9 = ssub.s32 1, %s7
  %s10 = scalar_select 0, %s9, %s7
  loop: start=0, step=1, limit=4
  $region2: #{simple_cnn_forward.6} parent=0 // loop_pre_header
    _
  $region3: #{simple_cnn_forward.6} parent=0 // loop_header
    %s12 = sphi 0, %s16
    %p13 = scmp.ge.s32.totalorder %s12, 4
    %s22 = sphi 0, %s24
    %s25 = sphi 0, %s22
    %s26 = sphi 0, %s25
    %s42 = sphi 0, %s26
    %s48 = sphi 0, %s50
    %s51 = sphi 0, %s48
    %s52 = sphi 0, %s51
    %s68 = sphi 0, %s52
    %s74 = sphi 0, %s76
    %s77 = sphi 0, %s74
    %s78 = sphi 0, %s77
    %s94 = sphi 0, %s78
    %s100 = sphi 0, %s102
    %s103 = sphi 0, %s100
    %s104 = sphi 0, %s103
    %s120 = sphi 0, %s104
    %s124 = sphi 0, %s124
    %s126 = sphi 0, %s124
    %s127 = sphi 0, %s126
    %s141 = sphi 0, %s127
    %s145 = sphi 0, %s145
    %s147 = sphi 0, %s145
    %s148 = sphi 0, %s147
    %s162 = sphi 0, %s148
    %s168 = sphi 0, %s170
    %s171 = sphi 0, %s168
    %s172 = sphi 0, %s171
    %s188 = sphi 0, %s172
  $region4: #{simple_cnn_forward.6} parent=0 // loop_header_branch
    %15 = sbr.rel (%p13) target = $region8
  $region5: #{simple_cnn_forward.6} parent=0 // loop_body
    %s17 = ssub.s32 %s12, 1
    %s18 = ssub.s32 %s12, 2
    %s19 = sadd.s32 %s12, 1
    %s20 = ssub.s32 %s12, %s19
    %p21 = scmp.eq.s32.totalorder %s20, 0
    %s23 = sadd.s32 %s22, 1
    %s24 = scalar_select %p21, %s22, %s23
    %p27 = pneg %p21
    %p28 = scmp.eq.s32.totalorder %s12, 1
    %p29 = por %p27, %p28
    %p30 = scmp.ne.s32.totalorder %s22, %s25
    %p31 = scmp.eq.s32.totalorder %s12, 0
    %p32 = por %p30, %p31
    %p33 = scmp.ne.s32.totalorder %s22, %s25
    %p34 = scmp.eq.s32.totalorder %s17, 1
    %p35 = por %p33, %p34
    %p36 = scmp.ne.s32.totalorder %s25, %s26
    %p37 = scmp.eq.s32.totalorder %s17, 0
    %p38 = por %p36, %p37
    %p39 = scmp.ne.s32.totalorder %s25, %s26
    %p40 = scmp.eq.s32.totalorder %s18, 1
    %p41 = por %p39, %p40
    %p43 = scmp.ne.s32.totalorder %s26, %s42
    %p44 = scmp.eq.s32.totalorder %s18, 0
    %p45 = por %p43, %p44
    %s46 = ssub.s32 %s12, %s19
    %p47 = scmp.eq.s32.totalorder %s46, 0
    %s49 = sadd.s32 %s48, 1
    %s50 = scalar_select %p47, %s48, %s49
    %p53 = pneg %p47
    %p54 = scmp.eq.s32.totalorder %s12, 1
    %p55 = por %p53, %p54
    %p56 = scmp.ne.s32.totalorder %s48, %s51
    %p57 = scmp.eq.s32.totalorder %s12, 0
    %p58 = por %p56, %p57
    %p59 = scmp.ne.s32.totalorder %s48, %s51
    %p60 = scmp.eq.s32.totalorder %s17, 1
    %p61 = por %p59, %p60
    %p62 = scmp.ne.s32.totalorder %s51, %s52
    %p63 = scmp.eq.s32.totalorder %s17, 0
    %p64 = por %p62, %p63
    %p65 = scmp.ne.s32.totalorder %s51, %s52
    %p66 = scmp.eq.s32.totalorder %s18, 1
    %p67 = por %p65, %p66
    %p69 = scmp.ne.s32.totalorder %s52, %s68
    %p70 = scmp.eq.s32.totalorder %s18, 0
    %p71 = por %p69, %p70
    %s72 = ssub.s32 %s12, %s19
    %p73 = scmp.eq.s32.totalorder %s72, 0
    %s75 = sadd.s32 %s74, 1
    %s76 = scalar_select %p73, %s74, %s75
    %p79 = pneg %p73
    %p80 = scmp.eq.s32.totalorder %s12, 1
    %p81 = por %p79, %p80
    %p82 = scmp.ne.s32.totalorder %s74, %s77
    %p83 = scmp.eq.s32.totalorder %s12, 0
    %p84 = por %p82, %p83
    %p85 = scmp.ne.s32.totalorder %s74, %s77
    %p86 = scmp.eq.s32.totalorder %s17, 1
    %p87 = por %p85, %p86
    %p88 = scmp.ne.s32.totalorder %s77, %s78
    %p89 = scmp.eq.s32.totalorder %s17, 0
    %p90 = por %p88, %p89
    %p91 = scmp.ne.s32.totalorder %s77, %s78
    %p92 = scmp.eq.s32.totalorder %s18, 1
    %p93 = por %p91, %p92
    %p95 = scmp.ne.s32.totalorder %s78, %s94
    %p96 = scmp.eq.s32.totalorder %s18, 0
    %p97 = por %p95, %p96
    %s98 = ssub.s32 %s12, %s19
    %p99 = scmp.eq.s32.totalorder %s98, 0
    %s101 = sadd.s32 %s100, 1
    %s102 = scalar_select %p99, %s100, %s101
    %p105 = pneg %p99
    %p106 = scmp.eq.s32.totalorder %s12, 1
    %p107 = por %p105, %p106
    %p108 = scmp.ne.s32.totalorder %s100, %s103
    %p109 = scmp.eq.s32.totalorder %s12, 0
    %p110 = por %p108, %p109
    %p111 = scmp.ne.s32.totalorder %s100, %s103
    %p112 = scmp.eq.s32.totalorder %s17, 1
    %p113 = por %p111, %p112
    %p114 = scmp.ne.s32.totalorder %s103, %s104
    %p115 = scmp.eq.s32.totalorder %s17, 0
    %p116 = por %p114, %p115
    %p117 = scmp.ne.s32.totalorder %s103, %s104
    %p118 = scmp.eq.s32.totalorder %s18, 1
    %p119 = por %p117, %p118
    %p121 = scmp.ne.s32.totalorder %s104, %s120
    %p122 = scmp.eq.s32.totalorder %s18, 0
    %p123 = por %p121, %p122
    %s125 = sadd.s32 %s124, 1
    %p128 = scmp.eq.s32.totalorder %s12, 1
    %p129 = scmp.ne.s32.totalorder %s124, %s126
    %p130 = scmp.eq.s32.totalorder %s12, 0
    %p131 = por %p129, %p130
    %p132 = scmp.ne.s32.totalorder %s124, %s126
    %p133 = scmp.eq.s32.totalorder %s17, 1
    %p134 = por %p132, %p133
    %p135 = scmp.ne.s32.totalorder %s126, %s127
    %p136 = scmp.eq.s32.totalorder %s17, 0
    %p137 = por %p135, %p136
    %p138 = scmp.ne.s32.totalorder %s126, %s127
    %p139 = scmp.eq.s32.totalorder %s18, 1
    %p140 = por %p138, %p139
    %p142 = scmp.ne.s32.totalorder %s127, %s141
    %p143 = scmp.eq.s32.totalorder %s18, 0
    %p144 = por %p142, %p143
    %s146 = sadd.s32 %s145, 1
    %p149 = scmp.eq.s32.totalorder %s12, 1
    %p150 = scmp.ne.s32.totalorder %s145, %s147
    %p151 = scmp.eq.s32.totalorder %s12, 0
    %p152 = por %p150, %p151
    %p153 = scmp.ne.s32.totalorder %s145, %s147
    %p154 = scmp.eq.s32.totalorder %s17, 1
    %p155 = por %p153, %p154
    %p156 = scmp.ne.s32.totalorder %s147, %s148
    %p157 = scmp.eq.s32.totalorder %s17, 0
    %p158 = por %p156, %p157
    %p159 = scmp.ne.s32.totalorder %s147, %s148
    %p160 = scmp.eq.s32.totalorder %s18, 1
    %p161 = por %p159, %p160
    %p163 = scmp.ne.s32.totalorder %s148, %s162
    %p164 = scmp.eq.s32.totalorder %s18, 0
    %p165 = por %p163, %p164
    %s166 = ssub.s32 %s12, %s19
    %p167 = scmp.eq.s32.totalorder %s166, 0
    %s169 = sadd.s32 %s168, 1
    %s170 = scalar_select %p167, %s168, %s169
    %p173 = pneg %p167
    %p174 = scmp.eq.s32.totalorder %s12, 1
    %p175 = por %p173, %p174
    %p176 = scmp.ne.s32.totalorder %s168, %s171
    %p177 = scmp.eq.s32.totalorder %s12, 0
    %p178 = por %p176, %p177
    %p179 = scmp.ne.s32.totalorder %s168, %s171
    %p180 = scmp.eq.s32.totalorder %s17, 1
    %p181 = por %p179, %p180
    %p182 = scmp.ne.s32.totalorder %s171, %s172
    %p183 = scmp.eq.s32.totalorder %s17, 0
    %p184 = por %p182, %p183
    %p185 = scmp.ne.s32.totalorder %s171, %s172
    %p186 = scmp.eq.s32.totalorder %s18, 1
    %p187 = por %p185, %p186
    %p189 = scmp.ne.s32.totalorder %s172, %s188
    %p190 = scmp.eq.s32.totalorder %s18, 0
    %p191 = por %p189, %p190
    %p192 = scmp.le.s32.totalorder 1, %s12
    %p193 = scmp.lt.s32.totalorder %s12, 3
    %p194 = pnand %p192, %p193
    %p195 = pneg %p194
    // Predicated region
    $region9: #{simple_cnn_forward.6} parent=5 // pred_check
      _
    $region10: #{simple_cnn_forward.6} parent=5 // pred_check_branch
      %197 = sbr.rel (%p194) target = $region12
    $region11: #{simple_cnn_forward.6} parent=5 // pred_region
      %s198 = ssub.s32 %s12, 1
      // Predicated region
      $region13: #{simple_cnn_forward.6} parent=11 // pred_check
        %p199 = pneg %p137
      $region14: #{simple_cnn_forward.6} parent=11 // pred_check_branch
        %201 = sbr.rel (%p199) target = $region16
      $region15: #{simple_cnn_forward.6} parent=11 // pred_region
        _
      $region16: #{simple_cnn_forward.6} parent=11 // pred_fallthru
        _
      // Predicated region
      $region17: #{simple_cnn_forward.6} parent=11 // pred_check
        %p202 = pneg %p158
      $region18: #{simple_cnn_forward.6} parent=11 // pred_check_branch
        %204 = sbr.rel (%p202) target = $region20
      $region19: #{simple_cnn_forward.6} parent=11 // pred_region
        _
      $region20: #{simple_cnn_forward.6} parent=11 // pred_fallthru
        _
    $region12: #{simple_cnn_forward.6} parent=5 // pred_fallthru
      _
    %p205 = scmp.lt.s32.totalorder %s12, 2
    // Predicated region
    $region21: #{simple_cnn_forward.6} parent=5 // pred_check
      %p206 = pneg %p205
    $region22: #{simple_cnn_forward.6} parent=5 // pred_check_branch
      %208 = sbr.rel (%p206) target = $region24
    $region23: #{simple_cnn_forward.6} parent=5 // pred_region
      // Predicated region
      $region25: #{simple_cnn_forward.6} parent=23 // pred_check
        %p209 = pneg %p32
      $region26: #{simple_cnn_forward.6} parent=23 // pred_check_branch
        %211 = sbr.rel (%p209) target = $region28
      $region27: #{simple_cnn_forward.6} parent=23 // pred_region
        %s212 = smul.u32 2, %s12
        %p213 = scmp.lt.s32.totalorder %s212, 3
        %s214 = scalar_select %p213, %s212, 3
        %s215 = smul.addr %s214, 3
        %s216 = smul.addr %s215, 4
        %s217 = scalar_lea.vmem %s0, %s216
        %s218 = smul.u32 2, %s12
      $region28: #{simple_cnn_forward.6} parent=23 // pred_fallthru
        _
      // Predicated region
      $region29: #{simple_cnn_forward.6} parent=23 // pred_check
        %p219 = pneg %p58
      $region30: #{simple_cnn_forward.6} parent=23 // pred_check_branch
        %221 = sbr.rel (%p219) target = $region32
      $region31: #{simple_cnn_forward.6} parent=23 // pred_region
        %s222 = smul.u32 2, %s12
        %p223 = scmp.lt.s32.totalorder %s222, 3
        %s224 = scalar_select %p223, %s222, 3
        %s225 = smul.addr %s224, 3
        %s226 = smul.addr %s225, 4
        %s227 = scalar_lea.vmem %s1, %s226
        %s228 = smul.u32 2, %s12
      $region32: #{simple_cnn_forward.6} parent=23 // pred_fallthru
        _
      // Predicated region
      $region33: #{simple_cnn_forward.6} parent=23 // pred_check
        %p229 = pneg %p84
      $region34: #{simple_cnn_forward.6} parent=23 // pred_check_branch
        %231 = sbr.rel (%p229) target = $region36
      $region35: #{simple_cnn_forward.6} parent=23 // pred_region
        %s232 = smul.u32 2, %s12
        %p233 = scmp.lt.s32.totalorder %s232, 3
        %s234 = scalar_select %p233, %s232, 3
        %s235 = smul.addr %s234, 3
        %s236 = smul.addr %s235, 4
        %s237 = scalar_lea.vmem %s2, %s236
        %s238 = smul.u32 2, %s12
      $region36: #{simple_cnn_forward.6} parent=23 // pred_fallthru
        _
      // Predicated region
      $region37: #{simple_cnn_forward.6} parent=23 // pred_check
        %p239 = pneg %p110
      $region38: #{simple_cnn_forward.6} parent=23 // pred_check_branch
        %241 = sbr.rel (%p239) target = $region40
      $region39: #{simple_cnn_forward.6} parent=23 // pred_region
        %s242 = smul.u32 2, %s12
        %p243 = scmp.lt.s32.totalorder %s242, 3
        %s244 = scalar_select %p243, %s242, 3
        %s245 = smul.addr %s244, 3
        %s246 = smul.addr %s245, 4
        %s247 = scalar_lea.vmem %s3, %s246
        %s248 = smul.u32 2, %s12
      $region40: #{simple_cnn_forward.6} parent=23 // pred_fallthru
        _
    $region24: #{simple_cnn_forward.6} parent=5 // pred_fallthru
      _
    %p249 = scmp.le.s32.totalorder 1, %s12
    %p250 = scmp.lt.s32.totalorder %s12, 3
    %p251 = pnand %p249, %p250
    %p252 = pneg %p251
    // Predicated region
    $region41: #{simple_cnn_forward.6} parent=5 // pred_check
      _
    $region42: #{simple_cnn_forward.6} parent=5 // pred_check_branch
      %254 = sbr.rel (%p251) target = $region44
    $region43: #{simple_cnn_forward.6} parent=5 // pred_region
      %s255 = ssub.s32 %s12, 1
      %s256 = smul.u32 2, %s17
      %p257 = scmp.lt.s32.totalorder %s256, 3
      %s258 = scalar_select %p257, %s256, 3
      %s259 = smul.addr %s258, 3
      %s260 = smul.addr %s259, 4
      %s261 = scalar_lea.vmem %s0, %s260
      %p262 = pneg %p38
      %p263 = pneg %p35
      %s264 = smul.u32 2, %s17
      %p265 = scmp.lt.s32.totalorder %s264, 3
      %s266 = scalar_select %p265, %s264, 3
      %s267 = smul.addr %s266, 3
      %s268 = smul.addr %s267, 4
      %s269 = scalar_lea.vmem %s1, %s268
      %p270 = pneg %p64
      %p271 = pneg %p61
      %s272 = smul.u32 2, %s17
      %p273 = scmp.lt.s32.totalorder %s272, 3
      %s274 = scalar_select %p273, %s272, 3
      %s275 = smul.addr %s274, 3
      %s276 = smul.addr %s275, 4
      %s277 = scalar_lea.vmem %s2, %s276
      %p278 = pneg %p90
      %p279 = pneg %p87
      %s280 = smul.u32 2, %s17
      %p281 = scmp.lt.s32.totalorder %s280, 3
      %s282 = scalar_select %p281, %s280, 3
      %s283 = smul.addr %s282, 3
      %s284 = smul.addr %s283, 4
      %s285 = scalar_lea.vmem %s3, %s284
      %p286 = pneg %p116
      %p287 = pneg %p113
      %p288 = pneg %p137
      %p289 = pneg %p134
      %p290 = pneg %p158
      %p291 = pneg %p155
      %p292 = pneg %p184
      %p293 = pneg %p181
      %s294 = smul.u32 2, %s17
      %p295 = scmp.lt.s32.totalorder %s294, 3
      %s296 = scalar_select %p295, %s294, 3
      %s297 = smul.addr %s296, 4
      %s298 = scalar_lea.vmem %s6, %s297
      %s299 = smul.u32 2, %s17
      %p300 = scmp.lt.s32.totalorder %s299, 3
      %s301 = scalar_select %p300, %s299, 3
      %s302 = smul.addr %s301, 3
      %s303 = smul.addr %s302, 4
      %s304 = scalar_lea.vmem %s0, %s303
      %s305 = smul.u32 2, %s17
      %s306 = smul.u32 2, %s17
      %p307 = scmp.lt.s32.totalorder %s306, 3
      %s308 = scalar_select %p307, %s306, 3
      %s309 = smul.addr %s308, 3
      %s310 = smul.addr %s309, 4
      %s311 = scalar_lea.vmem %s1, %s310
      %s312 = smul.u32 2, %s17
      %s313 = smul.u32 2, %s17
      %p314 = scmp.lt.s32.totalorder %s313, 3
      %s315 = scalar_select %p314, %s313, 3
      %s316 = smul.addr %s315, 3
      %s317 = smul.addr %s316, 4
      %s318 = scalar_lea.vmem %s2, %s317
      %s319 = smul.u32 2, %s17
      %s320 = smul.u32 2, %s17
      %p321 = scmp.lt.s32.totalorder %s320, 3
      %s322 = scalar_select %p321, %s320, 3
      %s323 = smul.addr %s322, 3
      %s324 = smul.addr %s323, 4
      %s325 = scalar_lea.vmem %s3, %s324
      %s326 = smul.u32 2, %s17
      %s327 = smul.u32 2, %s17
      %p328 = scmp.lt.s32.totalorder %s327, 3
      %s329 = scalar_select %p328, %s327, 3
      %s330 = smul.addr %s329, 4
      %s331 = scalar_lea.vmem %s6, %s330
      %s332 = smul.u32 2, %s17
      %v334 = vld [vmem:[%s4] sm:$0xf]
      %v335 = vld [vmem:[%s4 + $0x4] sm:$0xf]
      %v336 = vld [vmem:[%s4 + $0x8] sm:$0xf]
      %v337 = vld [vmem:[%s4 + $0xc] sm:$0xf]
      %v338 = vld [vmem:[%s4 + $0x10] sm:$0xf]
      %v339 = vld [vmem:[%s4 + $0x14] sm:$0xf]
      %v340 = vld [vmem:[%s4 + $0x18] sm:$0xf]
      %v341 = vld [vmem:[%s4 + $0x1c] sm:$0xf]
      %v342 = vld [vmem:[%s4 + $0x20] sm:$0xf]
      %v343 = vld [vmem:[%s4 + $0x24] sm:$0xf]
      %v344 = vld [vmem:[%s4 + $0x28] sm:$0xf]
      %v345 = vld [vmem:[%s4 + $0x2c] sm:$0xf]
      %v346 = vld [vmem:[%s4 + $0x30] sm:$0xf]
      %v347 = vld [vmem:[%s4 + $0x34] sm:$0xf]
      %v348 = vld [vmem:[%s4 + $0x38] sm:$0xf]
      %v349 = vld [vmem:[%s4 + $0x3c] sm:$0xf]
      %v350 = vld [vmem:[%s4 + $0x40] sm:$0xf]
      %v351 = vld [vmem:[%s4 + $0x44] sm:$0xf]
      %v352 = vld [vmem:[%s4 + $0x48] sm:$0xf]
      %v353 = vld [vmem:[%s4 + $0x4c] sm:$0xf]
      %v354 = vld [vmem:[%s4 + $0x50] sm:$0xf]
      %v355 = vld [vmem:[%s4 + $0x54] sm:$0xf]
      %v356 = vld [vmem:[%s4 + $0x58] sm:$0xf]
      %v357 = vld [vmem:[%s4 + $0x5c] sm:$0xf]
      %v358 = vld [vmem:[%s4 + $0x60] sm:$0xf]
      %v359 = vld [vmem:[%s4 + $0x64] sm:$0xf]
      %v360 = vld [vmem:[%s4 + $0x68] sm:$0xf]
      %v361 = vld [vmem:[%s4 + $0x6c] sm:$0xf]
      %v362 = vld [vmem:[%s4 + $0x70] sm:$0xf]
      %v363 = vld [vmem:[%s4 + $0x74] sm:$0xf]
      %v364 = vld [vmem:[%s4 + $0x78] sm:$0xf]
      %v365 = vld [vmem:[%s4 + $0x7c] sm:$0xf]
      %v366 = vld [vmem:[%s4 + $0x80] sm:$0xf]
      %v367 = vld [vmem:[%s4 + $0x84] sm:$0xf]
      %v368 = vld [vmem:[%s4 + $0x88] sm:$0xf]
      %v369 = vld [vmem:[%s4 + $0x8c] sm:$0xf]
      %v370 = vld [vmem:[%s304] sm:$0xff]
      %v371 = vld [vmem:[%s304 + $0x8] sm:$0xf]
      %v372 = vld [vmem:[%s304 + $0xc] sm:$0xff]
      %v373 = vld [vmem:[%s304 + $0x14] sm:$0xf]
      %v378 = vunpack.c.l.b16 %v370
      %v379 = vunpack.c.h.b16 %v370
      %v380 = vunpack.c.l.b16 %v371
      %v381 = vunpack.c.l.b16 %v372
      %v382 = vunpack.c.h.b16 %v372
      %v383 = vunpack.c.l.b16 %v373
      %v384 = vpack.c.b16 %v381, %v378
      %v385 = vpack.c.b16 %v382, %v379
      %v386 = vpack.c.b16 %v383, %v380
      %v425 = vunpack.c.l.b16 %v334
      %v426 = vunpack.c.l.b16 %v335
      %v427 = vunpack.c.l.b16 %v336
      %v428 = vunpack.c.l.b16 %v337
      %v429 = vunpack.c.l.b16 %v338
      %v430 = vunpack.c.l.b16 %v339
      %v431 = vunpack.c.l.b16 %v340
      %v432 = vunpack.c.l.b16 %v341
      %v433 = vunpack.c.l.b16 %v342
      %v434 = vunpack.c.l.b16 %v343
      %v435 = vunpack.c.l.b16 %v344
      %v436 = vunpack.c.l.b16 %v345
      %v437 = vunpack.c.l.b16 %v346
      %v438 = vunpack.c.l.b16 %v347
      %v439 = vunpack.c.l.b16 %v348
      %v440 = vunpack.c.l.b16 %v349
      %v441 = vunpack.c.l.b16 %v350
      %v442 = vunpack.c.l.b16 %v351
      %v443 = vunpack.c.l.b16 %v352
      %v444 = vunpack.c.l.b16 %v353
      %v445 = vunpack.c.l.b16 %v354
      %v446 = vunpack.c.l.b16 %v355
      %v447 = vunpack.c.l.b16 %v356
      %v448 = vunpack.c.l.b16 %v357
      %v449 = vunpack.c.l.b16 %v358
      %v450 = vunpack.c.l.b16 %v359
      %v451 = vunpack.c.l.b16 %v360
      %v452 = vunpack.c.l.b16 %v361
      %v453 = vunpack.c.l.b16 %v362
      %v454 = vunpack.c.l.b16 %v363
      %v455 = vunpack.c.l.b16 %v364
      %v456 = vunpack.c.l.b16 %v365
      %v457 = vunpack.c.l.b16 %v366
      %v458 = vunpack.c.l.b16 %v367
      %v459 = vunpack.c.l.b16 %v368
      %v460 = vunpack.c.l.b16 %v369
      %v461 = vpack.c.b16 %v426, %v425
      %v462 = vpack.c.b16 %v428, %v427
      %v463 = vpack.c.b16 %v430, %v429
      %v464 = vpack.c.b16 %v432, %v431
      %v465 = vpack.c.b16 %v434, %v433
      %v466 = vpack.c.b16 %v436, %v435
      %v467 = vpack.c.b16 %v438, %v437
      %v468 = vpack.c.b16 %v440, %v439
      %v469 = vpack.c.b16 %v442, %v441
      %v470 = vpack.c.b16 %v444, %v443
      %v471 = vpack.c.b16 %v446, %v445
      %v472 = vpack.c.b16 %v448, %v447
      %v473 = vpack.c.b16 %v450, %v449
      %v474 = vpack.c.b16 %v452, %v451
      %v475 = vpack.c.b16 %v454, %v453
      %v476 = vpack.c.b16 %v456, %v455
      %v477 = vpack.c.b16 %v458, %v457
      %v478 = vpack.c.b16 %v460, %v459
      %vm497 = vcmask 261120
      %v499 = vsel %vm497, %v386, 0
      %501 = vmatpush.bf16.msra.mxu0 %v468
      %502 = vmatpush.bf16.msra.mxu0 %v467
      %503 = vmatpush.bf16.msra.mxu0 %v466
      %504 = vmatpush.bf16.msra.mxu0 %v465
      %505 = vmatpush.bf16.msra.mxu0 %v464
      %506 = vmatpush.bf16.msra.mxu0 %v463
      %507 = vmatpush.bf16.msra.mxu0 %v462
      %508 = vmatpush.bf16.msra.mxu0 %v461
      %509 = vmatmul.bf16.gmra.mxu0 %v384
      %v510 = vpop.f32.mrf.mxu0
      %v511 = vadd.f32 0.0, %v510
      %v512 = vpop.f32.mrf.mxu0
      %v513 = vadd.f32 0.0, %v512
      %514 = vdwg.mxu0
      %515 = vmatpush.bf16.msra.mxu0 %v476
      %516 = vmatpush.bf16.msra.mxu0 %v475
      %517 = vmatpush.bf16.msra.mxu0 %v474
      %518 = vmatpush.bf16.msra.mxu0 %v473
      %519 = vmatpush.bf16.msra.mxu0 %v472
      %520 = vmatpush.bf16.msra.mxu0 %v471
      %521 = vmatpush.bf16.msra.mxu0 %v470
      %522 = vmatpush.bf16.msra.mxu0 %v469
      %523 = vmatmul.bf16.gmra.mxu0 %v385
      %v524 = vpop.f32.mrf.mxu0
      %v525 = vadd.f32 %v511, %v524
      %v526 = vpop.f32.mrf.mxu0
      %v527 = vadd.f32 %v513, %v526
      %528 = vdwg.mxu0
      %529 = vmatpush.bf16.msra.mxu0 0
      %530 = vmatpush.bf16.msra.mxu0 0
      %531 = vmatpush.bf16.msra.mxu0 0
      %532 = vmatpush.bf16.msra.mxu0 0
      %533 = vmatpush.bf16.msra.mxu0 0
      %534 = vmatpush.bf16.msra.mxu0 0
      %535 = vmatpush.bf16.msra.mxu0 %v478
      %536 = vmatpush.bf16.msra.mxu0 %v477
      %537 = vmatmul.bf16.gmra.mxu0 %v499
      %v538 = vpop.f32.mrf.mxu0
      %v539 = vadd.f32 %v525, %v538
      %v540 = vpop.f32.mrf.mxu0
      %v541 = vadd.f32 %v527, %v540
      %542 = vdwg.mxu0
      %v543 = vld [vmem:[%s311] sm:$0xff]
      %v544 = vld [vmem:[%s311 + $0x8] sm:$0xf]
      %v545 = vld [vmem:[%s311 + $0xc] sm:$0xff]
      %v546 = vld [vmem:[%s311 + $0x14] sm:$0xf]
      %v551 = vunpack.c.l.b16 %v543
      %v552 = vunpack.c.h.b16 %v543
      %v553 = vunpack.c.l.b16 %v544
      %v554 = vunpack.c.l.b16 %v545
      %v555 = vunpack.c.h.b16 %v545
      %v556 = vunpack.c.l.b16 %v546
      %v557 = vpack.c.b16 %v554, %v551
      %v558 = vpack.c.b16 %v555, %v552
      %v559 = vpack.c.b16 %v556, %v553
      %v563 = vsel %vm497, %v559, 0
      %565 = vmatpush.bf16.msra.mxu0 %v468
      %566 = vmatpush.bf16.msra.mxu0 %v467
      %567 = vmatpush.bf16.msra.mxu0 %v466
      %568 = vmatpush.bf16.msra.mxu0 %v465
      %569 = vmatpush.bf16.msra.mxu0 %v464
      %570 = vmatpush.bf16.msra.mxu0 %v463
      %571 = vmatpush.bf16.msra.mxu0 %v462
      %572 = vmatpush.bf16.msra.mxu0 %v461
      %573 = vmatmul.bf16.gmra.mxu0 %v557
      %v574 = vpop.f32.mrf.mxu0
      %v575 = vadd.f32 0.0, %v574
      %v576 = vpop.f32.mrf.mxu0
      %v577 = vadd.f32 0.0, %v576
      %578 = vdwg.mxu0
      %579 = vmatpush.bf16.msra.mxu0 %v476
      %580 = vmatpush.bf16.msra.mxu0 %v475
      %581 = vmatpush.bf16.msra.mxu0 %v474
      %582 = vmatpush.bf16.msra.mxu0 %v473
      %583 = vmatpush.bf16.msra.mxu0 %v472
      %584 = vmatpush.bf16.msra.mxu0 %v471
      %585 = vmatpush.bf16.msra.mxu0 %v470
      %586 = vmatpush.bf16.msra.mxu0 %v469
      %587 = vmatmul.bf16.gmra.mxu0 %v558
      %v588 = vpop.f32.mrf.mxu0
      %v589 = vadd.f32 %v575, %v588
      %v590 = vpop.f32.mrf.mxu0
      %v591 = vadd.f32 %v577, %v590
      %592 = vdwg.mxu0
      %593 = vmatpush.bf16.msra.mxu0 0
      %594 = vmatpush.bf16.msra.mxu0 0
      %595 = vmatpush.bf16.msra.mxu0 0
      %596 = vmatpush.bf16.msra.mxu0 0
      %597 = vmatpush.bf16.msra.mxu0 0
      %598 = vmatpush.bf16.msra.mxu0 0
      %599 = vmatpush.bf16.msra.mxu0 %v478
      %600 = vmatpush.bf16.msra.mxu0 %v477
      %601 = vmatmul.bf16.gmra.mxu0 %v563
      %v602 = vpop.f32.mrf.mxu0
      %v603 = vadd.f32 %v589, %v602
      %v604 = vpop.f32.mrf.mxu0
      %v605 = vadd.f32 %v591, %v604
      %606 = vdwg.mxu0
      %v607 = vld [vmem:[%s318] sm:$0xff]
      %v608 = vld [vmem:[%s318 + $0x8] sm:$0xf]
      %v609 = vld [vmem:[%s318 + $0xc] sm:$0xff]
      %v610 = vld [vmem:[%s318 + $0x14] sm:$0xf]
      %v615 = vunpack.c.l.b16 %v607
      %v616 = vunpack.c.h.b16 %v607
      %v617 = vunpack.c.l.b16 %v608
      %v618 = vunpack.c.l.b16 %v609
      %v619 = vunpack.c.h.b16 %v609
      %v620 = vunpack.c.l.b16 %v610
      %v621 = vpack.c.b16 %v618, %v615
      %v622 = vpack.c.b16 %v619, %v616
      %v623 = vpack.c.b16 %v620, %v617
      %v627 = vsel %vm497, %v623, 0
      %629 = vmatpush.bf16.msra.mxu0 %v468
      %630 = vmatpush.bf16.msra.mxu0 %v467
      %631 = vmatpush.bf16.msra.mxu0 %v466
      %632 = vmatpush.bf16.msra.mxu0 %v465
      %633 = vmatpush.bf16.msra.mxu0 %v464
      %634 = vmatpush.bf16.msra.mxu0 %v463
      %635 = vmatpush.bf16.msra.mxu0 %v462
      %636 = vmatpush.bf16.msra.mxu0 %v461
      %637 = vmatmul.bf16.gmra.mxu0 %v621
      %v638 = vpop.f32.mrf.mxu0
      %v639 = vadd.f32 0.0, %v638
      %v640 = vpop.f32.mrf.mxu0
      %v641 = vadd.f32 0.0, %v640
      %642 = vdwg.mxu0
      %643 = vmatpush.bf16.msra.mxu0 %v476
      %644 = vmatpush.bf16.msra.mxu0 %v475
      %645 = vmatpush.bf16.msra.mxu0 %v474
      %646 = vmatpush.bf16.msra.mxu0 %v473
      %647 = vmatpush.bf16.msra.mxu0 %v472
      %648 = vmatpush.bf16.msra.mxu0 %v471
      %649 = vmatpush.bf16.msra.mxu0 %v470
      %650 = vmatpush.bf16.msra.mxu0 %v469
      %651 = vmatmul.bf16.gmra.mxu0 %v622
      %v652 = vpop.f32.mrf.mxu0
      %v653 = vadd.f32 %v639, %v652
      %v654 = vpop.f32.mrf.mxu0
      %v655 = vadd.f32 %v641, %v654
      %656 = vdwg.mxu0
      %657 = vmatpush.bf16.msra.mxu0 0
      %658 = vmatpush.bf16.msra.mxu0 0
      %659 = vmatpush.bf16.msra.mxu0 0
      %660 = vmatpush.bf16.msra.mxu0 0
      %661 = vmatpush.bf16.msra.mxu0 0
      %662 = vmatpush.bf16.msra.mxu0 0
      %663 = vmatpush.bf16.msra.mxu0 %v478
      %664 = vmatpush.bf16.msra.mxu0 %v477
      %665 = vmatmul.bf16.gmra.mxu0 %v627
      %v666 = vpop.f32.mrf.mxu0
      %v667 = vadd.f32 %v653, %v666
      %v668 = vpop.f32.mrf.mxu0
      %v669 = vadd.f32 %v655, %v668
      %670 = vdwg.mxu0
      %v671 = vld [vmem:[%s325] sm:$0xff]
      %v672 = vld [vmem:[%s325 + $0x8] sm:$0xf]
      %v673 = vld [vmem:[%s325 + $0xc] sm:$0xff]
      %v674 = vld [vmem:[%s325 + $0x14] sm:$0xf]
      %v679 = vunpack.c.l.b16 %v671
      %v680 = vunpack.c.h.b16 %v671
      %v681 = vunpack.c.l.b16 %v672
      %v682 = vunpack.c.l.b16 %v673
      %v683 = vunpack.c.h.b16 %v673
      %v684 = vunpack.c.l.b16 %v674
      %v685 = vpack.c.b16 %v682, %v679
      %v686 = vpack.c.b16 %v683, %v680
      %v687 = vpack.c.b16 %v684, %v681
      %v691 = vsel %vm497, %v687, 0
      %693 = vmatpush.bf16.msra.mxu0 %v468
      %694 = vmatpush.bf16.msra.mxu0 %v467
      %695 = vmatpush.bf16.msra.mxu0 %v466
      %696 = vmatpush.bf16.msra.mxu0 %v465
      %697 = vmatpush.bf16.msra.mxu0 %v464
      %698 = vmatpush.bf16.msra.mxu0 %v463
      %699 = vmatpush.bf16.msra.mxu0 %v462
      %700 = vmatpush.bf16.msra.mxu0 %v461
      %701 = vmatmul.bf16.gmra.mxu0 %v685
      %v702 = vpop.f32.mrf.mxu0
      %v703 = vadd.f32 0.0, %v702
      %v704 = vpop.f32.mrf.mxu0
      %v705 = vadd.f32 0.0, %v704
      %706 = vdwg.mxu0
      %707 = vmatpush.bf16.msra.mxu0 %v476
      %708 = vmatpush.bf16.msra.mxu0 %v475
      %709 = vmatpush.bf16.msra.mxu0 %v474
      %710 = vmatpush.bf16.msra.mxu0 %v473
      %711 = vmatpush.bf16.msra.mxu0 %v472
      %712 = vmatpush.bf16.msra.mxu0 %v471
      %713 = vmatpush.bf16.msra.mxu0 %v470
      %714 = vmatpush.bf16.msra.mxu0 %v469
      %715 = vmatmul.bf16.gmra.mxu0 %v686
      %v716 = vpop.f32.mrf.mxu0
      %v717 = vadd.f32 %v703, %v716
      %v718 = vpop.f32.mrf.mxu0
      %v719 = vadd.f32 %v705, %v718
      %720 = vdwg.mxu0
      %721 = vmatpush.bf16.msra.mxu0 0
      %722 = vmatpush.bf16.msra.mxu0 0
      %723 = vmatpush.bf16.msra.mxu0 0
      %724 = vmatpush.bf16.msra.mxu0 0
      %725 = vmatpush.bf16.msra.mxu0 0
      %726 = vmatpush.bf16.msra.mxu0 0
      %727 = vmatpush.bf16.msra.mxu0 %v478
      %728 = vmatpush.bf16.msra.mxu0 %v477
      %729 = vmatmul.bf16.gmra.mxu0 %v691
      %v730 = vpop.f32.mrf.mxu0
      %v731 = vadd.f32 %v717, %v730
      %v732 = vpop.f32.mrf.mxu0
      %v733 = vadd.f32 %v719, %v732
      %734 = vdwg.mxu0
      %v735 = vmax.f32 %v539, %v603
      %v736 = vmax.f32 %v541, %v605
      %v737 = vmax.f32 %v667, %v731
      %v738 = vmax.f32 %v669, %v733
      %v739 = vmax.f32 %v735, %v737
      %v740 = vmax.f32 %v736, %v738
      %v741 = vld [vmem:[%s5] sm:$0x1]
      %v743 = vperm.slane %v741, 0
      %v745 = vadd.f32 %v739, %v743
      %v746 = vadd.f32 %v740, %v743
      %v747 = vmax.f32 %v745, 0.0
      %v748 = vmax.f32 %v746, 0.0
      %v749 = vpack.c.bf16 %v747, %v747
      %v750 = vpack.c.bf16 %v748, %v748
      %751 = vst [vmem:[%s331] sm:$0xf] %v749
      %752 = vst [vmem:[%s331 + $0x4] sm:$0xf] %v750
      %s753 = smul.u32 2, %s17
      %p754 = scmp.lt.s32.totalorder %s753, 3
      %s755 = scalar_select %p754, %s753, 3
      %s756 = smul.addr %s755, 4
      %s757 = scalar_lea.vmem %s6, %s756
      // Predicated region
      $region45: #{simple_cnn_forward.6} parent=43 // pred_check
        %p758 = pneg %p181
      $region46: #{simple_cnn_forward.6} parent=43 // pred_check_branch
        %760 = sbr.rel (%p758) target = $region48
      $region47: #{simple_cnn_forward.6} parent=43 // pred_region
        %s761 = smul.u32 2, %s17
      $region48: #{simple_cnn_forward.6} parent=43 // pred_fallthru
        _
    $region44: #{simple_cnn_forward.6} parent=5 // pred_fallthru
      _
    %p762 = scmp.le.s32.totalorder 2, %s12
    // Predicated region
    $region49: #{simple_cnn_forward.6} parent=5 // pred_check
      %p763 = pneg %p762
    $region50: #{simple_cnn_forward.6} parent=5 // pred_check_branch
      %765 = sbr.rel (%p763) target = $region52
    $region51: #{simple_cnn_forward.6} parent=5 // pred_region
      %s766 = ssub.s32 %s12, 2
      // Predicated region
      $region53: #{simple_cnn_forward.6} parent=51 // pred_check
        %p767 = pneg %p187
      $region54: #{simple_cnn_forward.6} parent=51 // pred_check_branch
        %769 = sbr.rel (%p767) target = $region56
      $region55: #{simple_cnn_forward.6} parent=51 // pred_region
        %s770 = smul.u32 2, %s18
        %p771 = scmp.lt.s32.totalorder %s770, 3
        %s772 = scalar_select %p771, %s770, 3
        %s773 = smul.addr %s772, 4
        %s774 = scalar_lea.vmem %s6, %s773
      $region56: #{simple_cnn_forward.6} parent=51 // pred_fallthru
        _
    $region52: #{simple_cnn_forward.6} parent=5 // pred_fallthru
      _
  $region6: #{simple_cnn_forward.6} parent=0 // loop_footer
    %s16 = sadd.s32 1, %s12
  $region7: #{simple_cnn_forward.6} parent=0 // loop_footer_branch
    %11 = sbr.rel target = $region3
  $region8: #{simple_cnn_forward.6} parent=0 // loop_exit
    _

// kernel: simple_cnn_forward.7
$region0: #{simple_cnn_forward.7}
  #allocation0 [shape = 'u32[]', space=smem, size = 0x4, offset = 0x4, fixed_abs, tag = 'smem constant byte address 0x4 - core index']
  #allocation1 [shape = 'u32[72,128]{1,0:T(1,128)}', space=vmem, size = 0x9000, scoped, tag = 'internal scratch']
  %s0 = inlined_call_operand.vmem [shape: bf16[8,576], index: 0, kind: input, shape index: {}]
  %s1 = inlined_call_operand.vmem [shape: bf16[8,576], index: 1, kind: input, shape index: {}]
  %s2 = inlined_call_operand.vmem [shape: bf16[8,576], index: 2, kind: input, shape index: {}]
  %s3 = inlined_call_operand.vmem [shape: bf16[8,576], index: 3, kind: input, shape index: {}]
  %s4 = inlined_call_operand.vmem [shape: bf16[576,128], index: 4, kind: input, shape index: {}]
  %s5 = inlined_call_operand.vmem [shape: f32[1,128], index: 5, kind: input, shape index: {}]
  %s6 = inlined_call_operand.vmem [shape: f32[2,8], index: 6, kind: input, shape index: {}]
  %s7 = inlined_call_operand.vmem [shape: f32[128,128], index: 7, kind: input, shape index: {}]
  %s8 = inlined_call_operand.vmem [shape: f32[1,128], index: 8, kind: input, shape index: {}]
  %s9 = inlined_call_operand.hbm [shape: f32[2,128], index: 9, kind: output, shape index: {}]
  %s10 = sld [smem:[#allocation0]]
  $region46: #{simple_cnn_forward.7} parent=0
    _
  %s12 = ssub.s32 1, %s10
  %s13 = scalar_select 0, %s12, %s10
  $region1: #{simple_cnn_forward.7} parent=0
    #allocation2 [shape = 'u8[1024]{0}', space=vmem, size = 0x400, scoped, tag = 'output window, operand 0, single buffered']
    #allocation3 [shape = 's32[1]{0}', space=sflag, size = 0x4, scoped, tag = 'scoped memory for simple_cnn_forward.7']
    %14 = vsyncpa [#allocation3], 0
    // Predicated region
    $region2: #{simple_cnn_forward.7} parent=1 // pred_check
      _
    $region3: #{simple_cnn_forward.7} parent=1 // pred_check_branch
      %16 = sbr.rel (0) target = $region5
    $region4: #{simple_cnn_forward.7} parent=1 // pred_region
      _
    $region5: #{simple_cnn_forward.7} parent=1 // pred_fallthru
      _
    // Predicated region
    $region6: #{simple_cnn_forward.7} parent=1 // pred_check
      _
    $region7: #{simple_cnn_forward.7} parent=1 // pred_check_branch
      %18 = sbr.rel (0) target = $region9
    $region8: #{simple_cnn_forward.7} parent=1 // pred_region
      _
    $region9: #{simple_cnn_forward.7} parent=1 // pred_fallthru
      _
    // Predicated region
    $region10: #{simple_cnn_forward.7} parent=1 // pred_check
      _
    $region11: #{simple_cnn_forward.7} parent=1 // pred_check_branch
      %20 = sbr.rel (0) target = $region13
    $region12: #{simple_cnn_forward.7} parent=1 // pred_region
      _
    $region13: #{simple_cnn_forward.7} parent=1 // pred_fallthru
      _
    // Predicated region
    $region14: #{simple_cnn_forward.7} parent=1 // pred_check
      _
    $region15: #{simple_cnn_forward.7} parent=1 // pred_check_branch
      %22 = sbr.rel (0) target = $region17
    $region16: #{simple_cnn_forward.7} parent=1 // pred_region
      _
    $region17: #{simple_cnn_forward.7} parent=1 // pred_fallthru
      _
    // Predicated region
    $region18: #{simple_cnn_forward.7} parent=1 // pred_check
      _
    $region19: #{simple_cnn_forward.7} parent=1 // pred_check_branch
      %24 = sbr.rel (0) target = $region21
    $region20: #{simple_cnn_forward.7} parent=1 // pred_region
      _
    $region21: #{simple_cnn_forward.7} parent=1 // pred_fallthru
      _
    // Predicated region
    $region22: #{simple_cnn_forward.7} parent=1 // pred_check
      _
    $region23: #{simple_cnn_forward.7} parent=1 // pred_check_branch
      %26 = sbr.rel (0) target = $region25
    $region24: #{simple_cnn_forward.7} parent=1 // pred_region
      _
    $region25: #{simple_cnn_forward.7} parent=1 // pred_fallthru
      _
    // Predicated region
    $region26: #{simple_cnn_forward.7} parent=1 // pred_check
      _
    $region27: #{simple_cnn_forward.7} parent=1 // pred_check_branch
      %28 = sbr.rel (0) target = $region29
    $region28: #{simple_cnn_forward.7} parent=1 // pred_region
      _
    $region29: #{simple_cnn_forward.7} parent=1 // pred_fallthru
      _
    // Predicated region
    $region30: #{simple_cnn_forward.7} parent=1 // pred_check
      _
    $region31: #{simple_cnn_forward.7} parent=1 // pred_check_branch
      %30 = sbr.rel (0) target = $region33
    $region32: #{simple_cnn_forward.7} parent=1 // pred_region
      _
    $region33: #{simple_cnn_forward.7} parent=1 // pred_fallthru
      _
    // Predicated region
    $region34: #{simple_cnn_forward.7} parent=1 // pred_check
      _
    $region35: #{simple_cnn_forward.7} parent=1 // pred_check_branch
      %32 = sbr.rel (0) target = $region37
    $region36: #{simple_cnn_forward.7} parent=1 // pred_region
      _
    $region37: #{simple_cnn_forward.7} parent=1 // pred_fallthru
      _
    %v34 = vld [vmem:[%s4] sm:$0xf]
    %v35 = vld [vmem:[%s4 + $0x4] sm:$0xf]
    %v36 = vld [vmem:[%s4 + $0x8] sm:$0xf]
    %v37 = vld [vmem:[%s4 + $0xc] sm:$0xf]
    %v38 = vld [vmem:[%s4 + $0x10] sm:$0xf]
    %v39 = vld [vmem:[%s4 + $0x14] sm:$0xf]
    %v40 = vld [vmem:[%s4 + $0x18] sm:$0xf]
    %v41 = vld [vmem:[%s4 + $0x1c] sm:$0xf]
    %v42 = vld [vmem:[%s4 + $0x20] sm:$0xf]
    %v43 = vld [vmem:[%s4 + $0x24] sm:$0xf]
    %v44 = vld [vmem:[%s4 + $0x28] sm:$0xf]
    %v45 = vld [vmem:[%s4 + $0x2c] sm:$0xf]
    %v46 = vld [vmem:[%s4 + $0x30] sm:$0xf]
    %v47 = vld [vmem:[%s4 + $0x34] sm:$0xf]
    %v48 = vld [vmem:[%s4 + $0x38] sm:$0xf]
    %v49 = vld [vmem:[%s4 + $0x3c] sm:$0xf]
    %v50 = vld [vmem:[%s4 + $0x40] sm:$0xf]
    %v51 = vld [vmem:[%s4 + $0x44] sm:$0xf]
    %v52 = vld [vmem:[%s4 + $0x48] sm:$0xf]
    %v53 = vld [vmem:[%s4 + $0x4c] sm:$0xf]
    %v54 = vld [vmem:[%s4 + $0x50] sm:$0xf]
    %v55 = vld [vmem:[%s4 + $0x54] sm:$0xf]
    %v56 = vld [vmem:[%s4 + $0x58] sm:$0xf]
    %v57 = vld [vmem:[%s4 + $0x5c] sm:$0xf]
    %v58 = vld [vmem:[%s4 + $0x60] sm:$0xf]
    %v59 = vld [vmem:[%s4 + $0x64] sm:$0xf]
    %v60 = vld [vmem:[%s4 + $0x68] sm:$0xf]
    %v61 = vld [vmem:[%s4 + $0x6c] sm:$0xf]
    %v62 = vld [vmem:[%s4 + $0x70] sm:$0xf]
    %v63 = vld [vmem:[%s4 + $0x74] sm:$0xf]
    %v64 = vld [vmem:[%s4 + $0x78] sm:$0xf]
    %v65 = vld [vmem:[%s4 + $0x7c] sm:$0xf]
    %v66 = vld [vmem:[%s4 + $0x80] sm:$0xf]
    %v67 = vld [vmem:[%s4 + $0x84] sm:$0xf]
    %v68 = vld [vmem:[%s4 + $0x88] sm:$0xf]
    %v69 = vld [vmem:[%s4 + $0x8c] sm:$0xf]
    %v70 = vld [vmem:[%s4 + $0x90] sm:$0xf]
    %v71 = vld [vmem:[%s4 + $0x94] sm:$0xf]
    %v72 = vld [vmem:[%s4 + $0x98] sm:$0xf]
    %v73 = vld [vmem:[%s4 + $0x9c] sm:$0xf]
    %v74 = vld [vmem:[%s4 + $0xa0] sm:$0xf]
    %v75 = vld [vmem:[%s4 + $0xa4] sm:$0xf]
    %v76 = vld [vmem:[%s4 + $0xa8] sm:$0xf]
    %v77 = vld [vmem:[%s4 + $0xac] sm:$0xf]
    %v78 = vld [vmem:[%s4 + $0xb0] sm:$0xf]
    %v79 = vld [vmem:[%s4 + $0xb4] sm:$0xf]
    %v80 = vld [vmem:[%s4 + $0xb8] sm:$0xf]
    %v81 = vld [vmem:[%s4 + $0xbc] sm:$0xf]
    %v82 = vld [vmem:[%s4 + $0xc0] sm:$0xf]
    %v83 = vld [vmem:[%s4 + $0xc4] sm:$0xf]
    %v84 = vld [vmem:[%s4 + $0xc8] sm:$0xf]
    %v85 = vld [vmem:[%s4 + $0xcc] sm:$0xf]
    %v86 = vld [vmem:[%s4 + $0xd0] sm:$0xf]
    %v87 = vld [vmem:[%s4 + $0xd4] sm:$0xf]
    %v88 = vld [vmem:[%s4 + $0xd8] sm:$0xf]
    %v89 = vld [vmem:[%s4 + $0xdc] sm:$0xf]
    %v90 = vld [vmem:[%s4 + $0xe0] sm:$0xf]
    %v91 = vld [vmem:[%s4 + $0xe4] sm:$0xf]
    %v92 = vld [vmem:[%s4 + $0xe8] sm:$0xf]
    %v93 = vld [vmem:[%s4 + $0xec] sm:$0xf]
    %v94 = vld [vmem:[%s4 + $0xf0] sm:$0xf]
    %v95 = vld [vmem:[%s4 + $0xf4] sm:$0xf]
    %v96 = vld [vmem:[%s4 + $0xf8] sm:$0xf]
    %v97 = vld [vmem:[%s4 + $0xfc] sm:$0xf]
    %v98 = vld [vmem:[%s4 + $0x100] sm:$0xf]
    %v99 = vld [vmem:[%s4 + $0x104] sm:$0xf]
    %v100 = vld [vmem:[%s4 + $0x108] sm:$0xf]
    %v101 = vld [vmem:[%s4 + $0x10c] sm:$0xf]
    %v102 = vld [vmem:[%s4 + $0x110] sm:$0xf]
    %v103 = vld [vmem:[%s4 + $0x114] sm:$0xf]
    %v104 = vld [vmem:[%s4 + $0x118] sm:$0xf]
    %v105 = vld [vmem:[%s4 + $0x11c] sm:$0xf]
    %v106 = vld [vmem:[%s0] sm:$0xff]
    %v107 = vld [vmem:[%s0 + $0x8] sm:$0xff]
    %v108 = vld [vmem:[%s0 + $0x10] sm:$0xf]
    %v112 = vunpack.c.l.b16 %v106
    %v113 = vunpack.c.h.b16 %v106
    %v114 = vunpack.c.l.b16 %v107
    %v115 = vunpack.c.h.b16 %v107
    %v116 = vunpack.c.l.b16 %v108
    %v117 = vpack.c.b16 %v112, %v112
    %v118 = vpack.c.b16 %v113, %v113
    %v119 = vpack.c.b16 %v114, %v114
    %v120 = vpack.c.b16 %v115, %v115
    %v121 = vpack.c.b16 %v116, %v116
    %v198 = vunpack.c.l.b16 %v34
    %v199 = vunpack.c.l.b16 %v35
    %v200 = vunpack.c.l.b16 %v36
    %v201 = vunpack.c.l.b16 %v37
    %v202 = vunpack.c.l.b16 %v38
    %v203 = vunpack.c.l.b16 %v39
    %v204 = vunpack.c.l.b16 %v40
    %v205 = vunpack.c.l.b16 %v41
    %v206 = vunpack.c.l.b16 %v42
    %v207 = vunpack.c.l.b16 %v43
    %v208 = vunpack.c.l.b16 %v44
    %v209 = vunpack.c.l.b16 %v45
    %v210 = vunpack.c.l.b16 %v46
    %v211 = vunpack.c.l.b16 %v47
    %v212 = vunpack.c.l.b16 %v48
    %v213 = vunpack.c.l.b16 %v49
    %v214 = vunpack.c.l.b16 %v50
    %v215 = vunpack.c.l.b16 %v51
    %v216 = vunpack.c.l.b16 %v52
    %v217 = vunpack.c.l.b16 %v53
    %v218 = vunpack.c.l.b16 %v54
    %v219 = vunpack.c.l.b16 %v55
    %v220 = vunpack.c.l.b16 %v56
    %v221 = vunpack.c.l.b16 %v57
    %v222 = vunpack.c.l.b16 %v58
    %v223 = vunpack.c.l.b16 %v59
    %v224 = vunpack.c.l.b16 %v60
    %v225 = vunpack.c.l.b16 %v61
    %v226 = vunpack.c.l.b16 %v62
    %v227 = vunpack.c.l.b16 %v63
    %v228 = vunpack.c.l.b16 %v64
    %v229 = vunpack.c.l.b16 %v65
    %v230 = vunpack.c.l.b16 %v66
    %v231 = vunpack.c.l.b16 %v67
    %v232 = vunpack.c.l.b16 %v68
    %v233 = vunpack.c.l.b16 %v69
    %v234 = vunpack.c.l.b16 %v70
    %v235 = vunpack.c.l.b16 %v71
    %v236 = vunpack.c.l.b16 %v72
    %v237 = vunpack.c.l.b16 %v73
    %v238 = vunpack.c.l.b16 %v74
    %v239 = vunpack.c.l.b16 %v75
    %v240 = vunpack.c.l.b16 %v76
    %v241 = vunpack.c.l.b16 %v77
    %v242 = vunpack.c.l.b16 %v78
    %v243 = vunpack.c.l.b16 %v79
    %v244 = vunpack.c.l.b16 %v80
    %v245 = vunpack.c.l.b16 %v81
    %v246 = vunpack.c.l.b16 %v82
    %v247 = vunpack.c.l.b16 %v83
    %v248 = vunpack.c.l.b16 %v84
    %v249 = vunpack.c.l.b16 %v85
    %v250 = vunpack.c.l.b16 %v86
    %v251 = vunpack.c.l.b16 %v87
    %v252 = vunpack.c.l.b16 %v88
    %v253 = vunpack.c.l.b16 %v89
    %v254 = vunpack.c.l.b16 %v90
    %v255 = vunpack.c.l.b16 %v91
    %v256 = vunpack.c.l.b16 %v92
    %v257 = vunpack.c.l.b16 %v93
    %v258 = vunpack.c.l.b16 %v94
    %v259 = vunpack.c.l.b16 %v95
    %v260 = vunpack.c.l.b16 %v96
    %v261 = vunpack.c.l.b16 %v97
    %v262 = vunpack.c.l.b16 %v98
    %v263 = vunpack.c.l.b16 %v99
    %v264 = vunpack.c.l.b16 %v100
    %v265 = vunpack.c.l.b16 %v101
    %v266 = vunpack.c.l.b16 %v102
    %v267 = vunpack.c.l.b16 %v103
    %v268 = vunpack.c.l.b16 %v104
    %v269 = vunpack.c.l.b16 %v105
    %v270 = vpack.c.b16 %v199, %v198
    %v271 = vpack.c.b16 %v201, %v200
    %v272 = vpack.c.b16 %v203, %v202
    %v273 = vpack.c.b16 %v205, %v204
    %v274 = vpack.c.b16 %v207, %v206
    %v275 = vpack.c.b16 %v209, %v208
    %v276 = vpack.c.b16 %v211, %v210
    %v277 = vpack.c.b16 %v213, %v212
    %v278 = vpack.c.b16 %v215, %v214
    %v279 = vpack.c.b16 %v217, %v216
    %v280 = vpack.c.b16 %v219, %v218
    %v281 = vpack.c.b16 %v221, %v220
    %v282 = vpack.c.b16 %v223, %v222
    %v283 = vpack.c.b16 %v225, %v224
    %v284 = vpack.c.b16 %v227, %v226
    %v285 = vpack.c.b16 %v229, %v228
    %v286 = vpack.c.b16 %v231, %v230
    %v287 = vpack.c.b16 %v233, %v232
    %v288 = vpack.c.b16 %v235, %v234
    %v289 = vpack.c.b16 %v237, %v236
    %v290 = vpack.c.b16 %v239, %v238
    %v291 = vpack.c.b16 %v241, %v240
    %v292 = vpack.c.b16 %v243, %v242
    %v293 = vpack.c.b16 %v245, %v244
    %v294 = vpack.c.b16 %v247, %v246
    %v295 = vpack.c.b16 %v249, %v248
    %v296 = vpack.c.b16 %v251, %v250
    %v297 = vpack.c.b16 %v253, %v252
    %v298 = vpack.c.b16 %v255, %v254
    %v299 = vpack.c.b16 %v257, %v256
    %v300 = vpack.c.b16 %v259, %v258
    %v301 = vpack.c.b16 %v261, %v260
    %v302 = vpack.c.b16 %v263, %v262
    %v303 = vpack.c.b16 %v265, %v264
    %v304 = vpack.c.b16 %v267, %v266
    %v305 = vpack.c.b16 %v269, %v268
    %vm342 = vcmask 523264
    %v344 = vsel %vm342, %v121, 0
    %346 = vmatpush.bf16.msra.mxu0 %v277
    %347 = vmatpush.bf16.msra.mxu0 %v276
    %348 = vmatpush.bf16.msra.mxu0 %v275
    %349 = vmatpush.bf16.msra.mxu0 %v274
    %350 = vmatpush.bf16.msra.mxu0 %v273
    %351 = vmatpush.bf16.msra.mxu0 %v272
    %352 = vmatpush.bf16.msra.mxu0 %v271
    %353 = vmatpush.bf16.msra.mxu0 %v270
    %354 = vmatmul.bf16.gmra.mxu0 %v117
    %v355 = vpop.f32.mrf.mxu0
    %v356 = vadd.f32 0.0, %v355
    %v357 = vpop.f32.mrf.mxu0
    %358 = vdwg.mxu0
    %359 = vmatpush.bf16.msra.mxu0 %v285
    %360 = vmatpush.bf16.msra.mxu0 %v284
    %361 = vmatpush.bf16.msra.mxu0 %v283
    %362 = vmatpush.bf16.msra.mxu0 %v282
    %363 = vmatpush.bf16.msra.mxu0 %v281
    %364 = vmatpush.bf16.msra.mxu0 %v280
    %365 = vmatpush.bf16.msra.mxu0 %v279
    %366 = vmatpush.bf16.msra.mxu0 %v278
    %367 = vmatmul.bf16.gmra.mxu0 %v118
    %v368 = vpop.f32.mrf.mxu0
    %v369 = vadd.f32 %v356, %v368
    %v370 = vpop.f32.mrf.mxu0
    %371 = vdwg.mxu0
    %372 = vmatpush.bf16.msra.mxu0 %v293
    %373 = vmatpush.bf16.msra.mxu0 %v292
    %374 = vmatpush.bf16.msra.mxu0 %v291
    %375 = vmatpush.bf16.msra.mxu0 %v290
    %376 = vmatpush.bf16.msra.mxu0 %v289
    %377 = vmatpush.bf16.msra.mxu0 %v288
    %378 = vmatpush.bf16.msra.mxu0 %v287
    %379 = vmatpush.bf16.msra.mxu0 %v286
    %380 = vmatmul.bf16.gmra.mxu0 %v119
    %v381 = vpop.f32.mrf.mxu0
    %v382 = vadd.f32 %v369, %v381
    %v383 = vpop.f32.mrf.mxu0
    %384 = vdwg.mxu0
    %385 = vmatpush.bf16.msra.mxu0 %v301
    %386 = vmatpush.bf16.msra.mxu0 %v300
    %387 = vmatpush.bf16.msra.mxu0 %v299
    %388 = vmatpush.bf16.msra.mxu0 %v298
    %389 = vmatpush.bf16.msra.mxu0 %v297
    %390 = vmatpush.bf16.msra.mxu0 %v296
    %391 = vmatpush.bf16.msra.mxu0 %v295
    %392 = vmatpush.bf16.msra.mxu0 %v294
    %393 = vmatmul.bf16.gmra.mxu0 %v120
    %v394 = vpop.f32.mrf.mxu0
    %v395 = vadd.f32 %v382, %v394
    %v396 = vpop.f32.mrf.mxu0
    %397 = vdwg.mxu0
    %398 = vmatpush.bf16.msra.mxu0 0
    %399 = vmatpush.bf16.msra.mxu0 0
    %400 = vmatpush.bf16.msra.mxu0 0
    %401 = vmatpush.bf16.msra.mxu0 0
    %402 = vmatpush.bf16.msra.mxu0 %v305
    %403 = vmatpush.bf16.msra.mxu0 %v304
    %404 = vmatpush.bf16.msra.mxu0 %v303
    %405 = vmatpush.bf16.msra.mxu0 %v302
    %406 = vmatmul.bf16.gmra.mxu0 %v344
    %v407 = vpop.f32.mrf.mxu0
    %v408 = vadd.f32 %v395, %v407
    %v409 = vpop.f32.mrf.mxu0
    %410 = vdwg.mxu0
    %v411 = vld [vmem:[%s1] sm:$0xff]
    %v412 = vld [vmem:[%s1 + $0x8] sm:$0xff]
    %v413 = vld [vmem:[%s1 + $0x10] sm:$0xf]
    %v417 = vunpack.c.l.b16 %v411
    %v418 = vunpack.c.h.b16 %v411
    %v419 = vunpack.c.l.b16 %v412
    %v420 = vunpack.c.h.b16 %v412
    %v421 = vunpack.c.l.b16 %v413
    %v422 = vpack.c.b16 %v417, %v417
    %v423 = vpack.c.b16 %v418, %v418
    %v424 = vpack.c.b16 %v419, %v419
    %v425 = vpack.c.b16 %v420, %v420
    %v426 = vpack.c.b16 %v421, %v421
    %v432 = vsel %vm342, %v426, 0
    %434 = vmatpush.bf16.msra.mxu0 %v277
    %435 = vmatpush.bf16.msra.mxu0 %v276
    %436 = vmatpush.bf16.msra.mxu0 %v275
    %437 = vmatpush.bf16.msra.mxu0 %v274
    %438 = vmatpush.bf16.msra.mxu0 %v273
    %439 = vmatpush.bf16.msra.mxu0 %v272
    %440 = vmatpush.bf16.msra.mxu0 %v271
    %441 = vmatpush.bf16.msra.mxu0 %v270
    %442 = vmatmul.bf16.gmra.mxu0 %v422
    %v443 = vpop.f32.mrf.mxu0
    %v444 = vadd.f32 0.0, %v443
    %v445 = vpop.f32.mrf.mxu0
    %446 = vdwg.mxu0
    %447 = vmatpush.bf16.msra.mxu0 %v285
    %448 = vmatpush.bf16.msra.mxu0 %v284
    %449 = vmatpush.bf16.msra.mxu0 %v283
    %450 = vmatpush.bf16.msra.mxu0 %v282
    %451 = vmatpush.bf16.msra.mxu0 %v281
    %452 = vmatpush.bf16.msra.mxu0 %v280
    %453 = vmatpush.bf16.msra.mxu0 %v279
    %454 = vmatpush.bf16.msra.mxu0 %v278
    %455 = vmatmul.bf16.gmra.mxu0 %v423
    %v456 = vpop.f32.mrf.mxu0
    %v457 = vadd.f32 %v444, %v456
    %v458 = vpop.f32.mrf.mxu0
    %459 = vdwg.mxu0
    %460 = vmatpush.bf16.msra.mxu0 %v293
    %461 = vmatpush.bf16.msra.mxu0 %v292
    %462 = vmatpush.bf16.msra.mxu0 %v291
    %463 = vmatpush.bf16.msra.mxu0 %v290
    %464 = vmatpush.bf16.msra.mxu0 %v289
    %465 = vmatpush.bf16.msra.mxu0 %v288
    %466 = vmatpush.bf16.msra.mxu0 %v287
    %467 = vmatpush.bf16.msra.mxu0 %v286
    %468 = vmatmul.bf16.gmra.mxu0 %v424
    %v469 = vpop.f32.mrf.mxu0
    %v470 = vadd.f32 %v457, %v469
    %v471 = vpop.f32.mrf.mxu0
    %472 = vdwg.mxu0
    %473 = vmatpush.bf16.msra.mxu0 %v301
    %474 = vmatpush.bf16.msra.mxu0 %v300
    %475 = vmatpush.bf16.msra.mxu0 %v299
    %476 = vmatpush.bf16.msra.mxu0 %v298
    %477 = vmatpush.bf16.msra.mxu0 %v297
    %478 = vmatpush.bf16.msra.mxu0 %v296
    %479 = vmatpush.bf16.msra.mxu0 %v295
    %480 = vmatpush.bf16.msra.mxu0 %v294
    %481 = vmatmul.bf16.gmra.mxu0 %v425
    %v482 = vpop.f32.mrf.mxu0
    %v483 = vadd.f32 %v470, %v482
    %v484 = vpop.f32.mrf.mxu0
    %485 = vdwg.mxu0
    %486 = vmatpush.bf16.msra.mxu0 0
    %487 = vmatpush.bf16.msra.mxu0 0
    %488 = vmatpush.bf16.msra.mxu0 0
    %489 = vmatpush.bf16.msra.mxu0 0
    %490 = vmatpush.bf16.msra.mxu0 %v305
    %491 = vmatpush.bf16.msra.mxu0 %v304
    %492 = vmatpush.bf16.msra.mxu0 %v303
    %493 = vmatpush.bf16.msra.mxu0 %v302
    %494 = vmatmul.bf16.gmra.mxu0 %v432
    %v495 = vpop.f32.mrf.mxu0
    %v496 = vadd.f32 %v483, %v495
    %v497 = vpop.f32.mrf.mxu0
    %498 = vdwg.mxu0
    %v499 = vld [vmem:[%s2] sm:$0xff]
    %v500 = vld [vmem:[%s2 + $0x8] sm:$0xff]
    %v501 = vld [vmem:[%s2 + $0x10] sm:$0xf]
    %v505 = vunpack.c.l.b16 %v499
    %v506 = vunpack.c.h.b16 %v499
    %v507 = vunpack.c.l.b16 %v500
    %v508 = vunpack.c.h.b16 %v500
    %v509 = vunpack.c.l.b16 %v501
    %v510 = vpack.c.b16 %v505, %v505
    %v511 = vpack.c.b16 %v506, %v506
    %v512 = vpack.c.b16 %v507, %v507
    %v513 = vpack.c.b16 %v508, %v508
    %v514 = vpack.c.b16 %v509, %v509
    %v520 = vsel %vm342, %v514, 0
    %522 = vmatpush.bf16.msra.mxu0 %v277
    %523 = vmatpush.bf16.msra.mxu0 %v276
    %524 = vmatpush.bf16.msra.mxu0 %v275
    %525 = vmatpush.bf16.msra.mxu0 %v274
    %526 = vmatpush.bf16.msra.mxu0 %v273
    %527 = vmatpush.bf16.msra.mxu0 %v272
    %528 = vmatpush.bf16.msra.mxu0 %v271
    %529 = vmatpush.bf16.msra.mxu0 %v270
    %530 = vmatmul.bf16.gmra.mxu0 %v510
    %v531 = vpop.f32.mrf.mxu0
    %v532 = vadd.f32 0.0, %v531
    %v533 = vpop.f32.mrf.mxu0
    %534 = vdwg.mxu0
    %535 = vmatpush.bf16.msra.mxu0 %v285
    %536 = vmatpush.bf16.msra.mxu0 %v284
    %537 = vmatpush.bf16.msra.mxu0 %v283
    %538 = vmatpush.bf16.msra.mxu0 %v282
    %539 = vmatpush.bf16.msra.mxu0 %v281
    %540 = vmatpush.bf16.msra.mxu0 %v280
    %541 = vmatpush.bf16.msra.mxu0 %v279
    %542 = vmatpush.bf16.msra.mxu0 %v278
    %543 = vmatmul.bf16.gmra.mxu0 %v511
    %v544 = vpop.f32.mrf.mxu0
    %v545 = vadd.f32 %v532, %v544
    %v546 = vpop.f32.mrf.mxu0
    %547 = vdwg.mxu0
    %548 = vmatpush.bf16.msra.mxu0 %v293
    %549 = vmatpush.bf16.msra.mxu0 %v292
    %550 = vmatpush.bf16.msra.mxu0 %v291
    %551 = vmatpush.bf16.msra.mxu0 %v290
    %552 = vmatpush.bf16.msra.mxu0 %v289
    %553 = vmatpush.bf16.msra.mxu0 %v288
    %554 = vmatpush.bf16.msra.mxu0 %v287
    %555 = vmatpush.bf16.msra.mxu0 %v286
    %556 = vmatmul.bf16.gmra.mxu0 %v512
    %v557 = vpop.f32.mrf.mxu0
    %v558 = vadd.f32 %v545, %v557
    %v559 = vpop.f32.mrf.mxu0
    %560 = vdwg.mxu0
    %561 = vmatpush.bf16.msra.mxu0 %v301
    %562 = vmatpush.bf16.msra.mxu0 %v300
    %563 = vmatpush.bf16.msra.mxu0 %v299
    %564 = vmatpush.bf16.msra.mxu0 %v298
    %565 = vmatpush.bf16.msra.mxu0 %v297
    %566 = vmatpush.bf16.msra.mxu0 %v296
    %567 = vmatpush.bf16.msra.mxu0 %v295
    %568 = vmatpush.bf16.msra.mxu0 %v294
    %569 = vmatmul.bf16.gmra.mxu0 %v513
    %v570 = vpop.f32.mrf.mxu0
    %v571 = vadd.f32 %v558, %v570
    %v572 = vpop.f32.mrf.mxu0
    %573 = vdwg.mxu0
    %574 = vmatpush.bf16.msra.mxu0 0
    %575 = vmatpush.bf16.msra.mxu0 0
    %576 = vmatpush.bf16.msra.mxu0 0
    %577 = vmatpush.bf16.msra.mxu0 0
    %578 = vmatpush.bf16.msra.mxu0 %v305
    %579 = vmatpush.bf16.msra.mxu0 %v304
    %580 = vmatpush.bf16.msra.mxu0 %v303
    %581 = vmatpush.bf16.msra.mxu0 %v302
    %582 = vmatmul.bf16.gmra.mxu0 %v520
    %v583 = vpop.f32.mrf.mxu0
    %v584 = vadd.f32 %v571, %v583
    %v585 = vpop.f32.mrf.mxu0
    %586 = vdwg.mxu0
    %v587 = vld [vmem:[%s3] sm:$0xff]
    %v588 = vld [vmem:[%s3 + $0x8] sm:$0xff]
    %v589 = vld [vmem:[%s3 + $0x10] sm:$0xf]
    %v593 = vunpack.c.l.b16 %v587
    %v594 = vunpack.c.h.b16 %v587
    %v595 = vunpack.c.l.b16 %v588
    %v596 = vunpack.c.h.b16 %v588
    %v597 = vunpack.c.l.b16 %v589
    %v598 = vpack.c.b16 %v593, %v593
    %v599 = vpack.c.b16 %v594, %v594
    %v600 = vpack.c.b16 %v595, %v595
    %v601 = vpack.c.b16 %v596, %v596
    %v602 = vpack.c.b16 %v597, %v597
    %v608 = vsel %vm342, %v602, 0
    %610 = vmatpush.bf16.msra.mxu0 %v277
    %611 = vmatpush.bf16.msra.mxu0 %v276
    %612 = vmatpush.bf16.msra.mxu0 %v275
    %613 = vmatpush.bf16.msra.mxu0 %v274
    %614 = vmatpush.bf16.msra.mxu0 %v273
    %615 = vmatpush.bf16.msra.mxu0 %v272
    %616 = vmatpush.bf16.msra.mxu0 %v271
    %617 = vmatpush.bf16.msra.mxu0 %v270
    %618 = vmatmul.bf16.gmra.mxu0 %v598
    %v619 = vpop.f32.mrf.mxu0
    %v620 = vadd.f32 0.0, %v619
    %v621 = vpop.f32.mrf.mxu0
    %622 = vdwg.mxu0
    %623 = vmatpush.bf16.msra.mxu0 %v285
    %624 = vmatpush.bf16.msra.mxu0 %v284
    %625 = vmatpush.bf16.msra.mxu0 %v283
    %626 = vmatpush.bf16.msra.mxu0 %v282
    %627 = vmatpush.bf16.msra.mxu0 %v281
    %628 = vmatpush.bf16.msra.mxu0 %v280
    %629 = vmatpush.bf16.msra.mxu0 %v279
    %630 = vmatpush.bf16.msra.mxu0 %v278
    %631 = vmatmul.bf16.gmra.mxu0 %v599
    %v632 = vpop.f32.mrf.mxu0
    %v633 = vadd.f32 %v620, %v632
    %v634 = vpop.f32.mrf.mxu0
    %635 = vdwg.mxu0
    %636 = vmatpush.bf16.msra.mxu0 %v293
    %637 = vmatpush.bf16.msra.mxu0 %v292
    %638 = vmatpush.bf16.msra.mxu0 %v291
    %639 = vmatpush.bf16.msra.mxu0 %v290
    %640 = vmatpush.bf16.msra.mxu0 %v289
    %641 = vmatpush.bf16.msra.mxu0 %v288
    %642 = vmatpush.bf16.msra.mxu0 %v287
    %643 = vmatpush.bf16.msra.mxu0 %v286
    %644 = vmatmul.bf16.gmra.mxu0 %v600
    %v645 = vpop.f32.mrf.mxu0
    %v646 = vadd.f32 %v633, %v645
    %v647 = vpop.f32.mrf.mxu0
    %648 = vdwg.mxu0
    %649 = vmatpush.bf16.msra.mxu0 %v301
    %650 = vmatpush.bf16.msra.mxu0 %v300
    %651 = vmatpush.bf16.msra.mxu0 %v299
    %652 = vmatpush.bf16.msra.mxu0 %v298
    %653 = vmatpush.bf16.msra.mxu0 %v297
    %654 = vmatpush.bf16.msra.mxu0 %v296
    %655 = vmatpush.bf16.msra.mxu0 %v295
    %656 = vmatpush.bf16.msra.mxu0 %v294
    %657 = vmatmul.bf16.gmra.mxu0 %v601
    %v658 = vpop.f32.mrf.mxu0
    %v659 = vadd.f32 %v646, %v658
    %v660 = vpop.f32.mrf.mxu0
    %661 = vdwg.mxu0
    %662 = vmatpush.bf16.msra.mxu0 0
    %663 = vmatpush.bf16.msra.mxu0 0
    %664 = vmatpush.bf16.msra.mxu0 0
    %665 = vmatpush.bf16.msra.mxu0 0
    %666 = vmatpush.bf16.msra.mxu0 %v305
    %667 = vmatpush.bf16.msra.mxu0 %v304
    %668 = vmatpush.bf16.msra.mxu0 %v303
    %669 = vmatpush.bf16.msra.mxu0 %v302
    %670 = vmatmul.bf16.gmra.mxu0 %v608
    %v671 = vpop.f32.mrf.mxu0
    %v672 = vadd.f32 %v659, %v671
    %v673 = vpop.f32.mrf.mxu0
    %674 = vdwg.mxu0
    %v675 = vmax.f32 %v408, %v496
    %v676 = vmax.f32 %v584, %v672
    %v677 = vmax.f32 %v675, %v676
    %v678 = vld [vmem:[%s5] sm:$0x1]
    %v680 = vperm.slane %v678, 0
    %v682 = vadd.f32 %v677, %v680
    %v683 = vmax.f32 %v682, 0.0
    %v684 = vld [vmem:[%s6] sm:$0x3]
    %vm685 = vcmask 64512
    %v687 = vsel %vm685, %v684, 0
    %689 = vmatpush.msra.mxu0 0.0
    %690 = vmatpush.msra.mxu0 0.0
    %691 = vmatpush.msra.mxu0 0.0
    %692 = vmatpush.msra.mxu0 0.0
    %693 = vmatpush.msra.mxu0 0.0
    %694 = vmatpush.msra.mxu0 0.0
    %695 = vmatpush.msra.mxu0 0.0
    %696 = vmatpush.msra.mxu0 0.0
    %697 = vmatpush.msra.mxu0 0.0
    %698 = vmatpush.msra.mxu0 0.0
    %699 = vmatpush.msra.mxu0 0.0
    %700 = vmatpush.msra.mxu0 0.0
    %701 = vmatpush.msra.mxu0 0.0
    %702 = vmatpush.msra.mxu0 0.0
    %703 = vmatpush.msra.mxu0 0.0
    %704 = vmatpush.msra.mxu0 %v683
    %705 = vmatmul.f32.gmra.mxu0 %v687
    %v706 = vpop.f32.mrf.mxu0
    %v707 = vadd.f32 0.0, %v706
    %708 = vdwg.mxu0
    %v709 = vld [vmem:[%s7] sm:$0xff]
    %v710 = vld [vmem:[%s7 + $0x8] sm:$0xff]
    %v711 = vld [vmem:[%s7 + $0x10] sm:$0xff]
    %v712 = vld [vmem:[%s7 + $0x18] sm:$0xff]
    %v713 = vld [vmem:[%s7 + $0x20] sm:$0xff]
    %v714 = vld [vmem:[%s7 + $0x28] sm:$0xff]
    %v715 = vld [vmem:[%s7 + $0x30] sm:$0xff]
    %v716 = vld [vmem:[%s7 + $0x38] sm:$0xff]
    %v717 = vld [vmem:[%s7 + $0x40] sm:$0xff]
    %v718 = vld [vmem:[%s7 + $0x48] sm:$0xff]
    %v719 = vld [vmem:[%s7 + $0x50] sm:$0xff]
    %v720 = vld [vmem:[%s7 + $0x58] sm:$0xff]
    %v721 = vld [vmem:[%s7 + $0x60] sm:$0xff]
    %v722 = vld [vmem:[%s7 + $0x68] sm:$0xff]
    %v723 = vld [vmem:[%s7 + $0x70] sm:$0xff]
    %v724 = vld [vmem:[%s7 + $0x78] sm:$0xff]
    %v725 = vld [vmem:[%s8] sm:$0x1]
    %v727 = vperm.slane %v725, 0
    %729 = vmatpush.msra.mxu0 %v724
    %730 = vmatpush.msra.mxu0 %v723
    %731 = vmatpush.msra.mxu0 %v722
    %732 = vmatpush.msra.mxu0 %v721
    %733 = vmatpush.msra.mxu0 %v720
    %734 = vmatpush.msra.mxu0 %v719
    %735 = vmatpush.msra.mxu0 %v718
    %736 = vmatpush.msra.mxu0 %v717
    %737 = vmatpush.msra.mxu0 %v716
    %738 = vmatpush.msra.mxu0 %v715
    %739 = vmatpush.msra.mxu0 %v714
    %740 = vmatpush.msra.mxu0 %v713
    %741 = vmatpush.msra.mxu0 %v712
    %742 = vmatpush.msra.mxu0 %v711
    %743 = vmatpush.msra.mxu0 %v710
    %744 = vmatpush.msra.mxu0 %v709
    %745 = vmatmul.f32.gmra.mxu0 %v707
    %v746 = vpop.f32.mrf.mxu0
    %v747 = vadd.f32 %v727, %v746
    %748 = vdwg.mxu0
    %749 = vst [vmem:[#allocation2] sm:$0x3] %v747
    // Predicated region
    $region38: #{simple_cnn_forward.7} parent=1 // pred_check
      _
    $region39: #{simple_cnn_forward.7} parent=1 // pred_check_branch
      %751 = sbr.rel (0) target = $region41
    $region40: #{simple_cnn_forward.7} parent=1 // pred_region
      %753 = vsyncadd [#allocation3], 0
      %s755 = sshll.u32 [#allocation2], 4
      %s756 = int_to_ptr.vmem [resolvable:$true] %s755
      %s757 = sshll.u32 %s9, 4
      %s758 = int_to_ptr.hbm [resolvable:$true] %s757
      %760 = dma.vmem_to_hbm [thread:$0]  %s756, 32, %s758, [#allocation3]
    $region41: #{simple_cnn_forward.7} parent=1 // pred_fallthru
      _
    // Predicated region
    $region42: #{simple_cnn_forward.7} parent=1 // pred_check
      _
    $region43: #{simple_cnn_forward.7} parent=1 // pred_check_branch
      %762 = sbr.rel (0) target = $region45
    $region44: #{simple_cnn_forward.7} parent=1 // pred_region
      %764 = dma.done [#allocation3], 32
    $region45: #{simple_cnn_forward.7} parent=1 // pred_fallthru
      _
    %765 = vsyncpa [#allocation3], 1

</llo_original>
